<compile_context>
chip_gen: v7x
topology: tpu7x:2x2x1
jax: 0.10.0
libtpu: 0.0.40
codegen_flags: <defaults>
</compile_context>

<pallas_src>
import functools

import jax
import jax.numpy as jnp
from jax.experimental import pallas as pl
from jax.experimental.pallas import tpu as pltpu


OUT_LANES = 128   # lane-dense packed output width
SLAB_ROWS = 24    # 17 parameter rows, padded to a sublane multiple

# Packed parameter slab: one parameter per row, lane-0 aligned.
ROW_FA_G, ROW_FA_B, ROW_FA_B1, ROW_FA_W2, ROW_FA_B2 = 0, 1, 2, 3, 4
ROW_FC1_B, ROW_N1_G, ROW_N1_B = 5, 6, 7
ROW_FC2_B, ROW_N2_G, ROW_N2_B = 8, 9, 10
ROW_FC3_B, ROW_N3_G, ROW_N3_B = 11, 12, 13
ROW_HEADS_B, ROW_RM_WP, ROW_RL_WP = 14, 15, 16


def _layernorm(v, g, b, eps=1e-5):
    m = jnp.mean(v, axis=-1, keepdims=True)
    var = jnp.mean((v - m) ** 2, axis=-1, keepdims=True)
    return (v - m) * jax.lax.rsqrt(var + eps) * g + b


def species_productivity_kernel(
    x_ref, fa_w1_ref, fc1_w_ref, fc2_w_ref, fc3_w_ref, heads_w_ref, slab_ref,
    out_ref,
    *, sub_rows, num_classes, valid_rows, mask_padding,
):
    bt, D = x_ref.shape
    H = fc1_w_ref.shape[1]
    C = num_classes

    # ---- hoist weights / packed parameter rows once per grid step ----
    fa_w1 = fa_w1_ref[...]
    fc1_w = fc1_w_ref[...]
    fc2_w = fc2_w_ref[...]
    fc3_w = fc3_w_ref[...]
    heads_w = heads_w_ref[...]                         # (H, 128): [cls_w | rm_wh | rl_wh | 0...]

    fa_g = slab_ref[ROW_FA_G:ROW_FA_G + 1, :D]
    fa_b = slab_ref[ROW_FA_B:ROW_FA_B + 1, :D]
    fa_b1 = slab_ref[ROW_FA_B1:ROW_FA_B1 + 1, :D]
    fa_w2 = slab_ref[ROW_FA_W2:ROW_FA_W2 + 1, :D]      # N=1 attn head as a row (VPU reduce)
    fa_b2 = slab_ref[ROW_FA_B2:ROW_FA_B2 + 1, 0:1]
    fc1_b = slab_ref[ROW_FC1_B:ROW_FC1_B + 1, :H]
    n1_g = slab_ref[ROW_N1_G:ROW_N1_G + 1, :H]
    n1_b = slab_ref[ROW_N1_B:ROW_N1_B + 1, :H]
    fc2_b = slab_ref[ROW_FC2_B:ROW_FC2_B + 1, :H]
    n2_g = slab_ref[ROW_N2_G:ROW_N2_G + 1, :H]
    n2_b = slab_ref[ROW_N2_B:ROW_N2_B + 1, :H]
    fc3_b = slab_ref[ROW_FC3_B:ROW_FC3_B + 1, :H]
    n3_g = slab_ref[ROW_N3_G:ROW_N3_G + 1, :H]
    n3_b = slab_ref[ROW_N3_B:ROW_N3_B + 1, :H]
    heads_b = slab_ref[ROW_HEADS_B:ROW_HEADS_B + 1, :]  # (1, 128): [cls_b | rm_b | rl_b | 0...]
    rm_wp = slab_ref[ROW_RM_WP:ROW_RM_WP + 1, :C]
    rl_wp = slab_ref[ROW_RL_WP:ROW_RL_WP + 1, :C]

    col = jax.lax.broadcasted_iota(jnp.int32, (sub_rows, OUT_LANES), 1)
    base_row = pl.program_id(0) * bt

    def sub_block(c, carry):
        r0 = pl.multiple_of(c * sub_rows, sub_rows)
        x = x_ref[pl.ds(r0, sub_rows), :]

        # ---- FeatureAttention: x + x * sigmoid(w2 . tanh(W1 LN(x) + b1) + b2) ----
        xn = _layernorm(x, fa_g, fa_b)
        a1 = jnp.tanh(jnp.dot(xn, fa_w1, preferred_element_type=jnp.float32) + fa_b1)
        score = jax.nn.sigmoid(jnp.sum(a1 * fa_w2, axis=-1, keepdims=True) + fa_b2)
        x = x + x * score

        # ---- Shared MLP with residual (x3 + x1) ----
        h1 = jnp.maximum(
            _layernorm(jnp.dot(x, fc1_w, preferred_element_type=jnp.float32) + fc1_b,
                       n1_g, n1_b), 0.0)
        h2 = jnp.maximum(
            _layernorm(jnp.dot(h1, fc2_w, preferred_element_type=jnp.float32) + fc2_b,
                       n2_g, n2_b), 0.0)
        h3 = jnp.dot(h2, fc3_w, preferred_element_type=jnp.float32) + fc3_b
        h = jnp.maximum(_layernorm(h3 + h1, n3_g, n3_b), 0.0)

        # ---- Fused heads: one lane-dense (sub, 128) MXU result ----
        # lanes 0..C-1: logits; lane C: h@rm_wh + rm_b; lane C+1: h@rl_wh + rl_b
        head = jnp.dot(h, heads_w, preferred_element_type=jnp.float32) + heads_b

        logits = head[:, :C]
        m = jnp.max(logits, axis=-1, keepdims=True)
        e = jnp.exp(logits - m)
        probs = e * pl.reciprocal(jnp.sum(e, axis=-1, keepdims=True), approx=False)

        mu = head[:, C:C + 1] + jnp.sum(probs * rm_wp, axis=-1, keepdims=True)
        logvar = head[:, C + 1:C + 2] + jnp.sum(probs * rl_wp, axis=-1, keepdims=True)
        sigma = jnp.exp(0.5 * logvar)

        # ---- pack [logits | mu | logvar | sigma | 0...] into one 128-lane block ----
        out = (
            jnp.where(col < C, head, 0.0)
            + jnp.where(col == C, mu, 0.0)
            + jnp.where(col == C + 1, logvar, 0.0)
            + jnp.where(col == C + 2, sigma, 0.0)
        )
        if mask_padding:
            row = base_row + r0 + jax.lax.broadcasted_iota(
                jnp.int32, (sub_rows, OUT_LANES), 0)
            out = jnp.where(row < valid_rows, out, 0.0)

        out_ref[pl.ds(r0, sub_rows), :] = out
        return carry

    jax.lax.fori_loop(0, bt // sub_rows, sub_block, 0)


def init_params(key, input_dim, num_classes, hidden_dim):
    """Deterministic synthetic parameters (kernel layout: W is (in, out))."""
    ks = jax.random.split(key, 20)
    s = 0.1

    def w(k, shape):
        return (s * jax.random.normal(k, shape)).astype(jnp.float32)

    return dict(
        # FeatureAttention
        fa_g=jnp.ones((1, input_dim), jnp.float32),
        fa_b=jnp.zeros((1, input_dim), jnp.float32),
        fa_w1=w(ks[0], (input_dim, input_dim)),
        fa_b1=w(ks[1], (1, input_dim)),
        fa_w2=w(ks[2], (input_dim, 1)),
        fa_b2=w(ks[3], (1, 1)),
        # MLP
        fc1_w=w(ks[4], (input_dim, hidden_dim)),
        fc1_b=w(ks[5], (1, hidden_dim)),
        n1_g=jnp.ones((1, hidden_dim), jnp.float32),
        n1_b=jnp.zeros((1, hidden_dim), jnp.float32),
        fc2_w=w(ks[6], (hidden_dim, hidden_dim)),
        fc2_b=w(ks[7], (1, hidden_dim)),
        n2_g=jnp.ones((1, hidden_dim), jnp.float32),
        n2_b=jnp.zeros((1, hidden_dim), jnp.float32),
        fc3_w=w(ks[8], (hidden_dim, hidden_dim)),
        fc3_b=w(ks[9], (1, hidden_dim)),
        n3_g=jnp.ones((1, hidden_dim), jnp.float32),
        n3_b=jnp.zeros((1, hidden_dim), jnp.float32),
        # Classifier
        cls_w=w(ks[10], (hidden_dim, num_classes)),
        cls_b=w(ks[11], (1, num_classes)),
        # Regression heads: split of the (hidden+num_classes, 1) nn.Linear weight
        rm_wh=w(ks[12], (hidden_dim, 1)),
        rm_wp=w(ks[13], (num_classes, 1)),
        rm_b=w(ks[14], (1, 1)),
        rl_wh=w(ks[15], (hidden_dim, 1)),
        rl_wp=w(ks[16], (num_classes, 1)),
        rl_b=w(ks[17], (1, 1)),
    )


def pack_params(params):
    """One-time packing: tiny vectors -> one (24,128) slab, head weights fused
    into one lane-dense (H,128) matrix. Done once outside the hot path."""
    D = params["fa_w1"].shape[0]
    H = params["fc1_w"].shape[1]
    C = params["cls_w"].shape[1]
    assert max(D, H, C) <= OUT_LANES and C + 3 <= OUT_LANES, "dims must fit 128 lanes"

    slab = jnp.zeros((SLAB_ROWS, OUT_LANES), jnp.float32)

    def put(s, row, vec):
        v = jnp.asarray(vec, jnp.float32).reshape(-1)
        return s.at[row, : v.shape[0]].set(v)

    slab = put(slab, ROW_FA_G, params["fa_g"])
    slab = put(slab, ROW_FA_B, params["fa_b"])
    slab = put(slab, ROW_FA_B1, params["fa_b1"])
    slab = put(slab, ROW_FA_W2, params["fa_w2"])
    slab = put(slab, ROW_FA_B2, params["fa_b2"])
    slab = put(slab, ROW_FC1_B, params["fc1_b"])
    slab = put(slab, ROW_N1_G, params["n1_g"])
    slab = put(slab, ROW_N1_B, params["n1_b"])
    slab = put(slab, ROW_FC2_B, params["fc2_b"])
    slab = put(slab, ROW_N2_G, params["n2_g"])
    slab = put(slab, ROW_N2_B, params["n2_b"])
    slab = put(slab, ROW_FC3_B, params["fc3_b"])
    slab = put(slab, ROW_N3_G, params["n3_g"])
    slab = put(slab, ROW_N3_B, params["n3_b"])

    heads_b = jnp.zeros((OUT_LANES,), jnp.float32)
    heads_b = heads_b.at[:C].set(params["cls_b"].reshape(-1))
    heads_b = heads_b.at[C].set(params["rm_b"].reshape(()))
    heads_b = heads_b.at[C + 1].set(params["rl_b"].reshape(()))
    slab = slab.at[ROW_HEADS_B, :].set(heads_b)

    slab = put(slab, ROW_RM_WP, params["rm_wp"])
    slab = put(slab, ROW_RL_WP, params["rl_wp"])

    heads_w = jnp.zeros((H, OUT_LANES), jnp.float32)
    heads_w = heads_w.at[:, :C].set(params["cls_w"])
    heads_w = heads_w.at[:, C].set(params["rm_wh"][:, 0])
    heads_w = heads_w.at[:, C + 1].set(params["rl_wh"][:, 0])

    return dict(
        fa_w1=params["fa_w1"], fc1_w=params["fc1_w"],
        fc2_w=params["fc2_w"], fc3_w=params["fc3_w"],
        heads_w=heads_w, slab=slab,
    )


def _round_up(a, b):
    return -(-a // b) * b


def _num_tensorcores():
    """2 grid steps on v7x (2 TensorCores/chip), else 1. Safe fallback: 1."""
    try:
        kind = jax.devices()[0].device_kind.lower()
    except Exception:
        return 1
    return 2 if "7" in kind else 1


@functools.partial(
    jax.jit,
    static_argnames=("num_classes", "num_tiles", "sub_rows", "single_buffer_params"),
)
def _forward(x, packed, *, num_classes, num_tiles, sub_rows, single_buffer_params):
    B, D = x.shape
    H = packed["fc1_w"].shape[1]
    C = num_classes

    bt = _round_up(-(-B // num_tiles), sub_rows)
    Bp = bt * num_tiles
    if Bp != B:
        x = jnp.pad(x, ((0, Bp - B), (0, 0)))  # padded rows masked to 0 in-kernel

    kern = functools.partial(
        species_productivity_kernel,
        sub_rows=sub_rows, num_classes=C, valid_rows=B, mask_padding=(Bp != B),
    )

    mats = [packed["fa_w1"], packed["fc1_w"], packed["fc2_w"], packed["fc3_w"],
            packed["heads_w"], packed["slab"]]

    def bcast_spec(shape):
        nd = len(shape)
        if single_buffer_params:
            # Constant index map -> no double buffering needed.
            return pl.BlockSpec(shape, lambda i: (0,) * nd,
                                pipeline_mode=pl.Buffered(1))
        return pl.BlockSpec(shape, lambda i: (0,) * nd)

    in_specs = [pl.BlockSpec((bt, D), lambda i: (i, 0))] + [bcast_spec(m.shape) for m in mats]
    out_spec = pl.BlockSpec((bt, OUT_LANES), lambda i: (i, 0))

    matmul_flops = 2 * Bp * (D * D + D * H + 2 * H * H + H * OUT_LANES)
    vpu_flops = Bp * (12 * D + 20 * H + 10 * C + 2 * OUT_LANES)
    transcendentals = Bp * (D + C + 4)
    bytes_accessed = 4 * (Bp * (D + OUT_LANES) + sum(int(m.size) for m in mats))

    out = pl.pallas_call(
        kern,
        out_shape=jax.ShapeDtypeStruct((Bp, OUT_LANES), jnp.float32),
        grid_spec=pltpu.PrefetchScalarGridSpec(
            num_scalar_prefetch=0,
            grid=(num_tiles,),
            in_specs=in_specs,
            out_specs=out_spec,
        ),
        compiler_params=pltpu.CompilerParams(
            dimension_semantics=("parallel",),
        ),
        cost_estimate=pl.CostEstimate(
            flops=matmul_flops + vpu_flops,
            transcendentals=transcendentals,
            bytes_accessed=bytes_accessed,
        ),
    )(x, *mats)

    logits = out[:B, :C]
    mu = out[:B, C]
    logvar = out[:B, C + 1]
    sigma = out[:B, C + 2]
    return logits, mu, logvar, sigma


def species_productivity_forward(x, packed, num_classes, num_tiles=None, sub_rows=64):
    if num_tiles is None:
        num_tiles = _num_tensorcores()
    B = x.shape[0]
    sub = min(sub_rows, _round_up(-(-B // num_tiles), 8))
    sub = max(8, (sub // 8) * 8)
    try:
        return _forward(x, packed, num_classes=num_classes, num_tiles=num_tiles,
                        sub_rows=sub, single_buffer_params=True)
    except Exception:
        # TODO(synk): pl.Buffered(1) single-buffer broadcast params rejected by this
        # jax build; fall back to default double-buffered parameter BlockSpecs.
        return _forward(x, packed, num_classes=num_classes, num_tiles=num_tiles,
                        sub_rows=sub, single_buffer_params=False)


def reference_forward(x, p):
    """Pure-JAX reference mirroring the PyTorch module semantics."""
    def ln(v, g, b):
        m = jnp.mean(v, -1, keepdims=True)
        var = jnp.mean((v - m) ** 2, -1, keepdims=True)
        return (v - m) / jnp.sqrt(var + 1e-5) * g + b

    xn = ln(x, p["fa_g"], p["fa_b"])
    scores = jax.nn.sigmoid(
        jnp.tanh(xn @ p["fa_w1"] + p["fa_b1"]) @ p["fa_w2"] + p["fa_b2"]
    )
    x = x + x * scores
    h1 = jax.nn.relu(ln(x @ p["fc1_w"] + p["fc1_b"], p["n1_g"], p["n1_b"]))
    h2 = jax.nn.relu(ln(h1 @ p["fc2_w"] + p["fc2_b"], p["n2_g"], p["n2_b"]))
    h3 = h2 @ p["fc3_w"] + p["fc3_b"]
    h = jax.nn.relu(ln(h3 + h1, p["n3_g"], p["n3_b"]))
    logits = h @ p["cls_w"] + p["cls_b"]
    probs = jax.nn.softmax(logits, axis=-1)
    mu = (h @ p["rm_wh"] + probs @ p["rm_wp"] + p["rm_b"])[:, 0]
    logvar = (h @ p["rl_wh"] + probs @ p["rl_wp"] + p["rl_b"])[:, 0]
    sigma = jnp.exp(0.5 * logvar)
    return logits, mu, logvar, sigma


if __name__ == "__main__":
    # Tabular shapes consistent with the module; batch large enough that v7x's
    # two TensorCores each get one parallel grid step, v5e/v6e get a single step.
    batch, input_dim, hidden_dim, num_classes = 512, 16, 32, 4

    key = jax.random.PRNGKey(0)
    k_x, k_p = jax.random.split(key)
    x = jax.random.normal(k_x, (batch, input_dim), dtype=jnp.float32)
    params = init_params(k_p, input_dim, num_classes, hidden_dim)
    packed = pack_params(params)  # one-time parameter packing (outside hot path)

    logits, mu, logvar, sigma = species_productivity_forward(x, packed, num_classes)
    jax.block_until_ready((logits, mu, logvar, sigma))

    # Silent numerical check against the pure-JAX reference.
    r_logits, r_mu, r_logvar, r_sigma = reference_forward(x, params)
    assert jnp.allclose(logits, r_logits, atol=1e-4, rtol=1e-4)
    assert jnp.allclose(mu, r_mu, atol=1e-4, rtol=1e-4)
    assert jnp.allclose(logvar, r_logvar, atol=1e-4, rtol=1e-4)
    assert jnp.allclose(sigma, r_sigma, atol=1e-4, rtol=1e-4)

    assert logits.shape == (batch, num_classes)
    assert mu.shape == (batch,) and logvar.shape == (batch,) and sigma.shape == (batch,)

    print("KERNEL_OK")
</pallas_src>

<mosaic_0001>
module attributes {stable_mosaic.version = 11 : i64} {
  func.func @species_productivity_kernel(%arg0: i32, %arg1: memref<512x16xf32, #tpu.memory_space<vmem>>, %arg2: memref<16x16xf32, #tpu.memory_space<vmem>>, %arg3: memref<16x32xf32, #tpu.memory_space<vmem>>, %arg4: memref<32x32xf32, #tpu.memory_space<vmem>>, %arg5: memref<32x32xf32, #tpu.memory_space<vmem>>, %arg6: memref<32x128xf32, #tpu.memory_space<vmem>>, %arg7: memref<24x128xf32, #tpu.memory_space<vmem>>, %arg8: memref<512x128xf32, #tpu.memory_space<vmem>>) attributes {dimension_semantics = [#tpu.dimension_semantics<parallel>], iteration_bounds = array<i64: 1>, scalar_prefetch = 0 : i64, scratch_operands = 0 : i64, tpu.core_type = #tpu.core_type<tc>, window_params = [{transform_indices = @transform_0, window_bounds = array<i64: 512, 16>}, {pipeline_mode = #tpu.pipeline_mode<synchronous>, transform_indices = @transform_1, window_bounds = array<i64: 16, 16>}, {pipeline_mode = #tpu.pipeline_mode<synchronous>, transform_indices = @transform_2, window_bounds = array<i64: 16, 32>}, {pipeline_mode = #tpu.pipeline_mode<synchronous>, transform_indices = @transform_3, window_bounds = array<i64: 32, 32>}, {pipeline_mode = #tpu.pipeline_mode<synchronous>, transform_indices = @transform_4, window_bounds = array<i64: 32, 32>}, {pipeline_mode = #tpu.pipeline_mode<synchronous>, transform_indices = @transform_5, window_bounds = array<i64: 32, 128>}, {pipeline_mode = #tpu.pipeline_mode<synchronous>, transform_indices = @transform_6, window_bounds = array<i64: 24, 128>}, {transform_indices = @transform_7, window_bounds = array<i64: 512, 128>}]} {
    %c0 = arith.constant 0 : index
    %c0_0 = arith.constant 0 : index
    %0 = vector.load %arg2[%c0, %c0_0] : memref<16x16xf32, #tpu.memory_space<vmem>>, vector<16x16xf32>
    %c0_1 = arith.constant 0 : index
    %c0_2 = arith.constant 0 : index
    %1 = vector.load %arg3[%c0_1, %c0_2] : memref<16x32xf32, #tpu.memory_space<vmem>>, vector<16x32xf32>
    %c0_3 = arith.constant 0 : index
    %c0_4 = arith.constant 0 : index
    %2 = vector.load %arg4[%c0_3, %c0_4] : memref<32x32xf32, #tpu.memory_space<vmem>>, vector<32x32xf32>
    %c0_5 = arith.constant 0 : index
    %c0_6 = arith.constant 0 : index
    %3 = vector.load %arg5[%c0_5, %c0_6] : memref<32x32xf32, #tpu.memory_space<vmem>>, vector<32x32xf32>
    %c0_7 = arith.constant 0 : index
    %c0_8 = arith.constant 0 : index
    %4 = vector.load %arg6[%c0_7, %c0_8] : memref<32x128xf32, #tpu.memory_space<vmem>>, vector<32x128xf32>
    %c0_9 = arith.constant 0 : index
    %c0_10 = arith.constant 0 : index
    %5 = vector.load %arg7[%c0_9, %c0_10] : memref<24x128xf32, #tpu.memory_space<vmem>>, vector<1x16xf32>
    %c1 = arith.constant 1 : index
    %c0_11 = arith.constant 0 : index
    %6 = vector.load %arg7[%c1, %c0_11] : memref<24x128xf32, #tpu.memory_space<vmem>>, vector<1x16xf32>
    %c2 = arith.constant 2 : index
    %c0_12 = arith.constant 0 : index
    %7 = vector.load %arg7[%c2, %c0_12] : memref<24x128xf32, #tpu.memory_space<vmem>>, vector<1x16xf32>
    %c3 = arith.constant 3 : index
    %c0_13 = arith.constant 0 : index
    %8 = vector.load %arg7[%c3, %c0_13] : memref<24x128xf32, #tpu.memory_space<vmem>>, vector<1x16xf32>
    %c4 = arith.constant 4 : index
    %c0_14 = arith.constant 0 : index
    %9 = vector.load %arg7[%c4, %c0_14] : memref<24x128xf32, #tpu.memory_space<vmem>>, vector<1x1xf32>
    %c5 = arith.constant 5 : index
    %c0_15 = arith.constant 0 : index
    %10 = vector.load %arg7[%c5, %c0_15] : memref<24x128xf32, #tpu.memory_space<vmem>>, vector<1x32xf32>
    %c6 = arith.constant 6 : index
    %c0_16 = arith.constant 0 : index
    %11 = vector.load %arg7[%c6, %c0_16] : memref<24x128xf32, #tpu.memory_space<vmem>>, vector<1x32xf32>
    %c7 = arith.constant 7 : index
    %c0_17 = arith.constant 0 : index
    %12 = vector.load %arg7[%c7, %c0_17] : memref<24x128xf32, #tpu.memory_space<vmem>>, vector<1x32xf32>
    %c8 = arith.constant 8 : index
    %c0_18 = arith.constant 0 : index
    %13 = vector.load %arg7[%c8, %c0_18] : memref<24x128xf32, #tpu.memory_space<vmem>>, vector<1x32xf32>
    %c9 = arith.constant 9 : index
    %c0_19 = arith.constant 0 : index
    %14 = vector.load %arg7[%c9, %c0_19] : memref<24x128xf32, #tpu.memory_space<vmem>>, vector<1x32xf32>
    %c10 = arith.constant 10 : index
    %c0_20 = arith.constant 0 : index
    %15 = vector.load %arg7[%c10, %c0_20] : memref<24x128xf32, #tpu.memory_space<vmem>>, vector<1x32xf32>
    %c11 = arith.constant 11 : index
    %c0_21 = arith.constant 0 : index
    %16 = vector.load %arg7[%c11, %c0_21] : memref<24x128xf32, #tpu.memory_space<vmem>>, vector<1x32xf32>
    %c12 = arith.constant 12 : index
    %c0_22 = arith.constant 0 : index
    %17 = vector.load %arg7[%c12, %c0_22] : memref<24x128xf32, #tpu.memory_space<vmem>>, vector<1x32xf32>
    %c13 = arith.constant 13 : index
    %c0_23 = arith.constant 0 : index
    %18 = vector.load %arg7[%c13, %c0_23] : memref<24x128xf32, #tpu.memory_space<vmem>>, vector<1x32xf32>
    %c14 = arith.constant 14 : index
    %c0_24 = arith.constant 0 : index
    %19 = vector.load %arg7[%c14, %c0_24] : memref<24x128xf32, #tpu.memory_space<vmem>>, vector<1x128xf32>
    %c15 = arith.constant 15 : index
    %c0_25 = arith.constant 0 : index
    %20 = vector.load %arg7[%c15, %c0_25] : memref<24x128xf32, #tpu.memory_space<vmem>>, vector<1x4xf32>
    %c16 = arith.constant 16 : index
    %c0_26 = arith.constant 0 : index
    %21 = vector.load %arg7[%c16, %c0_26] : memref<24x128xf32, #tpu.memory_space<vmem>>, vector<1x4xf32>
    %22 = tpu.iota {dimensions = array<i32: 1>} : vector<64x128xi32>
    %c0_i32 = arith.constant 0 : i32
    %c8_i32 = arith.constant 8 : i32
    %23 = arith.addi %c0_i32, %c8_i32 : i32
    %c1_i32 = arith.constant 1 : i32
    scf.for %arg9 = %c0_i32 to %23 step %c1_i32  : i32 {
      %c64_i32 = arith.constant 64 : i32
      %24 = arith.muli %arg9, %c64_i32 : i32
      %25 = tpu.assume_multiple %24, 64 : i32
      %26 = arith.index_cast %25 : i32 to index
      %c0_28 = arith.constant 0 : index
      %27 = vector.load %arg1[%26, %c0_28] : memref<512x16xf32, #tpu.memory_space<vmem>>, vector<64x16xf32>
      %cst = arith.constant dense<0.000000e+00> : vector<64xf32>
      %28 = vector.multi_reduction <add>, %27, %cst [1] : vector<64x16xf32> to vector<64xf32>
      %29 = vector.shape_cast %28 : vector<64xf32> to vector<64x1xf32>
      %cst_29 = arith.constant 1.600000e+01 : f32
      %30 = vector.broadcast %cst_29 : f32 to vector<64x1xf32>
      %31 = arith.divf %29, %30 : vector<64x1xf32>
      %32 = vector.broadcast %31 : vector<64x1xf32> to vector<64x16xf32>
      %33 = arith.subf %27, %32 : vector<64x16xf32>
      %34 = arith.mulf %33, %33 : vector<64x16xf32>
      %cst_30 = arith.constant dense<0.000000e+00> : vector<64xf32>
      %35 = vector.multi_reduction <add>, %34, %cst_30 [1] : vector<64x16xf32> to vector<64xf32>
      %36 = vector.shape_cast %35 : vector<64xf32> to vector<64x1xf32>
      %cst_31 = arith.constant 1.600000e+01 : f32
      %37 = vector.broadcast %cst_31 : f32 to vector<64x1xf32>
      %38 = arith.divf %36, %37 : vector<64x1xf32>
      %39 = vector.broadcast %31 : vector<64x1xf32> to vector<64x16xf32>
      %40 = arith.subf %27, %39 : vector<64x16xf32>
      %cst_32 = arith.constant 9.99999974E-6 : f32
      %41 = vector.broadcast %cst_32 : f32 to vector<64x1xf32>
      %42 = arith.addf %38, %41 : vector<64x1xf32>
      %43 = math.rsqrt %42 : vector<64x1xf32>
      %44 = vector.broadcast %43 : vector<64x1xf32> to vector<64x16xf32>
      %45 = arith.mulf %40, %44 : vector<64x16xf32>
      %46 = vector.broadcast %5 : vector<1x16xf32> to vector<64x16xf32>
      %47 = arith.mulf %45, %46 : vector<64x16xf32>
      %48 = vector.broadcast %6 : vector<1x16xf32> to vector<64x16xf32>
      %49 = arith.addf %47, %48 : vector<64x16xf32>
      %cst_33 = arith.constant dense<0.000000e+00> : vector<64x16xf32>
      %50 = tpu.matmul %49, %0, %cst_33 {dimension_numbers = #tpu.dot_dimension_numbers<[1], [0], [0], [1], [0, 0, 1, 1], [], []>} : vector<64x16xf32>, vector<16x16xf32>, vector<64x16xf32> -> vector<64x16xf32>
      %51 = vector.broadcast %7 : vector<1x16xf32> to vector<64x16xf32>
      %52 = arith.addf %50, %51 : vector<64x16xf32>
      %53 = math.tanh %52 : vector<64x16xf32>
      %54 = vector.broadcast %8 : vector<1x16xf32> to vector<64x16xf32>
      %55 = arith.mulf %53, %54 : vector<64x16xf32>
      %cst_34 = arith.constant dense<0.000000e+00> : vector<64xf32>
      %56 = vector.multi_reduction <add>, %55, %cst_34 [1] : vector<64x16xf32> to vector<64xf32>
      %57 = vector.shape_cast %56 : vector<64xf32> to vector<64x1xf32>
      %58 = vector.broadcast %9 : vector<1x1xf32> to vector<64x1xf32>
      %59 = arith.addf %57, %58 : vector<64x1xf32>
      %60 = arith.negf %59 : vector<64x1xf32>
      %61 = math.exp %60 : vector<64x1xf32>
      %cst_35 = arith.constant 1.000000e+00 : f32
      %62 = vector.broadcast %cst_35 : f32 to vector<64x1xf32>
      %63 = arith.addf %62, %61 : vector<64x1xf32>
      %64 = arith.divf %62, %63 : vector<64x1xf32>
      %65 = vector.broadcast %64 : vector<64x1xf32> to vector<64x16xf32>
      %66 = arith.mulf %27, %65 : vector<64x16xf32>
      %67 = arith.addf %27, %66 : vector<64x16xf32>
      %cst_36 = arith.constant dense<0.000000e+00> : vector<64x32xf32>
      %68 = tpu.matmul %67, %1, %cst_36 {dimension_numbers = #tpu.dot_dimension_numbers<[1], [0], [0], [1], [0, 0, 1, 1], [], []>} : vector<64x16xf32>, vector<16x32xf32>, vector<64x32xf32> -> vector<64x32xf32>
      %69 = vector.broadcast %10 : vector<1x32xf32> to vector<64x32xf32>
      %70 = arith.addf %68, %69 : vector<64x32xf32>
      %cst_37 = arith.constant dense<0.000000e+00> : vector<64xf32>
      %71 = vector.multi_reduction <add>, %70, %cst_37 [1] : vector<64x32xf32> to vector<64xf32>
      %72 = vector.shape_cast %71 : vector<64xf32> to vector<64x1xf32>
      %cst_38 = arith.constant 3.200000e+01 : f32
      %73 = vector.broadcast %cst_38 : f32 to vector<64x1xf32>
      %74 = arith.divf %72, %73 : vector<64x1xf32>
      %75 = vector.broadcast %74 : vector<64x1xf32> to vector<64x32xf32>
      %76 = arith.subf %70, %75 : vector<64x32xf32>
      %77 = arith.mulf %76, %76 : vector<64x32xf32>
      %cst_39 = arith.constant dense<0.000000e+00> : vector<64xf32>
      %78 = vector.multi_reduction <add>, %77, %cst_39 [1] : vector<64x32xf32> to vector<64xf32>
      %79 = vector.shape_cast %78 : vector<64xf32> to vector<64x1xf32>
      %cst_40 = arith.constant 3.200000e+01 : f32
      %80 = vector.broadcast %cst_40 : f32 to vector<64x1xf32>
      %81 = arith.divf %79, %80 : vector<64x1xf32>
      %82 = vector.broadcast %74 : vector<64x1xf32> to vector<64x32xf32>
      %83 = arith.subf %70, %82 : vector<64x32xf32>
      %cst_41 = arith.constant 9.99999974E-6 : f32
      %84 = vector.broadcast %cst_41 : f32 to vector<64x1xf32>
      %85 = arith.addf %81, %84 : vector<64x1xf32>
      %86 = math.rsqrt %85 : vector<64x1xf32>
      %87 = vector.broadcast %86 : vector<64x1xf32> to vector<64x32xf32>
      %88 = arith.mulf %83, %87 : vector<64x32xf32>
      %89 = vector.broadcast %11 : vector<1x32xf32> to vector<64x32xf32>
      %90 = arith.mulf %88, %89 : vector<64x32xf32>
      %91 = vector.broadcast %12 : vector<1x32xf32> to vector<64x32xf32>
      %92 = arith.addf %90, %91 : vector<64x32xf32>
      %cst_42 = arith.constant 0.000000e+00 : f32
      %93 = vector.broadcast %cst_42 : f32 to vector<64x32xf32>
      %94 = arith.maximumf %92, %93 : vector<64x32xf32>
      %cst_43 = arith.constant dense<0.000000e+00> : vector<64x32xf32>
      %95 = tpu.matmul %94, %2, %cst_43 {dimension_numbers = #tpu.dot_dimension_numbers<[1], [0], [0], [1], [0, 0, 1, 1], [], []>} : vector<64x32xf32>, vector<32x32xf32>, vector<64x32xf32> -> vector<64x32xf32>
      %96 = vector.broadcast %13 : vector<1x32xf32> to vector<64x32xf32>
      %97 = arith.addf %95, %96 : vector<64x32xf32>
      %cst_44 = arith.constant dense<0.000000e+00> : vector<64xf32>
      %98 = vector.multi_reduction <add>, %97, %cst_44 [1] : vector<64x32xf32> to vector<64xf32>
      %99 = vector.shape_cast %98 : vector<64xf32> to vector<64x1xf32>
      %cst_45 = arith.constant 3.200000e+01 : f32
      %100 = vector.broadcast %cst_45 : f32 to vector<64x1xf32>
      %101 = arith.divf %99, %100 : vector<64x1xf32>
      %102 = vector.broadcast %101 : vector<64x1xf32> to vector<64x32xf32>
      %103 = arith.subf %97, %102 : vector<64x32xf32>
      %104 = arith.mulf %103, %103 : vector<64x32xf32>
      %cst_46 = arith.constant dense<0.000000e+00> : vector<64xf32>
      %105 = vector.multi_reduction <add>, %104, %cst_46 [1] : vector<64x32xf32> to vector<64xf32>
      %106 = vector.shape_cast %105 : vector<64xf32> to vector<64x1xf32>
      %cst_47 = arith.constant 3.200000e+01 : f32
      %107 = vector.broadcast %cst_47 : f32 to vector<64x1xf32>
      %108 = arith.divf %106, %107 : vector<64x1xf32>
      %109 = vector.broadcast %101 : vector<64x1xf32> to vector<64x32xf32>
      %110 = arith.subf %97, %109 : vector<64x32xf32>
      %cst_48 = arith.constant 9.99999974E-6 : f32
      %111 = vector.broadcast %cst_48 : f32 to vector<64x1xf32>
      %112 = arith.addf %108, %111 : vector<64x1xf32>
      %113 = math.rsqrt %112 : vector<64x1xf32>
      %114 = vector.broadcast %113 : vector<64x1xf32> to vector<64x32xf32>
      %115 = arith.mulf %110, %114 : vector<64x32xf32>
      %116 = vector.broadcast %14 : vector<1x32xf32> to vector<64x32xf32>
      %117 = arith.mulf %115, %116 : vector<64x32xf32>
      %118 = vector.broadcast %15 : vector<1x32xf32> to vector<64x32xf32>
      %119 = arith.addf %117, %118 : vector<64x32xf32>
      %cst_49 = arith.constant 0.000000e+00 : f32
      %120 = vector.broadcast %cst_49 : f32 to vector<64x32xf32>
      %121 = arith.maximumf %119, %120 : vector<64x32xf32>
      %cst_50 = arith.constant dense<0.000000e+00> : vector<64x32xf32>
      %122 = tpu.matmul %121, %3, %cst_50 {dimension_numbers = #tpu.dot_dimension_numbers<[1], [0], [0], [1], [0, 0, 1, 1], [], []>} : vector<64x32xf32>, vector<32x32xf32>, vector<64x32xf32> -> vector<64x32xf32>
      %123 = vector.broadcast %16 : vector<1x32xf32> to vector<64x32xf32>
      %124 = arith.addf %122, %123 : vector<64x32xf32>
      %125 = arith.addf %124, %94 : vector<64x32xf32>
      %cst_51 = arith.constant dense<0.000000e+00> : vector<64xf32>
      %126 = vector.multi_reduction <add>, %125, %cst_51 [1] : vector<64x32xf32> to vector<64xf32>
      %127 = vector.shape_cast %126 : vector<64xf32> to vector<64x1xf32>
      %cst_52 = arith.constant 3.200000e+01 : f32
      %128 = vector.broadcast %cst_52 : f32 to vector<64x1xf32>
      %129 = arith.divf %127, %128 : vector<64x1xf32>
      %130 = vector.broadcast %129 : vector<64x1xf32> to vector<64x32xf32>
      %131 = arith.subf %125, %130 : vector<64x32xf32>
      %132 = arith.mulf %131, %131 : vector<64x32xf32>
      %cst_53 = arith.constant dense<0.000000e+00> : vector<64xf32>
      %133 = vector.multi_reduction <add>, %132, %cst_53 [1] : vector<64x32xf32> to vector<64xf32>
      %134 = vector.shape_cast %133 : vector<64xf32> to vector<64x1xf32>
      %cst_54 = arith.constant 3.200000e+01 : f32
      %135 = vector.broadcast %cst_54 : f32 to vector<64x1xf32>
      %136 = arith.divf %134, %135 : vector<64x1xf32>
      %137 = vector.broadcast %129 : vector<64x1xf32> to vector<64x32xf32>
      %138 = arith.subf %125, %137 : vector<64x32xf32>
      %cst_55 = arith.constant 9.99999974E-6 : f32
      %139 = vector.broadcast %cst_55 : f32 to vector<64x1xf32>
      %140 = arith.addf %136, %139 : vector<64x1xf32>
      %141 = math.rsqrt %140 : vector<64x1xf32>
      %142 = vector.broadcast %141 : vector<64x1xf32> to vector<64x32xf32>
      %143 = arith.mulf %138, %142 : vector<64x32xf32>
      %144 = vector.broadcast %17 : vector<1x32xf32> to vector<64x32xf32>
      %145 = arith.mulf %143, %144 : vector<64x32xf32>
      %146 = vector.broadcast %18 : vector<1x32xf32> to vector<64x32xf32>
      %147 = arith.addf %145, %146 : vector<64x32xf32>
      %cst_56 = arith.constant 0.000000e+00 : f32
      %148 = vector.broadcast %cst_56 : f32 to vector<64x32xf32>
      %149 = arith.maximumf %147, %148 : vector<64x32xf32>
      %cst_57 = arith.constant dense<0.000000e+00> : vector<64x128xf32>
      %150 = tpu.matmul %149, %4, %cst_57 {dimension_numbers = #tpu.dot_dimension_numbers<[1], [0], [0], [1], [0, 0, 1, 1], [], []>} : vector<64x32xf32>, vector<32x128xf32>, vector<64x128xf32> -> vector<64x128xf32>
      %151 = vector.broadcast %19 : vector<1x128xf32> to vector<64x128xf32>
      %152 = arith.addf %150, %151 : vector<64x128xf32>
      %153 = vector.extract_strided_slice %152 {offsets = [0, 0], sizes = [64, 4], strides = [1, 1]} : vector<64x128xf32> to vector<64x4xf32>
      %cst_58 = arith.constant dense<0xFF800000> : vector<64xf32>
      %154 = vector.multi_reduction <maximumf>, %153, %cst_58 [1] : vector<64x4xf32> to vector<64xf32>
      %155 = vector.shape_cast %154 : vector<64xf32> to vector<64x1xf32>
      %156 = vector.broadcast %155 : vector<64x1xf32> to vector<64x4xf32>
      %157 = arith.subf %153, %156 : vector<64x4xf32>
      %158 = math.exp %157 : vector<64x4xf32>
      %cst_59 = arith.constant dense<0.000000e+00> : vector<64xf32>
      %159 = vector.multi_reduction <add>, %158, %cst_59 [1] : vector<64x4xf32> to vector<64xf32>
      %160 = vector.shape_cast %159 : vector<64xf32> to vector<64x1xf32>
      %161 = tpu.reciprocal %160 : vector<64x1xf32> -> vector<64x1xf32>
      %162 = vector.broadcast %161 : vector<64x1xf32> to vector<64x4xf32>
      %163 = arith.mulf %158, %162 : vector<64x4xf32>
      %164 = vector.extract_strided_slice %152 {offsets = [0, 4], sizes = [64, 1], strides = [1, 1]} : vector<64x128xf32> to vector<64x1xf32>
      %165 = vector.broadcast %20 : vector<1x4xf32> to vector<64x4xf32>
      %166 = arith.mulf %163, %165 : vector<64x4xf32>
      %cst_60 = arith.constant dense<0.000000e+00> : vector<64xf32>
      %167 = vector.multi_reduction <add>, %166, %cst_60 [1] : vector<64x4xf32> to vector<64xf32>
      %168 = vector.shape_cast %167 : vector<64xf32> to vector<64x1xf32>
      %169 = arith.addf %164, %168 : vector<64x1xf32>
      %170 = vector.extract_strided_slice %152 {offsets = [0, 5], sizes = [64, 1], strides = [1, 1]} : vector<64x128xf32> to vector<64x1xf32>
      %171 = vector.broadcast %21 : vector<1x4xf32> to vector<64x4xf32>
      %172 = arith.mulf %163, %171 : vector<64x4xf32>
      %cst_61 = arith.constant dense<0.000000e+00> : vector<64xf32>
      %173 = vector.multi_reduction <add>, %172, %cst_61 [1] : vector<64x4xf32> to vector<64xf32>
      %174 = vector.shape_cast %173 : vector<64xf32> to vector<64x1xf32>
      %175 = arith.addf %170, %174 : vector<64x1xf32>
      %cst_62 = arith.constant 5.000000e-01 : f32
      %176 = vector.broadcast %cst_62 : f32 to vector<64x1xf32>
      %177 = arith.mulf %176, %175 : vector<64x1xf32>
      %178 = math.exp %177 : vector<64x1xf32>
      %c4_i32 = arith.constant 4 : i32
      %179 = vector.broadcast %c4_i32 : i32 to vector<64x128xi32>
      %180 = arith.cmpi slt, %22, %179 : vector<64x128xi32>
      %cst_63 = arith.constant 0.000000e+00 : f32
      %181 = vector.broadcast %cst_63 : f32 to vector<64x128xf32>
      %182 = arith.select %180, %152, %181 : vector<64x128xi1>, vector<64x128xf32>
      %c4_i32_64 = arith.constant 4 : i32
      %183 = vector.broadcast %c4_i32_64 : i32 to vector<64x128xi32>
      %184 = arith.cmpi eq, %22, %183 : vector<64x128xi32>
      %cst_65 = arith.constant 0.000000e+00 : f32
      %185 = vector.shape_cast %169 : vector<64x1xf32> to vector<64x1xf32>
      %186 = vector.broadcast %185 : vector<64x1xf32> to vector<64x128xf32>
      %187 = vector.broadcast %cst_65 : f32 to vector<64x128xf32>
      %188 = arith.select %184, %186, %187 : vector<64x128xi1>, vector<64x128xf32>
      %189 = arith.addf %182, %188 : vector<64x128xf32>
      %c5_i32 = arith.constant 5 : i32
      %190 = vector.broadcast %c5_i32 : i32 to vector<64x128xi32>
      %191 = arith.cmpi eq, %22, %190 : vector<64x128xi32>
      %cst_66 = arith.constant 0.000000e+00 : f32
      %192 = vector.shape_cast %175 : vector<64x1xf32> to vector<64x1xf32>
      %193 = vector.broadcast %192 : vector<64x1xf32> to vector<64x128xf32>
      %194 = vector.broadcast %cst_66 : f32 to vector<64x128xf32>
      %195 = arith.select %191, %193, %194 : vector<64x128xi1>, vector<64x128xf32>
      %196 = arith.addf %189, %195 : vector<64x128xf32>
      %c6_i32 = arith.constant 6 : i32
      %197 = vector.broadcast %c6_i32 : i32 to vector<64x128xi32>
      %198 = arith.cmpi eq, %22, %197 : vector<64x128xi32>
      %cst_67 = arith.constant 0.000000e+00 : f32
      %199 = vector.shape_cast %178 : vector<64x1xf32> to vector<64x1xf32>
      %200 = vector.broadcast %199 : vector<64x1xf32> to vector<64x128xf32>
      %201 = vector.broadcast %cst_67 : f32 to vector<64x128xf32>
      %202 = arith.select %198, %200, %201 : vector<64x128xi1>, vector<64x128xf32>
      %203 = arith.addf %196, %202 : vector<64x128xf32>
      %204 = arith.index_cast %25 : i32 to index
      %c0_68 = arith.constant 0 : index
      %205 = vector.load %arg8[%204, %c0_68] : memref<512x128xf32, #tpu.memory_space<vmem>>, vector<64x128xf32>
      tpu.vector_store %arg8[%204, %c0_68], %203 {strides = array<i32>} : memref<512x128xf32, #tpu.memory_space<vmem>>, vector<64x128xf32>,
    }
    %c8_i32_27 = arith.constant 8 : i32
    return
  }
  func.func @transform_0(%arg0: i32) -> (i32, i32) {
    %c0_i32 = arith.constant 0 : i32
    %c0_i32_0 = arith.constant 0 : i32
    return %arg0, %c0_i32 : i32, i32
  }
  func.func @transform_1(%arg0: i32) -> (i32, i32) {
    %c0_i32 = arith.constant 0 : i32
    %c0_i32_0 = arith.constant 0 : i32
    %c0_i32_1 = arith.constant 0 : i32
    return %c0_i32, %c0_i32_0 : i32, i32
  }
  func.func @transform_2(%arg0: i32) -> (i32, i32) {
    %c0_i32 = arith.constant 0 : i32
    %c0_i32_0 = arith.constant 0 : i32
    %c0_i32_1 = arith.constant 0 : i32
    return %c0_i32, %c0_i32_0 : i32, i32
  }
  func.func @transform_3(%arg0: i32) -> (i32, i32) {
    %c0_i32 = arith.constant 0 : i32
    %c0_i32_0 = arith.constant 0 : i32
    %c0_i32_1 = arith.constant 0 : i32
    return %c0_i32, %c0_i32_0 : i32, i32
  }
  func.func @transform_4(%arg0: i32) -> (i32, i32) {
    %c0_i32 = arith.constant 0 : i32
    %c0_i32_0 = arith.constant 0 : i32
    %c0_i32_1 = arith.constant 0 : i32
    return %c0_i32, %c0_i32_0 : i32, i32
  }
  func.func @transform_5(%arg0: i32) -> (i32, i32) {
    %c0_i32 = arith.constant 0 : i32
    %c0_i32_0 = arith.constant 0 : i32
    %c0_i32_1 = arith.constant 0 : i32
    return %c0_i32, %c0_i32_0 : i32, i32
  }
  func.func @transform_6(%arg0: i32) -> (i32, i32) {
    %c0_i32 = arith.constant 0 : i32
    %c0_i32_0 = arith.constant 0 : i32
    %c0_i32_1 = arith.constant 0 : i32
    return %c0_i32, %c0_i32_0 : i32, i32
  }
  func.func @transform_7(%arg0: i32) -> (i32, i32) {
    %c0_i32 = arith.constant 0 : i32
    %c0_i32_0 = arith.constant 0 : i32
    return %arg0, %c0_i32 : i32, i32
  }
}

module attributes {stable_mosaic.version = 11 : i64} {
  func.func @species_productivity_kernel(%arg0: i32, %arg1: memref<512x16xf32, #tpu.memory_space<vmem>>, %arg2: memref<16x16xf32, #tpu.memory_space<vmem>>, %arg3: memref<16x32xf32, #tpu.memory_space<vmem>>, %arg4: memref<32x32xf32, #tpu.memory_space<vmem>>, %arg5: memref<32x32xf32, #tpu.memory_space<vmem>>, %arg6: memref<32x128xf32, #tpu.memory_space<vmem>>, %arg7: memref<24x128xf32, #tpu.memory_space<vmem>>, %arg8: memref<512x128xf32, #tpu.memory_space<vmem>>) attributes {dimension_semantics = [#tpu.dimension_semantics<parallel>], iteration_bounds = array<i64: 1>, scalar_prefetch = 0 : i64, scratch_operands = 0 : i64, tpu.core_type = #tpu.core_type<tc>, window_params = [{transform_indices = @transform_0, window_bounds = array<i64: 512, 16>}, {pipeline_mode = #tpu.pipeline_mode<synchronous>, transform_indices = @transform_1, window_bounds = array<i64: 16, 16>}, {pipeline_mode = #tpu.pipeline_mode<synchronous>, transform_indices = @transform_2, window_bounds = array<i64: 16, 32>}, {pipeline_mode = #tpu.pipeline_mode<synchronous>, transform_indices = @transform_3, window_bounds = array<i64: 32, 32>}, {pipeline_mode = #tpu.pipeline_mode<synchronous>, transform_indices = @transform_4, window_bounds = array<i64: 32, 32>}, {pipeline_mode = #tpu.pipeline_mode<synchronous>, transform_indices = @transform_5, window_bounds = array<i64: 32, 128>}, {pipeline_mode = #tpu.pipeline_mode<synchronous>, transform_indices = @transform_6, window_bounds = array<i64: 24, 128>}, {transform_indices = @transform_7, window_bounds = array<i64: 512, 128>}]} {
    %c0 = arith.constant 0 : index
    %c0_0 = arith.constant 0 : index
    %0 = vector.load %arg2[%c0, %c0_0] : memref<16x16xf32, #tpu.memory_space<vmem>>, vector<16x16xf32>
    %c0_1 = arith.constant 0 : index
    %c0_2 = arith.constant 0 : index
    %1 = vector.load %arg3[%c0_1, %c0_2] : memref<16x32xf32, #tpu.memory_space<vmem>>, vector<16x32xf32>
    %c0_3 = arith.constant 0 : index
    %c0_4 = arith.constant 0 : index
    %2 = vector.load %arg4[%c0_3, %c0_4] : memref<32x32xf32, #tpu.memory_space<vmem>>, vector<32x32xf32>
    %c0_5 = arith.constant 0 : index
    %c0_6 = arith.constant 0 : index
    %3 = vector.load %arg5[%c0_5, %c0_6] : memref<32x32xf32, #tpu.memory_space<vmem>>, vector<32x32xf32>
    %c0_7 = arith.constant 0 : index
    %c0_8 = arith.constant 0 : index
    %4 = vector.load %arg6[%c0_7, %c0_8] : memref<32x128xf32, #tpu.memory_space<vmem>>, vector<32x128xf32>
    %c0_9 = arith.constant 0 : index
    %c0_10 = arith.constant 0 : index
    %5 = vector.load %arg7[%c0_9, %c0_10] : memref<24x128xf32, #tpu.memory_space<vmem>>, vector<1x16xf32>
    %c1 = arith.constant 1 : index
    %c0_11 = arith.constant 0 : index
    %6 = vector.load %arg7[%c1, %c0_11] : memref<24x128xf32, #tpu.memory_space<vmem>>, vector<1x16xf32>
    %c2 = arith.constant 2 : index
    %c0_12 = arith.constant 0 : index
    %7 = vector.load %arg7[%c2, %c0_12] : memref<24x128xf32, #tpu.memory_space<vmem>>, vector<1x16xf32>
    %c3 = arith.constant 3 : index
    %c0_13 = arith.constant 0 : index
    %8 = vector.load %arg7[%c3, %c0_13] : memref<24x128xf32, #tpu.memory_space<vmem>>, vector<1x16xf32>
    %c4 = arith.constant 4 : index
    %c0_14 = arith.constant 0 : index
    %9 = vector.load %arg7[%c4, %c0_14] : memref<24x128xf32, #tpu.memory_space<vmem>>, vector<1x1xf32>
    %c5 = arith.constant 5 : index
    %c0_15 = arith.constant 0 : index
    %10 = vector.load %arg7[%c5, %c0_15] : memref<24x128xf32, #tpu.memory_space<vmem>>, vector<1x32xf32>
    %c6 = arith.constant 6 : index
    %c0_16 = arith.constant 0 : index
    %11 = vector.load %arg7[%c6, %c0_16] : memref<24x128xf32, #tpu.memory_space<vmem>>, vector<1x32xf32>
    %c7 = arith.constant 7 : index
    %c0_17 = arith.constant 0 : index
    %12 = vector.load %arg7[%c7, %c0_17] : memref<24x128xf32, #tpu.memory_space<vmem>>, vector<1x32xf32>
    %c8 = arith.constant 8 : index
    %c0_18 = arith.constant 0 : index
    %13 = vector.load %arg7[%c8, %c0_18] : memref<24x128xf32, #tpu.memory_space<vmem>>, vector<1x32xf32>
    %c9 = arith.constant 9 : index
    %c0_19 = arith.constant 0 : index
    %14 = vector.load %arg7[%c9, %c0_19] : memref<24x128xf32, #tpu.memory_space<vmem>>, vector<1x32xf32>
    %c10 = arith.constant 10 : index
    %c0_20 = arith.constant 0 : index
    %15 = vector.load %arg7[%c10, %c0_20] : memref<24x128xf32, #tpu.memory_space<vmem>>, vector<1x32xf32>
    %c11 = arith.constant 11 : index
    %c0_21 = arith.constant 0 : index
    %16 = vector.load %arg7[%c11, %c0_21] : memref<24x128xf32, #tpu.memory_space<vmem>>, vector<1x32xf32>
    %c12 = arith.constant 12 : index
    %c0_22 = arith.constant 0 : index
    %17 = vector.load %arg7[%c12, %c0_22] : memref<24x128xf32, #tpu.memory_space<vmem>>, vector<1x32xf32>
    %c13 = arith.constant 13 : index
    %c0_23 = arith.constant 0 : index
    %18 = vector.load %arg7[%c13, %c0_23] : memref<24x128xf32, #tpu.memory_space<vmem>>, vector<1x32xf32>
    %c14 = arith.constant 14 : index
    %c0_24 = arith.constant 0 : index
    %19 = vector.load %arg7[%c14, %c0_24] : memref<24x128xf32, #tpu.memory_space<vmem>>, vector<1x128xf32>
    %c15 = arith.constant 15 : index
    %c0_25 = arith.constant 0 : index
    %20 = vector.load %arg7[%c15, %c0_25] : memref<24x128xf32, #tpu.memory_space<vmem>>, vector<1x4xf32>
    %c16 = arith.constant 16 : index
    %c0_26 = arith.constant 0 : index
    %21 = vector.load %arg7[%c16, %c0_26] : memref<24x128xf32, #tpu.memory_space<vmem>>, vector<1x4xf32>
    %22 = tpu.iota {dimensions = array<i32: 1>} : vector<64x128xi32>
    %c0_i32 = arith.constant 0 : i32
    %c8_i32 = arith.constant 8 : i32
    %23 = arith.addi %c0_i32, %c8_i32 : i32
    %c1_i32 = arith.constant 1 : i32
    scf.for %arg9 = %c0_i32 to %23 step %c1_i32  : i32 {
      %c64_i32 = arith.constant 64 : i32
      %24 = arith.muli %arg9, %c64_i32 : i32
      %25 = tpu.assume_multiple %24, 64 : i32
      %26 = arith.index_cast %25 : i32 to index
      %c0_28 = arith.constant 0 : index
      %27 = vector.load %arg1[%26, %c0_28] : memref<512x16xf32, #tpu.memory_space<vmem>>, vector<64x16xf32>
      %cst = arith.constant dense<0.000000e+00> : vector<64xf32>
      %28 = vector.multi_reduction <add>, %27, %cst [1] : vector<64x16xf32> to vector<64xf32>
      %29 = vector.shape_cast %28 : vector<64xf32> to vector<64x1xf32>
      %cst_29 = arith.constant 1.600000e+01 : f32
      %30 = vector.broadcast %cst_29 : f32 to vector<64x1xf32>
      %31 = arith.divf %29, %30 : vector<64x1xf32>
      %32 = vector.broadcast %31 : vector<64x1xf32> to vector<64x16xf32>
      %33 = arith.subf %27, %32 : vector<64x16xf32>
      %34 = arith.mulf %33, %33 : vector<64x16xf32>
      %cst_30 = arith.constant dense<0.000000e+00> : vector<64xf32>
      %35 = vector.multi_reduction <add>, %34, %cst_30 [1] : vector<64x16xf32> to vector<64xf32>
      %36 = vector.shape_cast %35 : vector<64xf32> to vector<64x1xf32>
      %cst_31 = arith.constant 1.600000e+01 : f32
      %37 = vector.broadcast %cst_31 : f32 to vector<64x1xf32>
      %38 = arith.divf %36, %37 : vector<64x1xf32>
      %39 = vector.broadcast %31 : vector<64x1xf32> to vector<64x16xf32>
      %40 = arith.subf %27, %39 : vector<64x16xf32>
      %cst_32 = arith.constant 9.99999974E-6 : f32
      %41 = vector.broadcast %cst_32 : f32 to vector<64x1xf32>
      %42 = arith.addf %38, %41 : vector<64x1xf32>
      %43 = math.rsqrt %42 : vector<64x1xf32>
      %44 = vector.broadcast %43 : vector<64x1xf32> to vector<64x16xf32>
      %45 = arith.mulf %40, %44 : vector<64x16xf32>
      %46 = vector.broadcast %5 : vector<1x16xf32> to vector<64x16xf32>
      %47 = arith.mulf %45, %46 : vector<64x16xf32>
      %48 = vector.broadcast %6 : vector<1x16xf32> to vector<64x16xf32>
      %49 = arith.addf %47, %48 : vector<64x16xf32>
      %cst_33 = arith.constant dense<0.000000e+00> : vector<64x16xf32>
      %50 = tpu.matmul %49, %0, %cst_33 {dimension_numbers = #tpu.dot_dimension_numbers<[1], [0], [0], [1], [0, 0, 1, 1], [], []>} : vector<64x16xf32>, vector<16x16xf32>, vector<64x16xf32> -> vector<64x16xf32>
      %51 = vector.broadcast %7 : vector<1x16xf32> to vector<64x16xf32>
      %52 = arith.addf %50, %51 : vector<64x16xf32>
      %53 = math.tanh %52 : vector<64x16xf32>
      %54 = vector.broadcast %8 : vector<1x16xf32> to vector<64x16xf32>
      %55 = arith.mulf %53, %54 : vector<64x16xf32>
      %cst_34 = arith.constant dense<0.000000e+00> : vector<64xf32>
      %56 = vector.multi_reduction <add>, %55, %cst_34 [1] : vector<64x16xf32> to vector<64xf32>
      %57 = vector.shape_cast %56 : vector<64xf32> to vector<64x1xf32>
      %58 = vector.broadcast %9 : vector<1x1xf32> to vector<64x1xf32>
      %59 = arith.addf %57, %58 : vector<64x1xf32>
      %60 = arith.negf %59 : vector<64x1xf32>
      %61 = math.exp %60 : vector<64x1xf32>
      %cst_35 = arith.constant 1.000000e+00 : f32
      %62 = vector.broadcast %cst_35 : f32 to vector<64x1xf32>
      %63 = arith.addf %62, %61 : vector<64x1xf32>
      %64 = arith.divf %62, %63 : vector<64x1xf32>
      %65 = vector.broadcast %64 : vector<64x1xf32> to vector<64x16xf32>
      %66 = arith.mulf %27, %65 : vector<64x16xf32>
      %67 = arith.addf %27, %66 : vector<64x16xf32>
      %cst_36 = arith.constant dense<0.000000e+00> : vector<64x32xf32>
      %68 = tpu.matmul %67, %1, %cst_36 {dimension_numbers = #tpu.dot_dimension_numbers<[1], [0], [0], [1], [0, 0, 1, 1], [], []>} : vector<64x16xf32>, vector<16x32xf32>, vector<64x32xf32> -> vector<64x32xf32>
      %69 = vector.broadcast %10 : vector<1x32xf32> to vector<64x32xf32>
      %70 = arith.addf %68, %69 : vector<64x32xf32>
      %cst_37 = arith.constant dense<0.000000e+00> : vector<64xf32>
      %71 = vector.multi_reduction <add>, %70, %cst_37 [1] : vector<64x32xf32> to vector<64xf32>
      %72 = vector.shape_cast %71 : vector<64xf32> to vector<64x1xf32>
      %cst_38 = arith.constant 3.200000e+01 : f32
      %73 = vector.broadcast %cst_38 : f32 to vector<64x1xf32>
      %74 = arith.divf %72, %73 : vector<64x1xf32>
      %75 = vector.broadcast %74 : vector<64x1xf32> to vector<64x32xf32>
      %76 = arith.subf %70, %75 : vector<64x32xf32>
      %77 = arith.mulf %76, %76 : vector<64x32xf32>
      %cst_39 = arith.constant dense<0.000000e+00> : vector<64xf32>
      %78 = vector.multi_reduction <add>, %77, %cst_39 [1] : vector<64x32xf32> to vector<64xf32>
      %79 = vector.shape_cast %78 : vector<64xf32> to vector<64x1xf32>
      %cst_40 = arith.constant 3.200000e+01 : f32
      %80 = vector.broadcast %cst_40 : f32 to vector<64x1xf32>
      %81 = arith.divf %79, %80 : vector<64x1xf32>
      %82 = vector.broadcast %74 : vector<64x1xf32> to vector<64x32xf32>
      %83 = arith.subf %70, %82 : vector<64x32xf32>
      %cst_41 = arith.constant 9.99999974E-6 : f32
      %84 = vector.broadcast %cst_41 : f32 to vector<64x1xf32>
      %85 = arith.addf %81, %84 : vector<64x1xf32>
      %86 = math.rsqrt %85 : vector<64x1xf32>
      %87 = vector.broadcast %86 : vector<64x1xf32> to vector<64x32xf32>
      %88 = arith.mulf %83, %87 : vector<64x32xf32>
      %89 = vector.broadcast %11 : vector<1x32xf32> to vector<64x32xf32>
      %90 = arith.mulf %88, %89 : vector<64x32xf32>
      %91 = vector.broadcast %12 : vector<1x32xf32> to vector<64x32xf32>
      %92 = arith.addf %90, %91 : vector<64x32xf32>
      %cst_42 = arith.constant 0.000000e+00 : f32
      %93 = vector.broadcast %cst_42 : f32 to vector<64x32xf32>
      %94 = arith.maximumf %92, %93 : vector<64x32xf32>
      %cst_43 = arith.constant dense<0.000000e+00> : vector<64x32xf32>
      %95 = tpu.matmul %94, %2, %cst_43 {dimension_numbers = #tpu.dot_dimension_numbers<[1], [0], [0], [1], [0, 0, 1, 1], [], []>} : vector<64x32xf32>, vector<32x32xf32>, vector<64x32xf32> -> vector<64x32xf32>
      %96 = vector.broadcast %13 : vector<1x32xf32> to vector<64x32xf32>
      %97 = arith.addf %95, %96 : vector<64x32xf32>
      %cst_44 = arith.constant dense<0.000000e+00> : vector<64xf32>
      %98 = vector.multi_reduction <add>, %97, %cst_44 [1] : vector<64x32xf32> to vector<64xf32>
      %99 = vector.shape_cast %98 : vector<64xf32> to vector<64x1xf32>
      %cst_45 = arith.constant 3.200000e+01 : f32
      %100 = vector.broadcast %cst_45 : f32 to vector<64x1xf32>
      %101 = arith.divf %99, %100 : vector<64x1xf32>
      %102 = vector.broadcast %101 : vector<64x1xf32> to vector<64x32xf32>
      %103 = arith.subf %97, %102 : vector<64x32xf32>
      %104 = arith.mulf %103, %103 : vector<64x32xf32>
      %cst_46 = arith.constant dense<0.000000e+00> : vector<64xf32>
      %105 = vector.multi_reduction <add>, %104, %cst_46 [1] : vector<64x32xf32> to vector<64xf32>
      %106 = vector.shape_cast %105 : vector<64xf32> to vector<64x1xf32>
      %cst_47 = arith.constant 3.200000e+01 : f32
      %107 = vector.broadcast %cst_47 : f32 to vector<64x1xf32>
      %108 = arith.divf %106, %107 : vector<64x1xf32>
      %109 = vector.broadcast %101 : vector<64x1xf32> to vector<64x32xf32>
      %110 = arith.subf %97, %109 : vector<64x32xf32>
      %cst_48 = arith.constant 9.99999974E-6 : f32
      %111 = vector.broadcast %cst_48 : f32 to vector<64x1xf32>
      %112 = arith.addf %108, %111 : vector<64x1xf32>
      %113 = math.rsqrt %112 : vector<64x1xf32>
      %114 = vector.broadcast %113 : vector<64x1xf32> to vector<64x32xf32>
      %115 = arith.mulf %110, %114 : vector<64x32xf32>
      %116 = vector.broadcast %14 : vector<1x32xf32> to vector<64x32xf32>
      %117 = arith.mulf %115, %116 : vector<64x32xf32>
      %118 = vector.broadcast %15 : vector<1x32xf32> to vector<64x32xf32>
      %119 = arith.addf %117, %118 : vector<64x32xf32>
      %cst_49 = arith.constant 0.000000e+00 : f32
      %120 = vector.broadcast %cst_49 : f32 to vector<64x32xf32>
      %121 = arith.maximumf %119, %120 : vector<64x32xf32>
      %cst_50 = arith.constant dense<0.000000e+00> : vector<64x32xf32>
      %122 = tpu.matmul %121, %3, %cst_50 {dimension_numbers = #tpu.dot_dimension_numbers<[1], [0], [0], [1], [0, 0, 1, 1], [], []>} : vector<64x32xf32>, vector<32x32xf32>, vector<64x32xf32> -> vector<64x32xf32>
      %123 = vector.broadcast %16 : vector<1x32xf32> to vector<64x32xf32>
      %124 = arith.addf %122, %123 : vector<64x32xf32>
      %125 = arith.addf %124, %94 : vector<64x32xf32>
      %cst_51 = arith.constant dense<0.000000e+00> : vector<64xf32>
      %126 = vector.multi_reduction <add>, %125, %cst_51 [1] : vector<64x32xf32> to vector<64xf32>
      %127 = vector.shape_cast %126 : vector<64xf32> to vector<64x1xf32>
      %cst_52 = arith.constant 3.200000e+01 : f32
      %128 = vector.broadcast %cst_52 : f32 to vector<64x1xf32>
      %129 = arith.divf %127, %128 : vector<64x1xf32>
      %130 = vector.broadcast %129 : vector<64x1xf32> to vector<64x32xf32>
      %131 = arith.subf %125, %130 : vector<64x32xf32>
      %132 = arith.mulf %131, %131 : vector<64x32xf32>
      %cst_53 = arith.constant dense<0.000000e+00> : vector<64xf32>
      %133 = vector.multi_reduction <add>, %132, %cst_53 [1] : vector<64x32xf32> to vector<64xf32>
      %134 = vector.shape_cast %133 : vector<64xf32> to vector<64x1xf32>
      %cst_54 = arith.constant 3.200000e+01 : f32
      %135 = vector.broadcast %cst_54 : f32 to vector<64x1xf32>
      %136 = arith.divf %134, %135 : vector<64x1xf32>
      %137 = vector.broadcast %129 : vector<64x1xf32> to vector<64x32xf32>
      %138 = arith.subf %125, %137 : vector<64x32xf32>
      %cst_55 = arith.constant 9.99999974E-6 : f32
      %139 = vector.broadcast %cst_55 : f32 to vector<64x1xf32>
      %140 = arith.addf %136, %139 : vector<64x1xf32>
      %141 = math.rsqrt %140 : vector<64x1xf32>
      %142 = vector.broadcast %141 : vector<64x1xf32> to vector<64x32xf32>
      %143 = arith.mulf %138, %142 : vector<64x32xf32>
      %144 = vector.broadcast %17 : vector<1x32xf32> to vector<64x32xf32>
      %145 = arith.mulf %143, %144 : vector<64x32xf32>
      %146 = vector.broadcast %18 : vector<1x32xf32> to vector<64x32xf32>
      %147 = arith.addf %145, %146 : vector<64x32xf32>
      %cst_56 = arith.constant 0.000000e+00 : f32
      %148 = vector.broadcast %cst_56 : f32 to vector<64x32xf32>
      %149 = arith.maximumf %147, %148 : vector<64x32xf32>
      %cst_57 = arith.constant dense<0.000000e+00> : vector<64x128xf32>
      %150 = tpu.matmul %149, %4, %cst_57 {dimension_numbers = #tpu.dot_dimension_numbers<[1], [0], [0], [1], [0, 0, 1, 1], [], []>} : vector<64x32xf32>, vector<32x128xf32>, vector<64x128xf32> -> vector<64x128xf32>
      %151 = vector.broadcast %19 : vector<1x128xf32> to vector<64x128xf32>
      %152 = arith.addf %150, %151 : vector<64x128xf32>
      %153 = vector.extract_strided_slice %152 {offsets = [0, 0], sizes = [64, 4], strides = [1, 1]} : vector<64x128xf32> to vector<64x4xf32>
      %cst_58 = arith.constant dense<0xFF800000> : vector<64xf32>
      %154 = vector.multi_reduction <maximumf>, %153, %cst_58 [1] : vector<64x4xf32> to vector<64xf32>
      %155 = vector.shape_cast %154 : vector<64xf32> to vector<64x1xf32>
      %156 = vector.broadcast %155 : vector<64x1xf32> to vector<64x4xf32>
      %157 = arith.subf %153, %156 : vector<64x4xf32>
      %158 = math.exp %157 : vector<64x4xf32>
      %cst_59 = arith.constant dense<0.000000e+00> : vector<64xf32>
      %159 = vector.multi_reduction <add>, %158, %cst_59 [1] : vector<64x4xf32> to vector<64xf32>
      %160 = vector.shape_cast %159 : vector<64xf32> to vector<64x1xf32>
      %161 = tpu.reciprocal %160 : vector<64x1xf32> -> vector<64x1xf32>
      %162 = vector.broadcast %161 : vector<64x1xf32> to vector<64x4xf32>
      %163 = arith.mulf %158, %162 : vector<64x4xf32>
      %164 = vector.extract_strided_slice %152 {offsets = [0, 4], sizes = [64, 1], strides = [1, 1]} : vector<64x128xf32> to vector<64x1xf32>
      %165 = vector.broadcast %20 : vector<1x4xf32> to vector<64x4xf32>
      %166 = arith.mulf %163, %165 : vector<64x4xf32>
      %cst_60 = arith.constant dense<0.000000e+00> : vector<64xf32>
      %167 = vector.multi_reduction <add>, %166, %cst_60 [1] : vector<64x4xf32> to vector<64xf32>
      %168 = vector.shape_cast %167 : vector<64xf32> to vector<64x1xf32>
      %169 = arith.addf %164, %168 : vector<64x1xf32>
      %170 = vector.extract_strided_slice %152 {offsets = [0, 5], sizes = [64, 1], strides = [1, 1]} : vector<64x128xf32> to vector<64x1xf32>
      %171 = vector.broadcast %21 : vector<1x4xf32> to vector<64x4xf32>
      %172 = arith.mulf %163, %171 : vector<64x4xf32>
      %cst_61 = arith.constant dense<0.000000e+00> : vector<64xf32>
      %173 = vector.multi_reduction <add>, %172, %cst_61 [1] : vector<64x4xf32> to vector<64xf32>
      %174 = vector.shape_cast %173 : vector<64xf32> to vector<64x1xf32>
      %175 = arith.addf %170, %174 : vector<64x1xf32>
      %cst_62 = arith.constant 5.000000e-01 : f32
      %176 = vector.broadcast %cst_62 : f32 to vector<64x1xf32>
      %177 = arith.mulf %176, %175 : vector<64x1xf32>
      %178 = math.exp %177 : vector<64x1xf32>
      %c4_i32 = arith.constant 4 : i32
      %179 = vector.broadcast %c4_i32 : i32 to vector<64x128xi32>
      %180 = arith.cmpi slt, %22, %179 : vector<64x128xi32>
      %cst_63 = arith.constant 0.000000e+00 : f32
      %181 = vector.broadcast %cst_63 : f32 to vector<64x128xf32>
      %182 = arith.select %180, %152, %181 : vector<64x128xi1>, vector<64x128xf32>
      %c4_i32_64 = arith.constant 4 : i32
      %183 = vector.broadcast %c4_i32_64 : i32 to vector<64x128xi32>
      %184 = arith.cmpi eq, %22, %183 : vector<64x128xi32>
      %cst_65 = arith.constant 0.000000e+00 : f32
      %185 = vector.shape_cast %169 : vector<64x1xf32> to vector<64x1xf32>
      %186 = vector.broadcast %185 : vector<64x1xf32> to vector<64x128xf32>
      %187 = vector.broadcast %cst_65 : f32 to vector<64x128xf32>
      %188 = arith.select %184, %186, %187 : vector<64x128xi1>, vector<64x128xf32>
      %189 = arith.addf %182, %188 : vector<64x128xf32>
      %c5_i32 = arith.constant 5 : i32
      %190 = vector.broadcast %c5_i32 : i32 to vector<64x128xi32>
      %191 = arith.cmpi eq, %22, %190 : vector<64x128xi32>
      %cst_66 = arith.constant 0.000000e+00 : f32
      %192 = vector.shape_cast %175 : vector<64x1xf32> to vector<64x1xf32>
      %193 = vector.broadcast %192 : vector<64x1xf32> to vector<64x128xf32>
      %194 = vector.broadcast %cst_66 : f32 to vector<64x128xf32>
      %195 = arith.select %191, %193, %194 : vector<64x128xi1>, vector<64x128xf32>
      %196 = arith.addf %189, %195 : vector<64x128xf32>
      %c6_i32 = arith.constant 6 : i32
      %197 = vector.broadcast %c6_i32 : i32 to vector<64x128xi32>
      %198 = arith.cmpi eq, %22, %197 : vector<64x128xi32>
      %cst_67 = arith.constant 0.000000e+00 : f32
      %199 = vector.shape_cast %178 : vector<64x1xf32> to vector<64x1xf32>
      %200 = vector.broadcast %199 : vector<64x1xf32> to vector<64x128xf32>
      %201 = vector.broadcast %cst_67 : f32 to vector<64x128xf32>
      %202 = arith.select %198, %200, %201 : vector<64x128xi1>, vector<64x128xf32>
      %203 = arith.addf %196, %202 : vector<64x128xf32>
      %204 = arith.index_cast %25 : i32 to index
      %c0_68 = arith.constant 0 : index
      %205 = vector.load %arg8[%204, %c0_68] : memref<512x128xf32, #tpu.memory_space<vmem>>, vector<64x128xf32>
      tpu.vector_store %arg8[%204, %c0_68], %203 {strides = array<i32>} : memref<512x128xf32, #tpu.memory_space<vmem>>, vector<64x128xf32>,
    }
    %c8_i32_27 = arith.constant 8 : i32
    return
  }
  func.func @transform_0(%arg0: i32) -> (i32, i32) {
    %c0_i32 = arith.constant 0 : i32
    %c0_i32_0 = arith.constant 0 : i32
    return %arg0, %c0_i32 : i32, i32
  }
  func.func @transform_1(%arg0: i32) -> (i32, i32) {
    %c0_i32 = arith.constant 0 : i32
    %c0_i32_0 = arith.constant 0 : i32
    %c0_i32_1 = arith.constant 0 : i32
    return %c0_i32, %c0_i32_0 : i32, i32
  }
  func.func @transform_2(%arg0: i32) -> (i32, i32) {
    %c0_i32 = arith.constant 0 : i32
    %c0_i32_0 = arith.constant 0 : i32
    %c0_i32_1 = arith.constant 0 : i32
    return %c0_i32, %c0_i32_0 : i32, i32
  }
  func.func @transform_3(%arg0: i32) -> (i32, i32) {
    %c0_i32 = arith.constant 0 : i32
    %c0_i32_0 = arith.constant 0 : i32
    %c0_i32_1 = arith.constant 0 : i32
    return %c0_i32, %c0_i32_0 : i32, i32
  }
  func.func @transform_4(%arg0: i32) -> (i32, i32) {
    %c0_i32 = arith.constant 0 : i32
    %c0_i32_0 = arith.constant 0 : i32
    %c0_i32_1 = arith.constant 0 : i32
    return %c0_i32, %c0_i32_0 : i32, i32
  }
  func.func @transform_5(%arg0: i32) -> (i32, i32) {
    %c0_i32 = arith.constant 0 : i32
    %c0_i32_0 = arith.constant 0 : i32
    %c0_i32_1 = arith.constant 0 : i32
    return %c0_i32, %c0_i32_0 : i32, i32
  }
  func.func @transform_6(%arg0: i32) -> (i32, i32) {
    %c0_i32 = arith.constant 0 : i32
    %c0_i32_0 = arith.constant 0 : i32
    %c0_i32_1 = arith.constant 0 : i32
    return %c0_i32, %c0_i32_0 : i32, i32
  }
  func.func @transform_7(%arg0: i32) -> (i32, i32) {
    %c0_i32 = arith.constant 0 : i32
    %c0_i32_0 = arith.constant 0 : i32
    return %arg0, %c0_i32 : i32, i32
  }
}

</mosaic_0001>

<llo_original>
// kernel: _forward.1
$region0: #{_forward.1}
  #allocation0 [shape = 'u32[]', space=smem, size = 0x4, offset = 0x4, fixed_abs, tag = 'smem constant byte address 0x4 - core index']
  #allocation1 [shape = 'u32[144,128]{1,0:T(1,128)}', space=vmem, size = 0x12000, scoped, tag = 'internal scratch']
  %s0 = inlined_call_operand.vmem [shape: f32[512,16], index: 0, kind: input, shape index: {}]
  %s1 = inlined_call_operand.vmem [shape: f32[16,16], index: 1, kind: input, shape index: {}]
  %s2 = inlined_call_operand.vmem [shape: f32[16,32], index: 2, kind: input, shape index: {}]
  %s3 = inlined_call_operand.vmem [shape: f32[32,32], index: 3, kind: input, shape index: {}]
  %s4 = inlined_call_operand.vmem [shape: f32[32,32], index: 4, kind: input, shape index: {}]
  %s5 = inlined_call_operand.vmem [shape: f32[32,128], index: 5, kind: input, shape index: {}]
  %s6 = inlined_call_operand.vmem [shape: f32[24,128], index: 6, kind: input, shape index: {}]
  %s7 = inlined_call_operand.vmem [shape: f32[512,128], index: 7, kind: output, shape index: {}]
  %s8 = sld [smem:[#allocation0]]
  $region45: #{_forward.1} parent=0
    _
  %s10 = ssub.s32 1, %s8
  %s11 = scalar_select 0, %s10, %s8
  // Predicated region
  $region2: #{_forward.1} parent=0 // pred_check
    _
  $region3: #{_forward.1} parent=0 // pred_check_branch
    %13 = sbr.rel (0) target = $region5
  $region4: #{_forward.1} parent=0 // pred_region
    _
  $region5: #{_forward.1} parent=0 // pred_fallthru
    _
  // Predicated region
  $region6: #{_forward.1} parent=0 // pred_check
    _
  $region7: #{_forward.1} parent=0 // pred_check_branch
    %15 = sbr.rel (0) target = $region9
  $region8: #{_forward.1} parent=0 // pred_region
    _
  $region9: #{_forward.1} parent=0 // pred_fallthru
    _
  // Predicated region
  $region10: #{_forward.1} parent=0 // pred_check
    _
  $region11: #{_forward.1} parent=0 // pred_check_branch
    %17 = sbr.rel (0) target = $region13
  $region12: #{_forward.1} parent=0 // pred_region
    _
  $region13: #{_forward.1} parent=0 // pred_fallthru
    _
  // Predicated region
  $region14: #{_forward.1} parent=0 // pred_check
    _
  $region15: #{_forward.1} parent=0 // pred_check_branch
    %19 = sbr.rel (0) target = $region17
  $region16: #{_forward.1} parent=0 // pred_region
    _
  $region17: #{_forward.1} parent=0 // pred_fallthru
    _
  // Predicated region
  $region18: #{_forward.1} parent=0 // pred_check
    _
  $region19: #{_forward.1} parent=0 // pred_check_branch
    %21 = sbr.rel (0) target = $region21
  $region20: #{_forward.1} parent=0 // pred_region
    _
  $region21: #{_forward.1} parent=0 // pred_fallthru
    _
  // Predicated region
  $region22: #{_forward.1} parent=0 // pred_check
    _
  $region23: #{_forward.1} parent=0 // pred_check_branch
    %23 = sbr.rel (0) target = $region25
  $region24: #{_forward.1} parent=0 // pred_region
    _
  $region25: #{_forward.1} parent=0 // pred_fallthru
    _
  // Predicated region
  $region26: #{_forward.1} parent=0 // pred_check
    _
  $region27: #{_forward.1} parent=0 // pred_check_branch
    %25 = sbr.rel (0) target = $region29
  $region28: #{_forward.1} parent=0 // pred_region
    _
  $region29: #{_forward.1} parent=0 // pred_fallthru
    _
  %v26 = vld [vmem:[%s1] sm:$0xff]
  %v27 = vld [vmem:[%s1 + $0x8] sm:$0xff]
  %v28 = vld [vmem:[%s2] sm:$0xff]
  %v29 = vld [vmem:[%s2 + $0x8] sm:$0xff]
  %v30 = vld [vmem:[%s3] sm:$0xff]
  %v31 = vld [vmem:[%s3 + $0x8] sm:$0xff]
  %v32 = vld [vmem:[%s3 + $0x10] sm:$0xff]
  %v33 = vld [vmem:[%s3 + $0x18] sm:$0xff]
  %v34 = vld [vmem:[%s4] sm:$0xff]
  %v35 = vld [vmem:[%s4 + $0x8] sm:$0xff]
  %v36 = vld [vmem:[%s4 + $0x10] sm:$0xff]
  %v37 = vld [vmem:[%s4 + $0x18] sm:$0xff]
  %v38 = vld [vmem:[%s5] sm:$0xff]
  %v39 = vld [vmem:[%s5 + $0x8] sm:$0xff]
  %v40 = vld [vmem:[%s5 + $0x10] sm:$0xff]
  %v41 = vld [vmem:[%s5 + $0x18] sm:$0xff]
  %v42 = vld [vmem:[%s6] sm:$0x1]
  %v43 = vld [vmem:[%s6 + $0x1] sm:$0x1]
  %v44 = vld [vmem:[%s6 + $0x2] sm:$0x1]
  %v45 = vld [vmem:[%s6 + $0x3] sm:$0x1]
  %v46 = vld [vmem:[%s6 + $0x4] sm:$0x1]
  %v47 = vld [vmem:[%s6 + $0x5] sm:$0x1]
  %v48 = vld [vmem:[%s6 + $0x6] sm:$0x1]
  %v49 = vld [vmem:[%s6 + $0x7] sm:$0x1]
  %v50 = vld [vmem:[%s6 + $0x8] sm:$0x1]
  %v51 = vld [vmem:[%s6 + $0x9] sm:$0x1]
  %v52 = vld [vmem:[%s6 + $0xa] sm:$0x1]
  %v53 = vld [vmem:[%s6 + $0xb] sm:$0x1]
  %v54 = vld [vmem:[%s6 + $0xc] sm:$0x1]
  %v55 = vld [vmem:[%s6 + $0xd] sm:$0x1]
  %v56 = vld [vmem:[%s6 + $0xe] sm:$0x1]
  %v57 = vld [vmem:[%s6 + $0xf] sm:$0x1]
  %v58 = vld [vmem:[%s6 + $0x10] sm:$0x1]
  %v59 = vlaneseq
  %v60 = vand.u32 %v59, 127
  loop: start=0, step=1, limit=8
  $region30: #{_forward.1} parent=0 // loop_pre_header
    _
  $region31: #{_forward.1} parent=0 // loop_header
    %s62 = sphi 0, %s66
    %p63 = scmp.ge.s32.totalorder %s62, 8
  $region32: #{_forward.1} parent=0 // loop_header_branch
    %65 = sbr.rel (%p63) target = $region36
  $region33: #{_forward.1} parent=0 // loop_body
    %s67 = smul.u32 %s62, 64
    %s68 = scalar_lea.vmem %s0, %s67
    %v69 = vld [vmem:[%s68] sm:$0xff]
    %v70 = vld [vmem:[%s68 + $0x8] sm:$0xff]
    %v71 = vld [vmem:[%s68 + $0x10] sm:$0xff]
    %v72 = vld [vmem:[%s68 + $0x18] sm:$0xff]
    %v73 = vld [vmem:[%s68 + $0x20] sm:$0xff]
    %v74 = vld [vmem:[%s68 + $0x28] sm:$0xff]
    %v75 = vld [vmem:[%s68 + $0x30] sm:$0xff]
    %v76 = vld [vmem:[%s68 + $0x38] sm:$0xff]
    %vm77 = vcmask 130048
    %v78 = vsel %vm77, %v69, 0.0
    %79 = vadd.xlane.f32.xlu0 %v78
    %v80 = vpop.xlane.xlu0 %79
    %v81 = vsel %vm77, %v70, 0.0
    %82 = vadd.xlane.f32.xlu0 %v81
    %v83 = vpop.xlane.xlu0 %82
    %v84 = vsel %vm77, %v71, 0.0
    %85 = vadd.xlane.f32.xlu0 %v84
    %v86 = vpop.xlane.xlu0 %85
    %v87 = vsel %vm77, %v72, 0.0
    %88 = vadd.xlane.f32.xlu0 %v87
    %v89 = vpop.xlane.xlu0 %88
    %v90 = vsel %vm77, %v73, 0.0
    %91 = vadd.xlane.f32.xlu0 %v90
    %v92 = vpop.xlane.xlu0 %91
    %v93 = vsel %vm77, %v74, 0.0
    %94 = vadd.xlane.f32.xlu0 %v93
    %v95 = vpop.xlane.xlu0 %94
    %v96 = vsel %vm77, %v75, 0.0
    %97 = vadd.xlane.f32.xlu0 %v96
    %v98 = vpop.xlane.xlu0 %97
    %v99 = vsel %vm77, %v76, 0.0
    %100 = vadd.xlane.f32.xlu0 %v99
    %v101 = vpop.xlane.xlu0 %100
    %v102 = vrcp.pop 16.0
    %v103 = vmul.f32 %v80, %v102
    %v104 = vmul.f32 %v83, %v102
    %v105 = vmul.f32 %v86, %v102
    %v106 = vmul.f32 %v89, %v102
    %v107 = vmul.f32 %v92, %v102
    %v108 = vmul.f32 %v95, %v102
    %v109 = vmul.f32 %v98, %v102
    %v110 = vmul.f32 %v101, %v102
    %v111 = vsub.f32 %v69, %v103
    %v112 = vsub.f32 %v70, %v104
    %v113 = vsub.f32 %v71, %v105
    %v114 = vsub.f32 %v72, %v106
    %v115 = vsub.f32 %v73, %v107
    %v116 = vsub.f32 %v74, %v108
    %v117 = vsub.f32 %v75, %v109
    %v118 = vsub.f32 %v76, %v110
    %v119 = vmul.f32 %v111, %v111
    %v120 = vmul.f32 %v112, %v112
    %v121 = vmul.f32 %v113, %v113
    %v122 = vmul.f32 %v114, %v114
    %v123 = vmul.f32 %v115, %v115
    %v124 = vmul.f32 %v116, %v116
    %v125 = vmul.f32 %v117, %v117
    %v126 = vmul.f32 %v118, %v118
    %v127 = vsel %vm77, %v119, 0.0
    %128 = vadd.xlane.f32.xlu0 %v127
    %v129 = vpop.xlane.xlu0 %128
    %v130 = vsel %vm77, %v120, 0.0
    %131 = vadd.xlane.f32.xlu0 %v130
    %v132 = vpop.xlane.xlu0 %131
    %v133 = vsel %vm77, %v121, 0.0
    %134 = vadd.xlane.f32.xlu0 %v133
    %v135 = vpop.xlane.xlu0 %134
    %v136 = vsel %vm77, %v122, 0.0
    %137 = vadd.xlane.f32.xlu0 %v136
    %v138 = vpop.xlane.xlu0 %137
    %v139 = vsel %vm77, %v123, 0.0
    %140 = vadd.xlane.f32.xlu0 %v139
    %v141 = vpop.xlane.xlu0 %140
    %v142 = vsel %vm77, %v124, 0.0
    %143 = vadd.xlane.f32.xlu0 %v142
    %v144 = vpop.xlane.xlu0 %143
    %v145 = vsel %vm77, %v125, 0.0
    %146 = vadd.xlane.f32.xlu0 %v145
    %v147 = vpop.xlane.xlu0 %146
    %v148 = vsel %vm77, %v126, 0.0
    %149 = vadd.xlane.f32.xlu0 %v148
    %v150 = vpop.xlane.xlu0 %149
    %v151 = vmul.f32 %v129, %v102
    %v152 = vmul.f32 %v132, %v102
    %v153 = vmul.f32 %v135, %v102
    %v154 = vmul.f32 %v138, %v102
    %v155 = vmul.f32 %v141, %v102
    %v156 = vmul.f32 %v144, %v102
    %v157 = vmul.f32 %v147, %v102
    %v158 = vmul.f32 %v150, %v102
    %v159 = vadd.f32 %v151, 1e-05
    %v160 = vadd.f32 %v152, 1e-05
    %v161 = vadd.f32 %v153, 1e-05
    %v162 = vadd.f32 %v154, 1e-05
    %v163 = vadd.f32 %v155, 1e-05
    %v164 = vadd.f32 %v156, 1e-05
    %v165 = vadd.f32 %v157, 1e-05
    %v166 = vadd.f32 %v158, 1e-05
    %v167 = vrsqrt.pop %v159
    %v168 = vrsqrt.pop %v160
    %v169 = vrsqrt.pop %v161
    %v170 = vrsqrt.pop %v162
    %v171 = vrsqrt.pop %v163
    %v172 = vrsqrt.pop %v164
    %v173 = vrsqrt.pop %v165
    %v174 = vrsqrt.pop %v166
    %v175 = vmul.f32 %v111, %v167
    %v176 = vmul.f32 %v112, %v168
    %v177 = vmul.f32 %v113, %v169
    %v178 = vmul.f32 %v114, %v170
    %v179 = vmul.f32 %v115, %v171
    %v180 = vmul.f32 %v116, %v172
    %v181 = vmul.f32 %v117, %v173
    %v182 = vmul.f32 %v118, %v174
    %v183 = vlaneseq
    %v184 = vshrl.u32 %v183, 7
    %v185 = vsub.s32 0, %v184
    %v186 = vrot.slane %v42, %v185
    %v187 = vmul.f32 %v175, %v186
    %v188 = vmul.f32 %v176, %v186
    %v189 = vmul.f32 %v177, %v186
    %v190 = vmul.f32 %v178, %v186
    %v191 = vmul.f32 %v179, %v186
    %v192 = vmul.f32 %v180, %v186
    %v193 = vmul.f32 %v181, %v186
    %v194 = vmul.f32 %v182, %v186
    %v195 = vlaneseq
    %v196 = vshrl.u32 %v195, 7
    %v197 = vsub.s32 0, %v196
    %v198 = vrot.slane %v43, %v197
    %v199 = vadd.f32 %v187, %v198
    %v200 = vadd.f32 %v188, %v198
    %v201 = vadd.f32 %v189, %v198
    %v202 = vadd.f32 %v190, %v198
    %v203 = vadd.f32 %v191, %v198
    %v204 = vadd.f32 %v192, %v198
    %v205 = vadd.f32 %v193, %v198
    %v206 = vadd.f32 %v194, %v198
    %v207 = vlaneseq
    %v208 = vshrl.u32 %v207, 7
    %v209 = vsub.s32 0, %v208
    %v210 = vrot.slane %v44, %v209
    %v212 = vsel %vm77, %v199, 0
    %v215 = vsel %vm77, %v200, 0
    %v218 = vsel %vm77, %v201, 0
    %v221 = vsel %vm77, %v202, 0
    %v224 = vsel %vm77, %v203, 0
    %v227 = vsel %vm77, %v204, 0
    %v230 = vsel %vm77, %v205, 0
    %v233 = vsel %vm77, %v206, 0
    %235 = vmatprep.subr.mxu0 0.0
    %236 = vmatpush1.msra.mxu0 %v26
    %237 = vmatprep.subr.mxu0 0.0
    %238 = vmatpush1.msra.mxu0 %v27
    %239 = vmatprep.subr.mxu0 0.0
    %240 = vmatpush1.msra.mxu0 0.0
    %241 = vmatprep.subr.mxu0 0.0
    %242 = vmatpush1.msra.mxu0 0.0
    %243 = vmatprep.subr.mxu0 0.0
    %244 = vmatpush1.msra.mxu0 0.0
    %245 = vmatprep.subr.mxu0 0.0
    %246 = vmatpush1.msra.mxu0 0.0
    %247 = vmatprep.subr.mxu0 0.0
    %248 = vmatpush1.msra.mxu0 0.0
    %249 = vmatprep.subr.mxu0 0.0
    %250 = vmatpush1.msra.mxu0 0.0
    %251 = vmatprep.subr.mxu0 0.0
    %252 = vmatpush1.msra.mxu0 0.0
    %253 = vmatprep.subr.mxu0 0.0
    %254 = vmatpush1.msra.mxu0 0.0
    %255 = vmatprep.subr.mxu0 0.0
    %256 = vmatpush1.msra.mxu0 0.0
    %257 = vmatprep.subr.mxu0 0.0
    %258 = vmatpush1.msra.mxu0 0.0
    %259 = vmatprep.subr.mxu0 0.0
    %260 = vmatpush1.msra.mxu0 0.0
    %261 = vmatprep.subr.mxu0 0.0
    %262 = vmatpush1.msra.mxu0 0.0
    %263 = vmatprep.subr.mxu0 0.0
    %264 = vmatpush1.msra.mxu0 0.0
    %265 = vmatprep.subr.mxu0 0.0
    %266 = vmatpush1.msra.mxu0 0.0
    %267 = vmatprep.subr.mxu0 0.0
    %268 = vmatpush1.msra.mxu0 0.0
    %269 = vmatprep.subr.mxu0 0.0
    %270 = vmatpush1.msra.mxu0 0.0
    %271 = vmatprep.subr.mxu0 0.0
    %272 = vmatpush1.msra.mxu0 0.0
    %273 = vmatprep.subr.mxu0 0.0
    %274 = vmatpush1.msra.mxu0 0.0
    %275 = vmatprep.subr.mxu0 0.0
    %276 = vmatpush1.msra.mxu0 0.0
    %277 = vmatprep.subr.mxu0 0.0
    %278 = vmatpush1.msra.mxu0 0.0
    %279 = vmatprep.subr.mxu0 0.0
    %280 = vmatpush1.msra.mxu0 0.0
    %281 = vmatprep.subr.mxu0 0.0
    %282 = vmatpush1.msra.mxu0 0.0
    %283 = vmatprep.subr.mxu0 0.0
    %284 = vmatpush1.msra.mxu0 0.0
    %285 = vmatprep.subr.mxu0 0.0
    %286 = vmatpush1.msra.mxu0 0.0
    %287 = vmatprep.subr.mxu0 0.0
    %288 = vmatpush1.msra.mxu0 0.0
    %289 = vmatprep.subr.mxu0 0.0
    %290 = vmatpush1.msra.mxu0 0.0
    %291 = vmatprep.subr.mxu0 0.0
    %292 = vmatpush1.msra.mxu0 0.0
    %293 = vmatprep.subr.mxu0 0.0
    %294 = vmatpush1.msra.mxu0 0.0
    %295 = vmatprep.subr.mxu0 0.0
    %296 = vmatpush1.msra.mxu0 0.0
    %297 = vmatprep.subr.mxu0 0.0
    %298 = vmatpush1.msra.mxu0 0.0
    %299 = vmatprep.mubr.f32.mxu0 0.0
    %300 = vmatmul.mubr.f32.gmra.mrb[0].mxu0 %v212
    %v301 = vpop.f32.mrb[0].mxu0
    %v302 = vadd.f32 %v210, %v301
    %v303 = vpop.f32.mrb[0].mxu0
    %304 = vmatprep.mubr.f32.mxu0 0.0
    %305 = vmatmul.mubr.f32.gmra.mrb[0].mxu0 %v215
    %v306 = vpop.f32.mrb[0].mxu0
    %v307 = vadd.f32 %v210, %v306
    %v308 = vpop.f32.mrb[0].mxu0
    %309 = vmatprep.mubr.f32.mxu0 0.0
    %310 = vmatmul.mubr.f32.gmra.mrb[0].mxu0 %v218
    %v311 = vpop.f32.mrb[0].mxu0
    %v312 = vadd.f32 %v210, %v311
    %v313 = vpop.f32.mrb[0].mxu0
    %314 = vmatprep.mubr.f32.mxu0 0.0
    %315 = vmatmul.mubr.f32.gmra.mrb[0].mxu0 %v221
    %v316 = vpop.f32.mrb[0].mxu0
    %v317 = vadd.f32 %v210, %v316
    %v318 = vpop.f32.mrb[0].mxu0
    %319 = vmatprep.mubr.f32.mxu0 0.0
    %320 = vmatmul.mubr.f32.gmra.mrb[0].mxu0 %v224
    %v321 = vpop.f32.mrb[0].mxu0
    %v322 = vadd.f32 %v210, %v321
    %v323 = vpop.f32.mrb[0].mxu0
    %324 = vmatprep.mubr.f32.mxu0 0.0
    %325 = vmatmul.mubr.f32.gmra.mrb[0].mxu0 %v227
    %v326 = vpop.f32.mrb[0].mxu0
    %v327 = vadd.f32 %v210, %v326
    %v328 = vpop.f32.mrb[0].mxu0
    %329 = vmatprep.mubr.f32.mxu0 0.0
    %330 = vmatmul.mubr.f32.gmra.mrb[0].mxu0 %v230
    %v331 = vpop.f32.mrb[0].mxu0
    %v332 = vadd.f32 %v210, %v331
    %v333 = vpop.f32.mrb[0].mxu0
    %334 = vmatprep.mubr.f32.mxu0 0.0
    %335 = vmatmul.mubr.f32.gmra.mrb[0].mxu0 %v233
    %v336 = vpop.f32.mrb[0].mxu0
    %v337 = vadd.f32 %v210, %v336
    %v338 = vpop.f32.mrb[0].mxu0
    %339 = vdwg.mxu0
    %v340 = vtanh.pop %v302
    %v341 = vtanh.pop %v307
    %v342 = vtanh.pop %v312
    %v343 = vtanh.pop %v317
    %v344 = vtanh.pop %v322
    %v345 = vtanh.pop %v327
    %v346 = vtanh.pop %v332
    %v347 = vtanh.pop %v337
    %v348 = vlaneseq
    %v349 = vshrl.u32 %v348, 7
    %v350 = vsub.s32 0, %v349
    %v351 = vrot.slane %v45, %v350
    %v352 = vmul.f32 %v340, %v351
    %v353 = vmul.f32 %v341, %v351
    %v354 = vmul.f32 %v342, %v351
    %v355 = vmul.f32 %v343, %v351
    %v356 = vmul.f32 %v344, %v351
    %v357 = vmul.f32 %v345, %v351
    %v358 = vmul.f32 %v346, %v351
    %v359 = vmul.f32 %v347, %v351
    %v360 = vsel %vm77, %v352, 0.0
    %361 = vadd.xlane.f32.xlu0 %v360
    %v362 = vpop.xlane.xlu0 %361
    %v363 = vsel %vm77, %v353, 0.0
    %364 = vadd.xlane.f32.xlu0 %v363
    %v365 = vpop.xlane.xlu0 %364
    %v366 = vsel %vm77, %v354, 0.0
    %367 = vadd.xlane.f32.xlu0 %v366
    %v368 = vpop.xlane.xlu0 %367
    %v369 = vsel %vm77, %v355, 0.0
    %370 = vadd.xlane.f32.xlu0 %v369
    %v371 = vpop.xlane.xlu0 %370
    %v372 = vsel %vm77, %v356, 0.0
    %373 = vadd.xlane.f32.xlu0 %v372
    %v374 = vpop.xlane.xlu0 %373
    %v375 = vsel %vm77, %v357, 0.0
    %376 = vadd.xlane.f32.xlu0 %v375
    %v377 = vpop.xlane.xlu0 %376
    %v378 = vsel %vm77, %v358, 0.0
    %379 = vadd.xlane.f32.xlu0 %v378
    %v380 = vpop.xlane.xlu0 %379
    %v381 = vsel %vm77, %v359, 0.0
    %382 = vadd.xlane.f32.xlu0 %v381
    %v383 = vpop.xlane.xlu0 %382
    %v384 = vlaneseq
    %v385 = vshrl.u32 %v384, 7
    %v386 = vsub.s32 0, %v385
    %v387 = vrot.slane %v46, %v386
    %v388 = vadd.f32 %v362, %v387
    %v389 = vadd.f32 %v365, %v387
    %v390 = vadd.f32 %v368, %v387
    %v391 = vadd.f32 %v371, %v387
    %v392 = vadd.f32 %v374, %v387
    %v393 = vadd.f32 %v377, %v387
    %v394 = vadd.f32 %v380, %v387
    %v395 = vadd.f32 %v383, %v387
    %v396 = vxor.u32 %v388, 2147483648
    %v397 = vxor.u32 %v389, 2147483648
    %v398 = vxor.u32 %v390, 2147483648
    %v399 = vxor.u32 %v391, 2147483648
    %v400 = vxor.u32 %v392, 2147483648
    %v401 = vxor.u32 %v393, 2147483648
    %v402 = vxor.u32 %v394, 2147483648
    %v403 = vxor.u32 %v395, 2147483648
    %v404 = vmul.f32 %v396, 1.442695
    %v405 = vpow.pop %v404
    %v406 = vmul.f32 %v397, 1.442695
    %v407 = vpow.pop %v406
    %v408 = vmul.f32 %v398, 1.442695
    %v409 = vpow.pop %v408
    %v410 = vmul.f32 %v399, 1.442695
    %v411 = vpow.pop %v410
    %v412 = vmul.f32 %v400, 1.442695
    %v413 = vpow.pop %v412
    %v414 = vmul.f32 %v401, 1.442695
    %v415 = vpow.pop %v414
    %v416 = vmul.f32 %v402, 1.442695
    %v417 = vpow.pop %v416
    %v418 = vmul.f32 %v403, 1.442695
    %v419 = vpow.pop %v418
    %v420 = vadd.f32 %v405, 1.0
    %v421 = vadd.f32 %v407, 1.0
    %v422 = vadd.f32 %v409, 1.0
    %v423 = vadd.f32 %v411, 1.0
    %v424 = vadd.f32 %v413, 1.0
    %v425 = vadd.f32 %v415, 1.0
    %v426 = vadd.f32 %v417, 1.0
    %v427 = vadd.f32 %v419, 1.0
    %v428 = vrcp.pop %v420
    %v429 = vmul.f32 1.0, %v428
    %v430 = vrcp.pop %v421
    %v431 = vmul.f32 1.0, %v430
    %v432 = vrcp.pop %v422
    %v433 = vmul.f32 1.0, %v432
    %v434 = vrcp.pop %v423
    %v435 = vmul.f32 1.0, %v434
    %v436 = vrcp.pop %v424
    %v437 = vmul.f32 1.0, %v436
    %v438 = vrcp.pop %v425
    %v439 = vmul.f32 1.0, %v438
    %v440 = vrcp.pop %v426
    %v441 = vmul.f32 1.0, %v440
    %v442 = vrcp.pop %v427
    %v443 = vmul.f32 1.0, %v442
    %445 = vset.pattern.permute.xlu0 0
    %446 = vperm.xlu0 %445, %v429
    %v447 = vpop.permute.xlu0 %446
    %450 = vset.pattern.permute.xlu0 0
    %451 = vperm.xlu0 %450, %v431
    %v452 = vpop.permute.xlu0 %451
    %455 = vset.pattern.permute.xlu0 0
    %456 = vperm.xlu0 %455, %v433
    %v457 = vpop.permute.xlu0 %456
    %460 = vset.pattern.permute.xlu0 0
    %461 = vperm.xlu0 %460, %v435
    %v462 = vpop.permute.xlu0 %461
    %465 = vset.pattern.permute.xlu0 0
    %466 = vperm.xlu0 %465, %v437
    %v467 = vpop.permute.xlu0 %466
    %470 = vset.pattern.permute.xlu0 0
    %471 = vperm.xlu0 %470, %v439
    %v472 = vpop.permute.xlu0 %471
    %475 = vset.pattern.permute.xlu0 0
    %476 = vperm.xlu0 %475, %v441
    %v477 = vpop.permute.xlu0 %476
    %480 = vset.pattern.permute.xlu0 0
    %481 = vperm.xlu0 %480, %v443
    %v482 = vpop.permute.xlu0 %481
    %v484 = vmul.f32 %v69, %v447
    %v485 = vmul.f32 %v70, %v452
    %v486 = vmul.f32 %v71, %v457
    %v487 = vmul.f32 %v72, %v462
    %v488 = vmul.f32 %v73, %v467
    %v489 = vmul.f32 %v74, %v472
    %v490 = vmul.f32 %v75, %v477
    %v491 = vmul.f32 %v76, %v482
    %v492 = vadd.f32 %v69, %v484
    %v493 = vadd.f32 %v70, %v485
    %v494 = vadd.f32 %v71, %v486
    %v495 = vadd.f32 %v72, %v487
    %v496 = vadd.f32 %v73, %v488
    %v497 = vadd.f32 %v74, %v489
    %v498 = vadd.f32 %v75, %v490
    %v499 = vadd.f32 %v76, %v491
    %v500 = vlaneseq
    %v501 = vshrl.u32 %v500, 7
    %v502 = vsub.s32 0, %v501
    %v503 = vrot.slane %v47, %v502
    %v505 = vsel %vm77, %v492, 0
    %v508 = vsel %vm77, %v493, 0
    %v511 = vsel %vm77, %v494, 0
    %v514 = vsel %vm77, %v495, 0
    %v517 = vsel %vm77, %v496, 0
    %v520 = vsel %vm77, %v497, 0
    %v523 = vsel %vm77, %v498, 0
    %v526 = vsel %vm77, %v499, 0
    %528 = vmatprep.subr.mxu0 0.0
    %529 = vmatpush1.msra.mxu0 %v28
    %530 = vmatprep.subr.mxu0 0.0
    %531 = vmatpush1.msra.mxu0 %v29
    %532 = vmatprep.subr.mxu0 0.0
    %533 = vmatpush1.msra.mxu0 0.0
    %534 = vmatprep.subr.mxu0 0.0
    %535 = vmatpush1.msra.mxu0 0.0
    %536 = vmatprep.subr.mxu0 0.0
    %537 = vmatpush1.msra.mxu0 0.0
    %538 = vmatprep.subr.mxu0 0.0
    %539 = vmatpush1.msra.mxu0 0.0
    %540 = vmatprep.subr.mxu0 0.0
    %541 = vmatpush1.msra.mxu0 0.0
    %542 = vmatprep.subr.mxu0 0.0
    %543 = vmatpush1.msra.mxu0 0.0
    %544 = vmatprep.subr.mxu0 0.0
    %545 = vmatpush1.msra.mxu0 0.0
    %546 = vmatprep.subr.mxu0 0.0
    %547 = vmatpush1.msra.mxu0 0.0
    %548 = vmatprep.subr.mxu0 0.0
    %549 = vmatpush1.msra.mxu0 0.0
    %550 = vmatprep.subr.mxu0 0.0
    %551 = vmatpush1.msra.mxu0 0.0
    %552 = vmatprep.subr.mxu0 0.0
    %553 = vmatpush1.msra.mxu0 0.0
    %554 = vmatprep.subr.mxu0 0.0
    %555 = vmatpush1.msra.mxu0 0.0
    %556 = vmatprep.subr.mxu0 0.0
    %557 = vmatpush1.msra.mxu0 0.0
    %558 = vmatprep.subr.mxu0 0.0
    %559 = vmatpush1.msra.mxu0 0.0
    %560 = vmatprep.subr.mxu0 0.0
    %561 = vmatpush1.msra.mxu0 0.0
    %562 = vmatprep.subr.mxu0 0.0
    %563 = vmatpush1.msra.mxu0 0.0
    %564 = vmatprep.subr.mxu0 0.0
    %565 = vmatpush1.msra.mxu0 0.0
    %566 = vmatprep.subr.mxu0 0.0
    %567 = vmatpush1.msra.mxu0 0.0
    %568 = vmatprep.subr.mxu0 0.0
    %569 = vmatpush1.msra.mxu0 0.0
    %570 = vmatprep.subr.mxu0 0.0
    %571 = vmatpush1.msra.mxu0 0.0
    %572 = vmatprep.subr.mxu0 0.0
    %573 = vmatpush1.msra.mxu0 0.0
    %574 = vmatprep.subr.mxu0 0.0
    %575 = vmatpush1.msra.mxu0 0.0
    %576 = vmatprep.subr.mxu0 0.0
    %577 = vmatpush1.msra.mxu0 0.0
    %578 = vmatprep.subr.mxu0 0.0
    %579 = vmatpush1.msra.mxu0 0.0
    %580 = vmatprep.subr.mxu0 0.0
    %581 = vmatpush1.msra.mxu0 0.0
    %582 = vmatprep.subr.mxu0 0.0
    %583 = vmatpush1.msra.mxu0 0.0
    %584 = vmatprep.subr.mxu0 0.0
    %585 = vmatpush1.msra.mxu0 0.0
    %586 = vmatprep.subr.mxu0 0.0
    %587 = vmatpush1.msra.mxu0 0.0
    %588 = vmatprep.subr.mxu0 0.0
    %589 = vmatpush1.msra.mxu0 0.0
    %590 = vmatprep.subr.mxu0 0.0
    %591 = vmatpush1.msra.mxu0 0.0
    %592 = vmatprep.mubr.f32.mxu0 0.0
    %593 = vmatmul.mubr.f32.gmra.mrb[0].mxu0 %v505
    %v594 = vpop.f32.mrb[0].mxu0
    %v595 = vadd.f32 %v503, %v594
    %v596 = vpop.f32.mrb[0].mxu0
    %597 = vmatprep.mubr.f32.mxu0 0.0
    %598 = vmatmul.mubr.f32.gmra.mrb[0].mxu0 %v508
    %v599 = vpop.f32.mrb[0].mxu0
    %v600 = vadd.f32 %v503, %v599
    %v601 = vpop.f32.mrb[0].mxu0
    %602 = vmatprep.mubr.f32.mxu0 0.0
    %603 = vmatmul.mubr.f32.gmra.mrb[0].mxu0 %v511
    %v604 = vpop.f32.mrb[0].mxu0
    %v605 = vadd.f32 %v503, %v604
    %v606 = vpop.f32.mrb[0].mxu0
    %607 = vmatprep.mubr.f32.mxu0 0.0
    %608 = vmatmul.mubr.f32.gmra.mrb[0].mxu0 %v514
    %v609 = vpop.f32.mrb[0].mxu0
    %v610 = vadd.f32 %v503, %v609
    %v611 = vpop.f32.mrb[0].mxu0
    %612 = vmatprep.mubr.f32.mxu0 0.0
    %613 = vmatmul.mubr.f32.gmra.mrb[0].mxu0 %v517
    %v614 = vpop.f32.mrb[0].mxu0
    %v615 = vadd.f32 %v503, %v614
    %v616 = vpop.f32.mrb[0].mxu0
    %617 = vmatprep.mubr.f32.mxu0 0.0
    %618 = vmatmul.mubr.f32.gmra.mrb[0].mxu0 %v520
    %v619 = vpop.f32.mrb[0].mxu0
    %v620 = vadd.f32 %v503, %v619
    %v621 = vpop.f32.mrb[0].mxu0
    %622 = vmatprep.mubr.f32.mxu0 0.0
    %623 = vmatmul.mubr.f32.gmra.mrb[0].mxu0 %v523
    %v624 = vpop.f32.mrb[0].mxu0
    %v625 = vadd.f32 %v503, %v624
    %v626 = vpop.f32.mrb[0].mxu0
    %627 = vmatprep.mubr.f32.mxu0 0.0
    %628 = vmatmul.mubr.f32.gmra.mrb[0].mxu0 %v526
    %v629 = vpop.f32.mrb[0].mxu0
    %v630 = vadd.f32 %v503, %v629
    %v631 = vpop.f32.mrb[0].mxu0
    %632 = vdwg.mxu0
    %vm633 = vcmask 261120
    %v634 = vsel %vm633, %v595, 0.0
    %635 = vadd.xlane.f32.xlu0 %v634
    %v636 = vpop.xlane.xlu0 %635
    %v637 = vsel %vm633, %v600, 0.0
    %638 = vadd.xlane.f32.xlu0 %v637
    %v639 = vpop.xlane.xlu0 %638
    %v640 = vsel %vm633, %v605, 0.0
    %641 = vadd.xlane.f32.xlu0 %v640
    %v642 = vpop.xlane.xlu0 %641
    %v643 = vsel %vm633, %v610, 0.0
    %644 = vadd.xlane.f32.xlu0 %v643
    %v645 = vpop.xlane.xlu0 %644
    %v646 = vsel %vm633, %v615, 0.0
    %647 = vadd.xlane.f32.xlu0 %v646
    %v648 = vpop.xlane.xlu0 %647
    %v649 = vsel %vm633, %v620, 0.0
    %650 = vadd.xlane.f32.xlu0 %v649
    %v651 = vpop.xlane.xlu0 %650
    %v652 = vsel %vm633, %v625, 0.0
    %653 = vadd.xlane.f32.xlu0 %v652
    %v654 = vpop.xlane.xlu0 %653
    %v655 = vsel %vm633, %v630, 0.0
    %656 = vadd.xlane.f32.xlu0 %v655
    %v657 = vpop.xlane.xlu0 %656
    %v658 = vrcp.pop 32.0
    %v659 = vmul.f32 %v636, %v658
    %v660 = vmul.f32 %v639, %v658
    %v661 = vmul.f32 %v642, %v658
    %v662 = vmul.f32 %v645, %v658
    %v663 = vmul.f32 %v648, %v658
    %v664 = vmul.f32 %v651, %v658
    %v665 = vmul.f32 %v654, %v658
    %v666 = vmul.f32 %v657, %v658
    %v667 = vsub.f32 %v595, %v659
    %v668 = vsub.f32 %v600, %v660
    %v669 = vsub.f32 %v605, %v661
    %v670 = vsub.f32 %v610, %v662
    %v671 = vsub.f32 %v615, %v663
    %v672 = vsub.f32 %v620, %v664
    %v673 = vsub.f32 %v625, %v665
    %v674 = vsub.f32 %v630, %v666
    %v675 = vmul.f32 %v667, %v667
    %v676 = vmul.f32 %v668, %v668
    %v677 = vmul.f32 %v669, %v669
    %v678 = vmul.f32 %v670, %v670
    %v679 = vmul.f32 %v671, %v671
    %v680 = vmul.f32 %v672, %v672
    %v681 = vmul.f32 %v673, %v673
    %v682 = vmul.f32 %v674, %v674
    %v683 = vsel %vm633, %v675, 0.0
    %684 = vadd.xlane.f32.xlu0 %v683
    %v685 = vpop.xlane.xlu0 %684
    %v686 = vsel %vm633, %v676, 0.0
    %687 = vadd.xlane.f32.xlu0 %v686
    %v688 = vpop.xlane.xlu0 %687
    %v689 = vsel %vm633, %v677, 0.0
    %690 = vadd.xlane.f32.xlu0 %v689
    %v691 = vpop.xlane.xlu0 %690
    %v692 = vsel %vm633, %v678, 0.0
    %693 = vadd.xlane.f32.xlu0 %v692
    %v694 = vpop.xlane.xlu0 %693
    %v695 = vsel %vm633, %v679, 0.0
    %696 = vadd.xlane.f32.xlu0 %v695
    %v697 = vpop.xlane.xlu0 %696
    %v698 = vsel %vm633, %v680, 0.0
    %699 = vadd.xlane.f32.xlu0 %v698
    %v700 = vpop.xlane.xlu0 %699
    %v701 = vsel %vm633, %v681, 0.0
    %702 = vadd.xlane.f32.xlu0 %v701
    %v703 = vpop.xlane.xlu0 %702
    %v704 = vsel %vm633, %v682, 0.0
    %705 = vadd.xlane.f32.xlu0 %v704
    %v706 = vpop.xlane.xlu0 %705
    %v707 = vmul.f32 %v685, %v658
    %v708 = vmul.f32 %v688, %v658
    %v709 = vmul.f32 %v691, %v658
    %v710 = vmul.f32 %v694, %v658
    %v711 = vmul.f32 %v697, %v658
    %v712 = vmul.f32 %v700, %v658
    %v713 = vmul.f32 %v703, %v658
    %v714 = vmul.f32 %v706, %v658
    %v715 = vadd.f32 %v707, 1e-05
    %v716 = vadd.f32 %v708, 1e-05
    %v717 = vadd.f32 %v709, 1e-05
    %v718 = vadd.f32 %v710, 1e-05
    %v719 = vadd.f32 %v711, 1e-05
    %v720 = vadd.f32 %v712, 1e-05
    %v721 = vadd.f32 %v713, 1e-05
    %v722 = vadd.f32 %v714, 1e-05
    %v723 = vrsqrt.pop %v715
    %v724 = vrsqrt.pop %v716
    %v725 = vrsqrt.pop %v717
    %v726 = vrsqrt.pop %v718
    %v727 = vrsqrt.pop %v719
    %v728 = vrsqrt.pop %v720
    %v729 = vrsqrt.pop %v721
    %v730 = vrsqrt.pop %v722
    %v731 = vmul.f32 %v667, %v723
    %v732 = vmul.f32 %v668, %v724
    %v733 = vmul.f32 %v669, %v725
    %v734 = vmul.f32 %v670, %v726
    %v735 = vmul.f32 %v671, %v727
    %v736 = vmul.f32 %v672, %v728
    %v737 = vmul.f32 %v673, %v729
    %v738 = vmul.f32 %v674, %v730
    %v739 = vlaneseq
    %v740 = vshrl.u32 %v739, 7
    %v741 = vsub.s32 0, %v740
    %v742 = vrot.slane %v48, %v741
    %v743 = vmul.f32 %v731, %v742
    %v744 = vmul.f32 %v732, %v742
    %v745 = vmul.f32 %v733, %v742
    %v746 = vmul.f32 %v734, %v742
    %v747 = vmul.f32 %v735, %v742
    %v748 = vmul.f32 %v736, %v742
    %v749 = vmul.f32 %v737, %v742
    %v750 = vmul.f32 %v738, %v742
    %v751 = vlaneseq
    %v752 = vshrl.u32 %v751, 7
    %v753 = vsub.s32 0, %v752
    %v754 = vrot.slane %v49, %v753
    %v755 = vadd.f32 %v743, %v754
    %v756 = vadd.f32 %v744, %v754
    %v757 = vadd.f32 %v745, %v754
    %v758 = vadd.f32 %v746, %v754
    %v759 = vadd.f32 %v747, %v754
    %v760 = vadd.f32 %v748, %v754
    %v761 = vadd.f32 %v749, %v754
    %v762 = vadd.f32 %v750, %v754
    %v763 = vmax.f32 %v755, 0.0
    %v764 = vmax.f32 %v756, 0.0
    %v765 = vmax.f32 %v757, 0.0
    %v766 = vmax.f32 %v758, 0.0
    %v767 = vmax.f32 %v759, 0.0
    %v768 = vmax.f32 %v760, 0.0
    %v769 = vmax.f32 %v761, 0.0
    %v770 = vmax.f32 %v762, 0.0
    %v771 = vlaneseq
    %v772 = vshrl.u32 %v771, 7
    %v773 = vsub.s32 0, %v772
    %v774 = vrot.slane %v50, %v773
    %v776 = vsel %vm633, %v763, 0
    %v779 = vsel %vm633, %v764, 0
    %v782 = vsel %vm633, %v765, 0
    %v785 = vsel %vm633, %v766, 0
    %v788 = vsel %vm633, %v767, 0
    %v791 = vsel %vm633, %v768, 0
    %v794 = vsel %vm633, %v769, 0
    %v797 = vsel %vm633, %v770, 0
    %799 = vmatprep.subr.mxu0 0.0
    %800 = vmatpush1.msra.mxu0 %v30
    %801 = vmatprep.subr.mxu0 0.0
    %802 = vmatpush1.msra.mxu0 %v31
    %803 = vmatprep.subr.mxu0 0.0
    %804 = vmatpush1.msra.mxu0 %v32
    %805 = vmatprep.subr.mxu0 0.0
    %806 = vmatpush1.msra.mxu0 %v33
    %807 = vmatprep.subr.mxu0 0.0
    %808 = vmatpush1.msra.mxu0 0.0
    %809 = vmatprep.subr.mxu0 0.0
    %810 = vmatpush1.msra.mxu0 0.0
    %811 = vmatprep.subr.mxu0 0.0
    %812 = vmatpush1.msra.mxu0 0.0
    %813 = vmatprep.subr.mxu0 0.0
    %814 = vmatpush1.msra.mxu0 0.0
    %815 = vmatprep.subr.mxu0 0.0
    %816 = vmatpush1.msra.mxu0 0.0
    %817 = vmatprep.subr.mxu0 0.0
    %818 = vmatpush1.msra.mxu0 0.0
    %819 = vmatprep.subr.mxu0 0.0
    %820 = vmatpush1.msra.mxu0 0.0
    %821 = vmatprep.subr.mxu0 0.0
    %822 = vmatpush1.msra.mxu0 0.0
    %823 = vmatprep.subr.mxu0 0.0
    %824 = vmatpush1.msra.mxu0 0.0
    %825 = vmatprep.subr.mxu0 0.0
    %826 = vmatpush1.msra.mxu0 0.0
    %827 = vmatprep.subr.mxu0 0.0
    %828 = vmatpush1.msra.mxu0 0.0
    %829 = vmatprep.subr.mxu0 0.0
    %830 = vmatpush1.msra.mxu0 0.0
    %831 = vmatprep.subr.mxu0 0.0
    %832 = vmatpush1.msra.mxu0 0.0
    %833 = vmatprep.subr.mxu0 0.0
    %834 = vmatpush1.msra.mxu0 0.0
    %835 = vmatprep.subr.mxu0 0.0
    %836 = vmatpush1.msra.mxu0 0.0
    %837 = vmatprep.subr.mxu0 0.0
    %838 = vmatpush1.msra.mxu0 0.0
    %839 = vmatprep.subr.mxu0 0.0
    %840 = vmatpush1.msra.mxu0 0.0
    %841 = vmatprep.subr.mxu0 0.0
    %842 = vmatpush1.msra.mxu0 0.0
    %843 = vmatprep.subr.mxu0 0.0
    %844 = vmatpush1.msra.mxu0 0.0
    %845 = vmatprep.subr.mxu0 0.0
    %846 = vmatpush1.msra.mxu0 0.0
    %847 = vmatprep.subr.mxu0 0.0
    %848 = vmatpush1.msra.mxu0 0.0
    %849 = vmatprep.subr.mxu0 0.0
    %850 = vmatpush1.msra.mxu0 0.0
    %851 = vmatprep.subr.mxu0 0.0
    %852 = vmatpush1.msra.mxu0 0.0
    %853 = vmatprep.subr.mxu0 0.0
    %854 = vmatpush1.msra.mxu0 0.0
    %855 = vmatprep.subr.mxu0 0.0
    %856 = vmatpush1.msra.mxu0 0.0
    %857 = vmatprep.subr.mxu0 0.0
    %858 = vmatpush1.msra.mxu0 0.0
    %859 = vmatprep.subr.mxu0 0.0
    %860 = vmatpush1.msra.mxu0 0.0
    %861 = vmatprep.subr.mxu0 0.0
    %862 = vmatpush1.msra.mxu0 0.0
    %863 = vmatprep.mubr.f32.mxu0 0.0
    %864 = vmatmul.mubr.f32.gmra.mrb[0].mxu0 %v776
    %v865 = vpop.f32.mrb[0].mxu0
    %v866 = vadd.f32 %v774, %v865
    %v867 = vpop.f32.mrb[0].mxu0
    %868 = vmatprep.mubr.f32.mxu0 0.0
    %869 = vmatmul.mubr.f32.gmra.mrb[0].mxu0 %v779
    %v870 = vpop.f32.mrb[0].mxu0
    %v871 = vadd.f32 %v774, %v870
    %v872 = vpop.f32.mrb[0].mxu0
    %873 = vmatprep.mubr.f32.mxu0 0.0
    %874 = vmatmul.mubr.f32.gmra.mrb[0].mxu0 %v782
    %v875 = vpop.f32.mrb[0].mxu0
    %v876 = vadd.f32 %v774, %v875
    %v877 = vpop.f32.mrb[0].mxu0
    %878 = vmatprep.mubr.f32.mxu0 0.0
    %879 = vmatmul.mubr.f32.gmra.mrb[0].mxu0 %v785
    %v880 = vpop.f32.mrb[0].mxu0
    %v881 = vadd.f32 %v774, %v880
    %v882 = vpop.f32.mrb[0].mxu0
    %883 = vmatprep.mubr.f32.mxu0 0.0
    %884 = vmatmul.mubr.f32.gmra.mrb[0].mxu0 %v788
    %v885 = vpop.f32.mrb[0].mxu0
    %v886 = vadd.f32 %v774, %v885
    %v887 = vpop.f32.mrb[0].mxu0
    %888 = vmatprep.mubr.f32.mxu0 0.0
    %889 = vmatmul.mubr.f32.gmra.mrb[0].mxu0 %v791
    %v890 = vpop.f32.mrb[0].mxu0
    %v891 = vadd.f32 %v774, %v890
    %v892 = vpop.f32.mrb[0].mxu0
    %893 = vmatprep.mubr.f32.mxu0 0.0
    %894 = vmatmul.mubr.f32.gmra.mrb[0].mxu0 %v794
    %v895 = vpop.f32.mrb[0].mxu0
    %v896 = vadd.f32 %v774, %v895
    %v897 = vpop.f32.mrb[0].mxu0
    %898 = vmatprep.mubr.f32.mxu0 0.0
    %899 = vmatmul.mubr.f32.gmra.mrb[0].mxu0 %v797
    %v900 = vpop.f32.mrb[0].mxu0
    %v901 = vadd.f32 %v774, %v900
    %v902 = vpop.f32.mrb[0].mxu0
    %903 = vdwg.mxu0
    %v904 = vsel %vm633, %v866, 0.0
    %905 = vadd.xlane.f32.xlu0 %v904
    %v906 = vpop.xlane.xlu0 %905
    %v907 = vsel %vm633, %v871, 0.0
    %908 = vadd.xlane.f32.xlu0 %v907
    %v909 = vpop.xlane.xlu0 %908
    %v910 = vsel %vm633, %v876, 0.0
    %911 = vadd.xlane.f32.xlu0 %v910
    %v912 = vpop.xlane.xlu0 %911
    %v913 = vsel %vm633, %v881, 0.0
    %914 = vadd.xlane.f32.xlu0 %v913
    %v915 = vpop.xlane.xlu0 %914
    %v916 = vsel %vm633, %v886, 0.0
    %917 = vadd.xlane.f32.xlu0 %v916
    %v918 = vpop.xlane.xlu0 %917
    %v919 = vsel %vm633, %v891, 0.0
    %920 = vadd.xlane.f32.xlu0 %v919
    %v921 = vpop.xlane.xlu0 %920
    %v922 = vsel %vm633, %v896, 0.0
    %923 = vadd.xlane.f32.xlu0 %v922
    %v924 = vpop.xlane.xlu0 %923
    %v925 = vsel %vm633, %v901, 0.0
    %926 = vadd.xlane.f32.xlu0 %v925
    %v927 = vpop.xlane.xlu0 %926
    %v928 = vmul.f32 %v906, %v658
    %v929 = vmul.f32 %v909, %v658
    %v930 = vmul.f32 %v912, %v658
    %v931 = vmul.f32 %v915, %v658
    %v932 = vmul.f32 %v918, %v658
    %v933 = vmul.f32 %v921, %v658
    %v934 = vmul.f32 %v924, %v658
    %v935 = vmul.f32 %v927, %v658
    %v936 = vsub.f32 %v866, %v928
    %v937 = vsub.f32 %v871, %v929
    %v938 = vsub.f32 %v876, %v930
    %v939 = vsub.f32 %v881, %v931
    %v940 = vsub.f32 %v886, %v932
    %v941 = vsub.f32 %v891, %v933
    %v942 = vsub.f32 %v896, %v934
    %v943 = vsub.f32 %v901, %v935
    %v944 = vmul.f32 %v936, %v936
    %v945 = vmul.f32 %v937, %v937
    %v946 = vmul.f32 %v938, %v938
    %v947 = vmul.f32 %v939, %v939
    %v948 = vmul.f32 %v940, %v940
    %v949 = vmul.f32 %v941, %v941
    %v950 = vmul.f32 %v942, %v942
    %v951 = vmul.f32 %v943, %v943
    %v952 = vsel %vm633, %v944, 0.0
    %953 = vadd.xlane.f32.xlu0 %v952
    %v954 = vpop.xlane.xlu0 %953
    %v955 = vsel %vm633, %v945, 0.0
    %956 = vadd.xlane.f32.xlu0 %v955
    %v957 = vpop.xlane.xlu0 %956
    %v958 = vsel %vm633, %v946, 0.0
    %959 = vadd.xlane.f32.xlu0 %v958
    %v960 = vpop.xlane.xlu0 %959
    %v961 = vsel %vm633, %v947, 0.0
    %962 = vadd.xlane.f32.xlu0 %v961
    %v963 = vpop.xlane.xlu0 %962
    %v964 = vsel %vm633, %v948, 0.0
    %965 = vadd.xlane.f32.xlu0 %v964
    %v966 = vpop.xlane.xlu0 %965
    %v967 = vsel %vm633, %v949, 0.0
    %968 = vadd.xlane.f32.xlu0 %v967
    %v969 = vpop.xlane.xlu0 %968
    %v970 = vsel %vm633, %v950, 0.0
    %971 = vadd.xlane.f32.xlu0 %v970
    %v972 = vpop.xlane.xlu0 %971
    %v973 = vsel %vm633, %v951, 0.0
    %974 = vadd.xlane.f32.xlu0 %v973
    %v975 = vpop.xlane.xlu0 %974
    %v976 = vmul.f32 %v954, %v658
    %v977 = vmul.f32 %v957, %v658
    %v978 = vmul.f32 %v960, %v658
    %v979 = vmul.f32 %v963, %v658
    %v980 = vmul.f32 %v966, %v658
    %v981 = vmul.f32 %v969, %v658
    %v982 = vmul.f32 %v972, %v658
    %v983 = vmul.f32 %v975, %v658
    %v984 = vadd.f32 %v976, 1e-05
    %v985 = vadd.f32 %v977, 1e-05
    %v986 = vadd.f32 %v978, 1e-05
    %v987 = vadd.f32 %v979, 1e-05
    %v988 = vadd.f32 %v980, 1e-05
    %v989 = vadd.f32 %v981, 1e-05
    %v990 = vadd.f32 %v982, 1e-05
    %v991 = vadd.f32 %v983, 1e-05
    %v992 = vrsqrt.pop %v984
    %v993 = vrsqrt.pop %v985
    %v994 = vrsqrt.pop %v986
    %v995 = vrsqrt.pop %v987
    %v996 = vrsqrt.pop %v988
    %v997 = vrsqrt.pop %v989
    %v998 = vrsqrt.pop %v990
    %v999 = vrsqrt.pop %v991
    %v1000 = vmul.f32 %v936, %v992
    %v1001 = vmul.f32 %v937, %v993
    %v1002 = vmul.f32 %v938, %v994
    %v1003 = vmul.f32 %v939, %v995
    %v1004 = vmul.f32 %v940, %v996
    %v1005 = vmul.f32 %v941, %v997
    %v1006 = vmul.f32 %v942, %v998
    %v1007 = vmul.f32 %v943, %v999
    %v1008 = vlaneseq
    %v1009 = vshrl.u32 %v1008, 7
    %v1010 = vsub.s32 0, %v1009
    %v1011 = vrot.slane %v51, %v1010
    %v1012 = vmul.f32 %v1000, %v1011
    %v1013 = vmul.f32 %v1001, %v1011
    %v1014 = vmul.f32 %v1002, %v1011
    %v1015 = vmul.f32 %v1003, %v1011
    %v1016 = vmul.f32 %v1004, %v1011
    %v1017 = vmul.f32 %v1005, %v1011
    %v1018 = vmul.f32 %v1006, %v1011
    %v1019 = vmul.f32 %v1007, %v1011
    %v1020 = vlaneseq
    %v1021 = vshrl.u32 %v1020, 7
    %v1022 = vsub.s32 0, %v1021
    %v1023 = vrot.slane %v52, %v1022
    %v1024 = vadd.f32 %v1012, %v1023
    %v1025 = vadd.f32 %v1013, %v1023
    %v1026 = vadd.f32 %v1014, %v1023
    %v1027 = vadd.f32 %v1015, %v1023
    %v1028 = vadd.f32 %v1016, %v1023
    %v1029 = vadd.f32 %v1017, %v1023
    %v1030 = vadd.f32 %v1018, %v1023
    %v1031 = vadd.f32 %v1019, %v1023
    %v1032 = vmax.f32 %v1024, 0.0
    %v1033 = vmax.f32 %v1025, 0.0
    %v1034 = vmax.f32 %v1026, 0.0
    %v1035 = vmax.f32 %v1027, 0.0
    %v1036 = vmax.f32 %v1028, 0.0
    %v1037 = vmax.f32 %v1029, 0.0
    %v1038 = vmax.f32 %v1030, 0.0
    %v1039 = vmax.f32 %v1031, 0.0
    %v1040 = vlaneseq
    %v1041 = vshrl.u32 %v1040, 7
    %v1042 = vsub.s32 0, %v1041
    %v1043 = vrot.slane %v53, %v1042
    %v1045 = vsel %vm633, %v1032, 0
    %v1048 = vsel %vm633, %v1033, 0
    %v1051 = vsel %vm633, %v1034, 0
    %v1054 = vsel %vm633, %v1035, 0
    %v1057 = vsel %vm633, %v1036, 0
    %v1060 = vsel %vm633, %v1037, 0
    %v1063 = vsel %vm633, %v1038, 0
    %v1066 = vsel %vm633, %v1039, 0
    %1068 = vmatprep.subr.mxu0 0.0
    %1069 = vmatpush1.msra.mxu0 %v34
    %1070 = vmatprep.subr.mxu0 0.0
    %1071 = vmatpush1.msra.mxu0 %v35
    %1072 = vmatprep.subr.mxu0 0.0
    %1073 = vmatpush1.msra.mxu0 %v36
    %1074 = vmatprep.subr.mxu0 0.0
    %1075 = vmatpush1.msra.mxu0 %v37
    %1076 = vmatprep.subr.mxu0 0.0
    %1077 = vmatpush1.msra.mxu0 0.0
    %1078 = vmatprep.subr.mxu0 0.0
    %1079 = vmatpush1.msra.mxu0 0.0
    %1080 = vmatprep.subr.mxu0 0.0
    %1081 = vmatpush1.msra.mxu0 0.0
    %1082 = vmatprep.subr.mxu0 0.0
    %1083 = vmatpush1.msra.mxu0 0.0
    %1084 = vmatprep.subr.mxu0 0.0
    %1085 = vmatpush1.msra.mxu0 0.0
    %1086 = vmatprep.subr.mxu0 0.0
    %1087 = vmatpush1.msra.mxu0 0.0
    %1088 = vmatprep.subr.mxu0 0.0
    %1089 = vmatpush1.msra.mxu0 0.0
    %1090 = vmatprep.subr.mxu0 0.0
    %1091 = vmatpush1.msra.mxu0 0.0
    %1092 = vmatprep.subr.mxu0 0.0
    %1093 = vmatpush1.msra.mxu0 0.0
    %1094 = vmatprep.subr.mxu0 0.0
    %1095 = vmatpush1.msra.mxu0 0.0
    %1096 = vmatprep.subr.mxu0 0.0
    %1097 = vmatpush1.msra.mxu0 0.0
    %1098 = vmatprep.subr.mxu0 0.0
    %1099 = vmatpush1.msra.mxu0 0.0
    %1100 = vmatprep.subr.mxu0 0.0
    %1101 = vmatpush1.msra.mxu0 0.0
    %1102 = vmatprep.subr.mxu0 0.0
    %1103 = vmatpush1.msra.mxu0 0.0
    %1104 = vmatprep.subr.mxu0 0.0
    %1105 = vmatpush1.msra.mxu0 0.0
    %1106 = vmatprep.subr.mxu0 0.0
    %1107 = vmatpush1.msra.mxu0 0.0
    %1108 = vmatprep.subr.mxu0 0.0
    %1109 = vmatpush1.msra.mxu0 0.0
    %1110 = vmatprep.subr.mxu0 0.0
    %1111 = vmatpush1.msra.mxu0 0.0
    %1112 = vmatprep.subr.mxu0 0.0
    %1113 = vmatpush1.msra.mxu0 0.0
    %1114 = vmatprep.subr.mxu0 0.0
    %1115 = vmatpush1.msra.mxu0 0.0
    %1116 = vmatprep.subr.mxu0 0.0
    %1117 = vmatpush1.msra.mxu0 0.0
    %1118 = vmatprep.subr.mxu0 0.0
    %1119 = vmatpush1.msra.mxu0 0.0
    %1120 = vmatprep.subr.mxu0 0.0
    %1121 = vmatpush1.msra.mxu0 0.0
    %1122 = vmatprep.subr.mxu0 0.0
    %1123 = vmatpush1.msra.mxu0 0.0
    %1124 = vmatprep.subr.mxu0 0.0
    %1125 = vmatpush1.msra.mxu0 0.0
    %1126 = vmatprep.subr.mxu0 0.0
    %1127 = vmatpush1.msra.mxu0 0.0
    %1128 = vmatprep.subr.mxu0 0.0
    %1129 = vmatpush1.msra.mxu0 0.0
    %1130 = vmatprep.subr.mxu0 0.0
    %1131 = vmatpush1.msra.mxu0 0.0
    %1132 = vmatprep.mubr.f32.mxu0 0.0
    %1133 = vmatmul.mubr.f32.gmra.mrb[0].mxu0 %v1045
    %v1134 = vpop.f32.mrb[0].mxu0
    %v1135 = vadd.f32 %v1043, %v1134
    %v1136 = vpop.f32.mrb[0].mxu0
    %1137 = vmatprep.mubr.f32.mxu0 0.0
    %1138 = vmatmul.mubr.f32.gmra.mrb[0].mxu0 %v1048
    %v1139 = vpop.f32.mrb[0].mxu0
    %v1140 = vadd.f32 %v1043, %v1139
    %v1141 = vpop.f32.mrb[0].mxu0
    %1142 = vmatprep.mubr.f32.mxu0 0.0
    %1143 = vmatmul.mubr.f32.gmra.mrb[0].mxu0 %v1051
    %v1144 = vpop.f32.mrb[0].mxu0
    %v1145 = vadd.f32 %v1043, %v1144
    %v1146 = vpop.f32.mrb[0].mxu0
    %1147 = vmatprep.mubr.f32.mxu0 0.0
    %1148 = vmatmul.mubr.f32.gmra.mrb[0].mxu0 %v1054
    %v1149 = vpop.f32.mrb[0].mxu0
    %v1150 = vadd.f32 %v1043, %v1149
    %v1151 = vpop.f32.mrb[0].mxu0
    %1152 = vmatprep.mubr.f32.mxu0 0.0
    %1153 = vmatmul.mubr.f32.gmra.mrb[0].mxu0 %v1057
    %v1154 = vpop.f32.mrb[0].mxu0
    %v1155 = vadd.f32 %v1043, %v1154
    %v1156 = vpop.f32.mrb[0].mxu0
    %1157 = vmatprep.mubr.f32.mxu0 0.0
    %1158 = vmatmul.mubr.f32.gmra.mrb[0].mxu0 %v1060
    %v1159 = vpop.f32.mrb[0].mxu0
    %v1160 = vadd.f32 %v1043, %v1159
    %v1161 = vpop.f32.mrb[0].mxu0
    %1162 = vmatprep.mubr.f32.mxu0 0.0
    %1163 = vmatmul.mubr.f32.gmra.mrb[0].mxu0 %v1063
    %v1164 = vpop.f32.mrb[0].mxu0
    %v1165 = vadd.f32 %v1043, %v1164
    %v1166 = vpop.f32.mrb[0].mxu0
    %1167 = vmatprep.mubr.f32.mxu0 0.0
    %1168 = vmatmul.mubr.f32.gmra.mrb[0].mxu0 %v1066
    %v1169 = vpop.f32.mrb[0].mxu0
    %v1170 = vadd.f32 %v1043, %v1169
    %v1171 = vpop.f32.mrb[0].mxu0
    %1172 = vdwg.mxu0
    %v1173 = vadd.f32 %v1135, %v763
    %v1174 = vadd.f32 %v1140, %v764
    %v1175 = vadd.f32 %v1145, %v765
    %v1176 = vadd.f32 %v1150, %v766
    %v1177 = vadd.f32 %v1155, %v767
    %v1178 = vadd.f32 %v1160, %v768
    %v1179 = vadd.f32 %v1165, %v769
    %v1180 = vadd.f32 %v1170, %v770
    %v1181 = vsel %vm633, %v1173, 0.0
    %1182 = vadd.xlane.f32.xlu0 %v1181
    %v1183 = vpop.xlane.xlu0 %1182
    %v1184 = vsel %vm633, %v1174, 0.0
    %1185 = vadd.xlane.f32.xlu0 %v1184
    %v1186 = vpop.xlane.xlu0 %1185
    %v1187 = vsel %vm633, %v1175, 0.0
    %1188 = vadd.xlane.f32.xlu0 %v1187
    %v1189 = vpop.xlane.xlu0 %1188
    %v1190 = vsel %vm633, %v1176, 0.0
    %1191 = vadd.xlane.f32.xlu0 %v1190
    %v1192 = vpop.xlane.xlu0 %1191
    %v1193 = vsel %vm633, %v1177, 0.0
    %1194 = vadd.xlane.f32.xlu0 %v1193
    %v1195 = vpop.xlane.xlu0 %1194
    %v1196 = vsel %vm633, %v1178, 0.0
    %1197 = vadd.xlane.f32.xlu0 %v1196
    %v1198 = vpop.xlane.xlu0 %1197
    %v1199 = vsel %vm633, %v1179, 0.0
    %1200 = vadd.xlane.f32.xlu0 %v1199
    %v1201 = vpop.xlane.xlu0 %1200
    %v1202 = vsel %vm633, %v1180, 0.0
    %1203 = vadd.xlane.f32.xlu0 %v1202
    %v1204 = vpop.xlane.xlu0 %1203
    %v1205 = vmul.f32 %v1183, %v658
    %v1206 = vmul.f32 %v1186, %v658
    %v1207 = vmul.f32 %v1189, %v658
    %v1208 = vmul.f32 %v1192, %v658
    %v1209 = vmul.f32 %v1195, %v658
    %v1210 = vmul.f32 %v1198, %v658
    %v1211 = vmul.f32 %v1201, %v658
    %v1212 = vmul.f32 %v1204, %v658
    %v1213 = vsub.f32 %v1173, %v1205
    %v1214 = vsub.f32 %v1174, %v1206
    %v1215 = vsub.f32 %v1175, %v1207
    %v1216 = vsub.f32 %v1176, %v1208
    %v1217 = vsub.f32 %v1177, %v1209
    %v1218 = vsub.f32 %v1178, %v1210
    %v1219 = vsub.f32 %v1179, %v1211
    %v1220 = vsub.f32 %v1180, %v1212
    %v1221 = vmul.f32 %v1213, %v1213
    %v1222 = vmul.f32 %v1214, %v1214
    %v1223 = vmul.f32 %v1215, %v1215
    %v1224 = vmul.f32 %v1216, %v1216
    %v1225 = vmul.f32 %v1217, %v1217
    %v1226 = vmul.f32 %v1218, %v1218
    %v1227 = vmul.f32 %v1219, %v1219
    %v1228 = vmul.f32 %v1220, %v1220
    %v1229 = vsel %vm633, %v1221, 0.0
    %1230 = vadd.xlane.f32.xlu0 %v1229
    %v1231 = vpop.xlane.xlu0 %1230
    %v1232 = vsel %vm633, %v1222, 0.0
    %1233 = vadd.xlane.f32.xlu0 %v1232
    %v1234 = vpop.xlane.xlu0 %1233
    %v1235 = vsel %vm633, %v1223, 0.0
    %1236 = vadd.xlane.f32.xlu0 %v1235
    %v1237 = vpop.xlane.xlu0 %1236
    %v1238 = vsel %vm633, %v1224, 0.0
    %1239 = vadd.xlane.f32.xlu0 %v1238
    %v1240 = vpop.xlane.xlu0 %1239
    %v1241 = vsel %vm633, %v1225, 0.0
    %1242 = vadd.xlane.f32.xlu0 %v1241
    %v1243 = vpop.xlane.xlu0 %1242
    %v1244 = vsel %vm633, %v1226, 0.0
    %1245 = vadd.xlane.f32.xlu0 %v1244
    %v1246 = vpop.xlane.xlu0 %1245
    %v1247 = vsel %vm633, %v1227, 0.0
    %1248 = vadd.xlane.f32.xlu0 %v1247
    %v1249 = vpop.xlane.xlu0 %1248
    %v1250 = vsel %vm633, %v1228, 0.0
    %1251 = vadd.xlane.f32.xlu0 %v1250
    %v1252 = vpop.xlane.xlu0 %1251
    %v1253 = vmul.f32 %v1231, %v658
    %v1254 = vmul.f32 %v1234, %v658
    %v1255 = vmul.f32 %v1237, %v658
    %v1256 = vmul.f32 %v1240, %v658
    %v1257 = vmul.f32 %v1243, %v658
    %v1258 = vmul.f32 %v1246, %v658
    %v1259 = vmul.f32 %v1249, %v658
    %v1260 = vmul.f32 %v1252, %v658
    %v1261 = vadd.f32 %v1253, 1e-05
    %v1262 = vadd.f32 %v1254, 1e-05
    %v1263 = vadd.f32 %v1255, 1e-05
    %v1264 = vadd.f32 %v1256, 1e-05
    %v1265 = vadd.f32 %v1257, 1e-05
    %v1266 = vadd.f32 %v1258, 1e-05
    %v1267 = vadd.f32 %v1259, 1e-05
    %v1268 = vadd.f32 %v1260, 1e-05
    %v1269 = vrsqrt.pop %v1261
    %v1270 = vrsqrt.pop %v1262
    %v1271 = vrsqrt.pop %v1263
    %v1272 = vrsqrt.pop %v1264
    %v1273 = vrsqrt.pop %v1265
    %v1274 = vrsqrt.pop %v1266
    %v1275 = vrsqrt.pop %v1267
    %v1276 = vrsqrt.pop %v1268
    %v1277 = vmul.f32 %v1213, %v1269
    %v1278 = vmul.f32 %v1214, %v1270
    %v1279 = vmul.f32 %v1215, %v1271
    %v1280 = vmul.f32 %v1216, %v1272
    %v1281 = vmul.f32 %v1217, %v1273
    %v1282 = vmul.f32 %v1218, %v1274
    %v1283 = vmul.f32 %v1219, %v1275
    %v1284 = vmul.f32 %v1220, %v1276
    %v1285 = vlaneseq
    %v1286 = vshrl.u32 %v1285, 7
    %v1287 = vsub.s32 0, %v1286
    %v1288 = vrot.slane %v54, %v1287
    %v1289 = vmul.f32 %v1277, %v1288
    %v1290 = vmul.f32 %v1278, %v1288
    %v1291 = vmul.f32 %v1279, %v1288
    %v1292 = vmul.f32 %v1280, %v1288
    %v1293 = vmul.f32 %v1281, %v1288
    %v1294 = vmul.f32 %v1282, %v1288
    %v1295 = vmul.f32 %v1283, %v1288
    %v1296 = vmul.f32 %v1284, %v1288
    %v1297 = vlaneseq
    %v1298 = vshrl.u32 %v1297, 7
    %v1299 = vsub.s32 0, %v1298
    %v1300 = vrot.slane %v55, %v1299
    %v1301 = vadd.f32 %v1289, %v1300
    %v1302 = vadd.f32 %v1290, %v1300
    %v1303 = vadd.f32 %v1291, %v1300
    %v1304 = vadd.f32 %v1292, %v1300
    %v1305 = vadd.f32 %v1293, %v1300
    %v1306 = vadd.f32 %v1294, %v1300
    %v1307 = vadd.f32 %v1295, %v1300
    %v1308 = vadd.f32 %v1296, %v1300
    %v1309 = vmax.f32 %v1301, 0.0
    %v1310 = vmax.f32 %v1302, 0.0
    %v1311 = vmax.f32 %v1303, 0.0
    %v1312 = vmax.f32 %v1304, 0.0
    %v1313 = vmax.f32 %v1305, 0.0
    %v1314 = vmax.f32 %v1306, 0.0
    %v1315 = vmax.f32 %v1307, 0.0
    %v1316 = vmax.f32 %v1308, 0.0
    %v1317 = vlaneseq
    %v1318 = vshrl.u32 %v1317, 7
    %v1319 = vsub.s32 0, %v1318
    %v1320 = vrot.slane %v56, %v1319
    %v1322 = vsel %vm633, %v1309, 0
    %v1325 = vsel %vm633, %v1310, 0
    %v1328 = vsel %vm633, %v1311, 0
    %v1331 = vsel %vm633, %v1312, 0
    %v1334 = vsel %vm633, %v1313, 0
    %v1337 = vsel %vm633, %v1314, 0
    %v1340 = vsel %vm633, %v1315, 0
    %v1343 = vsel %vm633, %v1316, 0
    %1345 = vmatprep.subr.mxu0 0.0
    %1346 = vmatpush1.msra.mxu0 %v38
    %1347 = vmatprep.subr.mxu0 0.0
    %1348 = vmatpush1.msra.mxu0 %v39
    %1349 = vmatprep.subr.mxu0 0.0
    %1350 = vmatpush1.msra.mxu0 %v40
    %1351 = vmatprep.subr.mxu0 0.0
    %1352 = vmatpush1.msra.mxu0 %v41
    %1353 = vmatprep.subr.mxu0 0.0
    %1354 = vmatpush1.msra.mxu0 0.0
    %1355 = vmatprep.subr.mxu0 0.0
    %1356 = vmatpush1.msra.mxu0 0.0
    %1357 = vmatprep.subr.mxu0 0.0
    %1358 = vmatpush1.msra.mxu0 0.0
    %1359 = vmatprep.subr.mxu0 0.0
    %1360 = vmatpush1.msra.mxu0 0.0
    %1361 = vmatprep.subr.mxu0 0.0
    %1362 = vmatpush1.msra.mxu0 0.0
    %1363 = vmatprep.subr.mxu0 0.0
    %1364 = vmatpush1.msra.mxu0 0.0
    %1365 = vmatprep.subr.mxu0 0.0
    %1366 = vmatpush1.msra.mxu0 0.0
    %1367 = vmatprep.subr.mxu0 0.0
    %1368 = vmatpush1.msra.mxu0 0.0
    %1369 = vmatprep.subr.mxu0 0.0
    %1370 = vmatpush1.msra.mxu0 0.0
    %1371 = vmatprep.subr.mxu0 0.0
    %1372 = vmatpush1.msra.mxu0 0.0
    %1373 = vmatprep.subr.mxu0 0.0
    %1374 = vmatpush1.msra.mxu0 0.0
    %1375 = vmatprep.subr.mxu0 0.0
    %1376 = vmatpush1.msra.mxu0 0.0
    %1377 = vmatprep.subr.mxu0 0.0
    %1378 = vmatpush1.msra.mxu0 0.0
    %1379 = vmatprep.subr.mxu0 0.0
    %1380 = vmatpush1.msra.mxu0 0.0
    %1381 = vmatprep.subr.mxu0 0.0
    %1382 = vmatpush1.msra.mxu0 0.0
    %1383 = vmatprep.subr.mxu0 0.0
    %1384 = vmatpush1.msra.mxu0 0.0
    %1385 = vmatprep.subr.mxu0 0.0
    %1386 = vmatpush1.msra.mxu0 0.0
    %1387 = vmatprep.subr.mxu0 0.0
    %1388 = vmatpush1.msra.mxu0 0.0
    %1389 = vmatprep.subr.mxu0 0.0
    %1390 = vmatpush1.msra.mxu0 0.0
    %1391 = vmatprep.subr.mxu0 0.0
    %1392 = vmatpush1.msra.mxu0 0.0
    %1393 = vmatprep.subr.mxu0 0.0
    %1394 = vmatpush1.msra.mxu0 0.0
    %1395 = vmatprep.subr.mxu0 0.0
    %1396 = vmatpush1.msra.mxu0 0.0
    %1397 = vmatprep.subr.mxu0 0.0
    %1398 = vmatpush1.msra.mxu0 0.0
    %1399 = vmatprep.subr.mxu0 0.0
    %1400 = vmatpush1.msra.mxu0 0.0
    %1401 = vmatprep.subr.mxu0 0.0
    %1402 = vmatpush1.msra.mxu0 0.0
    %1403 = vmatprep.subr.mxu0 0.0
    %1404 = vmatpush1.msra.mxu0 0.0
    %1405 = vmatprep.subr.mxu0 0.0
    %1406 = vmatpush1.msra.mxu0 0.0
    %1407 = vmatprep.subr.mxu0 0.0
    %1408 = vmatpush1.msra.mxu0 0.0
    %1409 = vmatprep.mubr.f32.mxu0 0.0
    %1410 = vmatmul.mubr.f32.gmra.mrb[0].mxu0 %v1322
    %v1411 = vpop.f32.mrb[0].mxu0
    %v1412 = vadd.f32 %v1320, %v1411
    %v1413 = vpop.f32.mrb[0].mxu0
    %1414 = vmatprep.mubr.f32.mxu0 0.0
    %1415 = vmatmul.mubr.f32.gmra.mrb[0].mxu0 %v1325
    %v1416 = vpop.f32.mrb[0].mxu0
    %v1417 = vadd.f32 %v1320, %v1416
    %v1418 = vpop.f32.mrb[0].mxu0
    %1419 = vmatprep.mubr.f32.mxu0 0.0
    %1420 = vmatmul.mubr.f32.gmra.mrb[0].mxu0 %v1328
    %v1421 = vpop.f32.mrb[0].mxu0
    %v1422 = vadd.f32 %v1320, %v1421
    %v1423 = vpop.f32.mrb[0].mxu0
    %1424 = vmatprep.mubr.f32.mxu0 0.0
    %1425 = vmatmul.mubr.f32.gmra.mrb[0].mxu0 %v1331
    %v1426 = vpop.f32.mrb[0].mxu0
    %v1427 = vadd.f32 %v1320, %v1426
    %v1428 = vpop.f32.mrb[0].mxu0
    %1429 = vmatprep.mubr.f32.mxu0 0.0
    %1430 = vmatmul.mubr.f32.gmra.mrb[0].mxu0 %v1334
    %v1431 = vpop.f32.mrb[0].mxu0
    %v1432 = vadd.f32 %v1320, %v1431
    %v1433 = vpop.f32.mrb[0].mxu0
    %1434 = vmatprep.mubr.f32.mxu0 0.0
    %1435 = vmatmul.mubr.f32.gmra.mrb[0].mxu0 %v1337
    %v1436 = vpop.f32.mrb[0].mxu0
    %v1437 = vadd.f32 %v1320, %v1436
    %v1438 = vpop.f32.mrb[0].mxu0
    %1439 = vmatprep.mubr.f32.mxu0 0.0
    %1440 = vmatmul.mubr.f32.gmra.mrb[0].mxu0 %v1340
    %v1441 = vpop.f32.mrb[0].mxu0
    %v1442 = vadd.f32 %v1320, %v1441
    %v1443 = vpop.f32.mrb[0].mxu0
    %1444 = vmatprep.mubr.f32.mxu0 0.0
    %1445 = vmatmul.mubr.f32.gmra.mrb[0].mxu0 %v1343
    %v1446 = vpop.f32.mrb[0].mxu0
    %v1447 = vadd.f32 %v1320, %v1446
    %v1448 = vpop.f32.mrb[0].mxu0
    %1449 = vdwg.mxu0
    %vm1450 = vcmask 31744
    %v1451 = vsel %vm1450, %v1412, -inf
    %1452 = vmax.xlane.f32.xlu0 %v1451
    %v1453 = vpop.xlane.xlu0 %1452
    %v1454 = vsel %vm1450, %v1417, -inf
    %1455 = vmax.xlane.f32.xlu0 %v1454
    %v1456 = vpop.xlane.xlu0 %1455
    %v1457 = vsel %vm1450, %v1422, -inf
    %1458 = vmax.xlane.f32.xlu0 %v1457
    %v1459 = vpop.xlane.xlu0 %1458
    %v1460 = vsel %vm1450, %v1427, -inf
    %1461 = vmax.xlane.f32.xlu0 %v1460
    %v1462 = vpop.xlane.xlu0 %1461
    %v1463 = vsel %vm1450, %v1432, -inf
    %1464 = vmax.xlane.f32.xlu0 %v1463
    %v1465 = vpop.xlane.xlu0 %1464
    %v1466 = vsel %vm1450, %v1437, -inf
    %1467 = vmax.xlane.f32.xlu0 %v1466
    %v1468 = vpop.xlane.xlu0 %1467
    %v1469 = vsel %vm1450, %v1442, -inf
    %1470 = vmax.xlane.f32.xlu0 %v1469
    %v1471 = vpop.xlane.xlu0 %1470
    %v1472 = vsel %vm1450, %v1447, -inf
    %1473 = vmax.xlane.f32.xlu0 %v1472
    %v1474 = vpop.xlane.xlu0 %1473
    %v1475 = vsub.f32 %v1412, %v1453
    %v1476 = vsub.f32 %v1417, %v1456
    %v1477 = vsub.f32 %v1422, %v1459
    %v1478 = vsub.f32 %v1427, %v1462
    %v1479 = vsub.f32 %v1432, %v1465
    %v1480 = vsub.f32 %v1437, %v1468
    %v1481 = vsub.f32 %v1442, %v1471
    %v1482 = vsub.f32 %v1447, %v1474
    %v1483 = vmul.f32 %v1475, 1.442695
    %v1484 = vpow.pop %v1483
    %v1485 = vmul.f32 %v1476, 1.442695
    %v1486 = vpow.pop %v1485
    %v1487 = vmul.f32 %v1477, 1.442695
    %v1488 = vpow.pop %v1487
    %v1489 = vmul.f32 %v1478, 1.442695
    %v1490 = vpow.pop %v1489
    %v1491 = vmul.f32 %v1479, 1.442695
    %v1492 = vpow.pop %v1491
    %v1493 = vmul.f32 %v1480, 1.442695
    %v1494 = vpow.pop %v1493
    %v1495 = vmul.f32 %v1481, 1.442695
    %v1496 = vpow.pop %v1495
    %v1497 = vmul.f32 %v1482, 1.442695
    %v1498 = vpow.pop %v1497
    %v1499 = vsel %vm1450, %v1484, 0.0
    %1500 = vadd.xlane.f32.xlu0 %v1499
    %v1501 = vpop.xlane.xlu0 %1500
    %v1502 = vsel %vm1450, %v1486, 0.0
    %1503 = vadd.xlane.f32.xlu0 %v1502
    %v1504 = vpop.xlane.xlu0 %1503
    %v1505 = vsel %vm1450, %v1488, 0.0
    %1506 = vadd.xlane.f32.xlu0 %v1505
    %v1507 = vpop.xlane.xlu0 %1506
    %v1508 = vsel %vm1450, %v1490, 0.0
    %1509 = vadd.xlane.f32.xlu0 %v1508
    %v1510 = vpop.xlane.xlu0 %1509
    %v1511 = vsel %vm1450, %v1492, 0.0
    %1512 = vadd.xlane.f32.xlu0 %v1511
    %v1513 = vpop.xlane.xlu0 %1512
    %v1514 = vsel %vm1450, %v1494, 0.0
    %1515 = vadd.xlane.f32.xlu0 %v1514
    %v1516 = vpop.xlane.xlu0 %1515
    %v1517 = vsel %vm1450, %v1496, 0.0
    %1518 = vadd.xlane.f32.xlu0 %v1517
    %v1519 = vpop.xlane.xlu0 %1518
    %v1520 = vsel %vm1450, %v1498, 0.0
    %1521 = vadd.xlane.f32.xlu0 %v1520
    %v1522 = vpop.xlane.xlu0 %1521
    %v1523 = vrcp.pop %v1501
    %v1524 = vrcp.pop %v1504
    %v1525 = vrcp.pop %v1507
    %v1526 = vrcp.pop %v1510
    %v1527 = vrcp.pop %v1513
    %v1528 = vrcp.pop %v1516
    %v1529 = vrcp.pop %v1519
    %v1530 = vrcp.pop %v1522
    %v1531 = vmul.f32 %v1484, %v1523
    %v1532 = vmul.f32 %v1486, %v1524
    %v1533 = vmul.f32 %v1488, %v1525
    %v1534 = vmul.f32 %v1490, %v1526
    %v1535 = vmul.f32 %v1492, %v1527
    %v1536 = vmul.f32 %v1494, %v1528
    %v1537 = vmul.f32 %v1496, %v1529
    %v1538 = vmul.f32 %v1498, %v1530
    %v1539 = vlaneseq
    %v1540 = vshrl.u32 %v1539, 7
    %v1541 = vsub.s32 0, %v1540
    %v1542 = vrot.slane %v57, %v1541
    %v1543 = vmul.f32 %v1531, %v1542
    %v1544 = vmul.f32 %v1532, %v1542
    %v1545 = vmul.f32 %v1533, %v1542
    %v1546 = vmul.f32 %v1534, %v1542
    %v1547 = vmul.f32 %v1535, %v1542
    %v1548 = vmul.f32 %v1536, %v1542
    %v1549 = vmul.f32 %v1537, %v1542
    %v1550 = vmul.f32 %v1538, %v1542
    %v1551 = vsel %vm1450, %v1543, 0.0
    %1552 = vadd.xlane.f32.xlu0 %v1551
    %v1553 = vpop.xlane.xlu0 %1552
    %v1554 = vsel %vm1450, %v1544, 0.0
    %1555 = vadd.xlane.f32.xlu0 %v1554
    %v1556 = vpop.xlane.xlu0 %1555
    %v1557 = vsel %vm1450, %v1545, 0.0
    %1558 = vadd.xlane.f32.xlu0 %v1557
    %v1559 = vpop.xlane.xlu0 %1558
    %v1560 = vsel %vm1450, %v1546, 0.0
    %1561 = vadd.xlane.f32.xlu0 %v1560
    %v1562 = vpop.xlane.xlu0 %1561
    %v1563 = vsel %vm1450, %v1547, 0.0
    %1564 = vadd.xlane.f32.xlu0 %v1563
    %v1565 = vpop.xlane.xlu0 %1564
    %v1566 = vsel %vm1450, %v1548, 0.0
    %1567 = vadd.xlane.f32.xlu0 %v1566
    %v1568 = vpop.xlane.xlu0 %1567
    %v1569 = vsel %vm1450, %v1549, 0.0
    %1570 = vadd.xlane.f32.xlu0 %v1569
    %v1571 = vpop.xlane.xlu0 %1570
    %v1572 = vsel %vm1450, %v1550, 0.0
    %1573 = vadd.xlane.f32.xlu0 %v1572
    %v1574 = vpop.xlane.xlu0 %1573
    %v1575 = vadd.f32 %v1412, %v1553
    %v1576 = vadd.f32 %v1417, %v1556
    %v1577 = vadd.f32 %v1422, %v1559
    %v1578 = vadd.f32 %v1427, %v1562
    %v1579 = vadd.f32 %v1432, %v1565
    %v1580 = vadd.f32 %v1437, %v1568
    %v1581 = vadd.f32 %v1442, %v1571
    %v1582 = vadd.f32 %v1447, %v1574
    %v1583 = vlaneseq
    %v1584 = vshrl.u32 %v1583, 7
    %v1585 = vsub.s32 0, %v1584
    %v1586 = vrot.slane %v58, %v1585
    %v1587 = vmul.f32 %v1531, %v1586
    %v1588 = vmul.f32 %v1532, %v1586
    %v1589 = vmul.f32 %v1533, %v1586
    %v1590 = vmul.f32 %v1534, %v1586
    %v1591 = vmul.f32 %v1535, %v1586
    %v1592 = vmul.f32 %v1536, %v1586
    %v1593 = vmul.f32 %v1537, %v1586
    %v1594 = vmul.f32 %v1538, %v1586
    %v1595 = vsel %vm1450, %v1587, 0.0
    %1596 = vadd.xlane.f32.xlu0 %v1595
    %v1597 = vpop.xlane.xlu0 %1596
    %v1598 = vsel %vm1450, %v1588, 0.0
    %1599 = vadd.xlane.f32.xlu0 %v1598
    %v1600 = vpop.xlane.xlu0 %1599
    %v1601 = vsel %vm1450, %v1589, 0.0
    %1602 = vadd.xlane.f32.xlu0 %v1601
    %v1603 = vpop.xlane.xlu0 %1602
    %v1604 = vsel %vm1450, %v1590, 0.0
    %1605 = vadd.xlane.f32.xlu0 %v1604
    %v1606 = vpop.xlane.xlu0 %1605
    %v1607 = vsel %vm1450, %v1591, 0.0
    %1608 = vadd.xlane.f32.xlu0 %v1607
    %v1609 = vpop.xlane.xlu0 %1608
    %v1610 = vsel %vm1450, %v1592, 0.0
    %1611 = vadd.xlane.f32.xlu0 %v1610
    %v1612 = vpop.xlane.xlu0 %1611
    %v1613 = vsel %vm1450, %v1593, 0.0
    %1614 = vadd.xlane.f32.xlu0 %v1613
    %v1615 = vpop.xlane.xlu0 %1614
    %v1616 = vsel %vm1450, %v1594, 0.0
    %1617 = vadd.xlane.f32.xlu0 %v1616
    %v1618 = vpop.xlane.xlu0 %1617
    %v1619 = vadd.f32 %v1412, %v1597
    %v1620 = vadd.f32 %v1417, %v1600
    %v1621 = vadd.f32 %v1422, %v1603
    %v1622 = vadd.f32 %v1427, %v1606
    %v1623 = vadd.f32 %v1432, %v1609
    %v1624 = vadd.f32 %v1437, %v1612
    %v1625 = vadd.f32 %v1442, %v1615
    %v1626 = vadd.f32 %v1447, %v1618
    %v1627 = vmul.f32 %v1619, 0.5
    %v1628 = vmul.f32 %v1620, 0.5
    %v1629 = vmul.f32 %v1621, 0.5
    %v1630 = vmul.f32 %v1622, 0.5
    %v1631 = vmul.f32 %v1623, 0.5
    %v1632 = vmul.f32 %v1624, 0.5
    %v1633 = vmul.f32 %v1625, 0.5
    %v1634 = vmul.f32 %v1626, 0.5
    %v1635 = vmul.f32 %v1627, 1.442695
    %v1636 = vpow.pop %v1635
    %v1637 = vmul.f32 %v1628, 1.442695
    %v1638 = vpow.pop %v1637
    %v1639 = vmul.f32 %v1629, 1.442695
    %v1640 = vpow.pop %v1639
    %v1641 = vmul.f32 %v1630, 1.442695
    %v1642 = vpow.pop %v1641
    %v1643 = vmul.f32 %v1631, 1.442695
    %v1644 = vpow.pop %v1643
    %v1645 = vmul.f32 %v1632, 1.442695
    %v1646 = vpow.pop %v1645
    %v1647 = vmul.f32 %v1633, 1.442695
    %v1648 = vpow.pop %v1647
    %v1649 = vmul.f32 %v1634, 1.442695
    %v1650 = vpow.pop %v1649
    %vm1651 = vcmp.lt.s32.totalorder %v60, 4
    %v1652 = vsel %vm1651, %v1412, 0.0
    %v1653 = vsel %vm1651, %v1417, 0.0
    %v1654 = vsel %vm1651, %v1422, 0.0
    %v1655 = vsel %vm1651, %v1427, 0.0
    %v1656 = vsel %vm1651, %v1432, 0.0
    %v1657 = vsel %vm1651, %v1437, 0.0
    %v1658 = vsel %vm1651, %v1442, 0.0
    %v1659 = vsel %vm1651, %v1447, 0.0
    %vm1660 = vcmp.eq.s32.totalorder %v60, 4
    %1662 = vset.pattern.permute.xlu0 4
    %1663 = vperm.xlu0 %1662, %v1575
    %v1664 = vpop.permute.xlu0 %1663
    %1667 = vset.pattern.permute.xlu0 4
    %1668 = vperm.xlu0 %1667, %v1576
    %v1669 = vpop.permute.xlu0 %1668
    %1672 = vset.pattern.permute.xlu0 4
    %1673 = vperm.xlu0 %1672, %v1577
    %v1674 = vpop.permute.xlu0 %1673
    %1677 = vset.pattern.permute.xlu0 4
    %1678 = vperm.xlu0 %1677, %v1578
    %v1679 = vpop.permute.xlu0 %1678
    %1682 = vset.pattern.permute.xlu0 4
    %1683 = vperm.xlu0 %1682, %v1579
    %v1684 = vpop.permute.xlu0 %1683
    %1687 = vset.pattern.permute.xlu0 4
    %1688 = vperm.xlu0 %1687, %v1580
    %v1689 = vpop.permute.xlu0 %1688
    %1692 = vset.pattern.permute.xlu0 4
    %1693 = vperm.xlu0 %1692, %v1581
    %v1694 = vpop.permute.xlu0 %1693
    %1697 = vset.pattern.permute.xlu0 4
    %1698 = vperm.xlu0 %1697, %v1582
    %v1699 = vpop.permute.xlu0 %1698
    %v1701 = vsel %vm1660, %v1664, 0.0
    %v1702 = vsel %vm1660, %v1669, 0.0
    %v1703 = vsel %vm1660, %v1674, 0.0
    %v1704 = vsel %vm1660, %v1679, 0.0
    %v1705 = vsel %vm1660, %v1684, 0.0
    %v1706 = vsel %vm1660, %v1689, 0.0
    %v1707 = vsel %vm1660, %v1694, 0.0
    %v1708 = vsel %vm1660, %v1699, 0.0
    %v1709 = vadd.f32 %v1652, %v1701
    %v1710 = vadd.f32 %v1653, %v1702
    %v1711 = vadd.f32 %v1654, %v1703
    %v1712 = vadd.f32 %v1655, %v1704
    %v1713 = vadd.f32 %v1656, %v1705
    %v1714 = vadd.f32 %v1657, %v1706
    %v1715 = vadd.f32 %v1658, %v1707
    %v1716 = vadd.f32 %v1659, %v1708
    %vm1717 = vcmp.eq.s32.totalorder %v60, 5
    %1719 = vset.pattern.permute.xlu0 5
    %1720 = vperm.xlu0 %1719, %v1619
    %v1721 = vpop.permute.xlu0 %1720
    %1724 = vset.pattern.permute.xlu0 5
    %1725 = vperm.xlu0 %1724, %v1620
    %v1726 = vpop.permute.xlu0 %1725
    %1729 = vset.pattern.permute.xlu0 5
    %1730 = vperm.xlu0 %1729, %v1621
    %v1731 = vpop.permute.xlu0 %1730
    %1734 = vset.pattern.permute.xlu0 5
    %1735 = vperm.xlu0 %1734, %v1622
    %v1736 = vpop.permute.xlu0 %1735
    %1739 = vset.pattern.permute.xlu0 5
    %1740 = vperm.xlu0 %1739, %v1623
    %v1741 = vpop.permute.xlu0 %1740
    %1744 = vset.pattern.permute.xlu0 5
    %1745 = vperm.xlu0 %1744, %v1624
    %v1746 = vpop.permute.xlu0 %1745
    %1749 = vset.pattern.permute.xlu0 5
    %1750 = vperm.xlu0 %1749, %v1625
    %v1751 = vpop.permute.xlu0 %1750
    %1754 = vset.pattern.permute.xlu0 5
    %1755 = vperm.xlu0 %1754, %v1626
    %v1756 = vpop.permute.xlu0 %1755
    %v1758 = vsel %vm1717, %v1721, 0.0
    %v1759 = vsel %vm1717, %v1726, 0.0
    %v1760 = vsel %vm1717, %v1731, 0.0
    %v1761 = vsel %vm1717, %v1736, 0.0
    %v1762 = vsel %vm1717, %v1741, 0.0
    %v1763 = vsel %vm1717, %v1746, 0.0
    %v1764 = vsel %vm1717, %v1751, 0.0
    %v1765 = vsel %vm1717, %v1756, 0.0
    %v1766 = vadd.f32 %v1709, %v1758
    %v1767 = vadd.f32 %v1710, %v1759
    %v1768 = vadd.f32 %v1711, %v1760
    %v1769 = vadd.f32 %v1712, %v1761
    %v1770 = vadd.f32 %v1713, %v1762
    %v1771 = vadd.f32 %v1714, %v1763
    %v1772 = vadd.f32 %v1715, %v1764
    %v1773 = vadd.f32 %v1716, %v1765
    %vm1774 = vcmp.eq.s32.totalorder %v60, 6
    %1776 = vset.pattern.permute.xlu0 5
    %1777 = vperm.xlu0 %1776, %v1636
    %v1778 = vpop.permute.xlu0 %1777
    %1781 = vset.pattern.permute.xlu0 5
    %1782 = vperm.xlu0 %1781, %v1638
    %v1783 = vpop.permute.xlu0 %1782
    %1786 = vset.pattern.permute.xlu0 5
    %1787 = vperm.xlu0 %1786, %v1640
    %v1788 = vpop.permute.xlu0 %1787
    %1791 = vset.pattern.permute.xlu0 5
    %1792 = vperm.xlu0 %1791, %v1642
    %v1793 = vpop.permute.xlu0 %1792
    %1796 = vset.pattern.permute.xlu0 5
    %1797 = vperm.xlu0 %1796, %v1644
    %v1798 = vpop.permute.xlu0 %1797
    %1801 = vset.pattern.permute.xlu0 5
    %1802 = vperm.xlu0 %1801, %v1646
    %v1803 = vpop.permute.xlu0 %1802
    %1806 = vset.pattern.permute.xlu0 5
    %1807 = vperm.xlu0 %1806, %v1648
    %v1808 = vpop.permute.xlu0 %1807
    %1811 = vset.pattern.permute.xlu0 5
    %1812 = vperm.xlu0 %1811, %v1650
    %v1813 = vpop.permute.xlu0 %1812
    %v1815 = vsel %vm1774, %v1778, 0.0
    %v1816 = vsel %vm1774, %v1783, 0.0
    %v1817 = vsel %vm1774, %v1788, 0.0
    %v1818 = vsel %vm1774, %v1793, 0.0
    %v1819 = vsel %vm1774, %v1798, 0.0
    %v1820 = vsel %vm1774, %v1803, 0.0
    %v1821 = vsel %vm1774, %v1808, 0.0
    %v1822 = vsel %vm1774, %v1813, 0.0
    %v1823 = vadd.f32 %v1766, %v1815
    %v1824 = vadd.f32 %v1767, %v1816
    %v1825 = vadd.f32 %v1768, %v1817
    %v1826 = vadd.f32 %v1769, %v1818
    %v1827 = vadd.f32 %v1770, %v1819
    %v1828 = vadd.f32 %v1771, %v1820
    %v1829 = vadd.f32 %v1772, %v1821
    %v1830 = vadd.f32 %v1773, %v1822
    %s1831 = scalar_lea.vmem %s7, %s67
    %1832 = vst [vmem:[%s1831] sm:$0xff] %v1823
    %1833 = vst [vmem:[%s1831 + $0x8] sm:$0xff] %v1824
    %1834 = vst [vmem:[%s1831 + $0x10] sm:$0xff] %v1825
    %1835 = vst [vmem:[%s1831 + $0x18] sm:$0xff] %v1826
    %1836 = vst [vmem:[%s1831 + $0x20] sm:$0xff] %v1827
    %1837 = vst [vmem:[%s1831 + $0x28] sm:$0xff] %v1828
    %1838 = vst [vmem:[%s1831 + $0x30] sm:$0xff] %v1829
    %1839 = vst [vmem:[%s1831 + $0x38] sm:$0xff] %v1830
  $region34: #{_forward.1} parent=0 // loop_footer
    %s66 = sadd.s32 1, %s62
  $region35: #{_forward.1} parent=0 // loop_footer_branch
    %61 = sbr.rel target = $region31
  $region36: #{_forward.1} parent=0 // loop_exit
    _
  // Predicated region
  $region37: #{_forward.1} parent=0 // pred_check
    _
  $region38: #{_forward.1} parent=0 // pred_check_branch
    %1841 = sbr.rel (0) target = $region40
  $region39: #{_forward.1} parent=0 // pred_region
    _
  $region40: #{_forward.1} parent=0 // pred_fallthru
    _
  // Predicated region
  $region41: #{_forward.1} parent=0 // pred_check
    _
  $region42: #{_forward.1} parent=0 // pred_check_branch
    %1843 = sbr.rel (0) target = $region44
  $region43: #{_forward.1} parent=0 // pred_region
    _
  $region44: #{_forward.1} parent=0 // pred_fallthru
    _

// kernel: _forward.1
$region0: #{_forward.1}
  #allocation0 [shape = 'u32[]', space=smem, size = 0x4, offset = 0x4, fixed_abs, tag = 'smem constant byte address 0x4 - core index']
  #allocation1 [shape = 'u32[144,128]{1,0:T(1,128)}', space=vmem, size = 0x12000, scoped, tag = 'internal scratch']
  %s0 = inlined_call_operand.vmem [shape: f32[512,16], index: 0, kind: input, shape index: {}]
  %s1 = inlined_call_operand.vmem [shape: f32[16,16], index: 1, kind: input, shape index: {}]
  %s2 = inlined_call_operand.vmem [shape: f32[16,32], index: 2, kind: input, shape index: {}]
  %s3 = inlined_call_operand.vmem [shape: f32[32,32], index: 3, kind: input, shape index: {}]
  %s4 = inlined_call_operand.vmem [shape: f32[32,32], index: 4, kind: input, shape index: {}]
  %s5 = inlined_call_operand.vmem [shape: f32[32,128], index: 5, kind: input, shape index: {}]
  %s6 = inlined_call_operand.vmem [shape: f32[24,128], index: 6, kind: input, shape index: {}]
  %s7 = inlined_call_operand.vmem [shape: f32[512,128], index: 7, kind: output, shape index: {}]
  %s8 = sld [smem:[#allocation0]]
  $region45: #{_forward.1} parent=0
    _
  %s10 = ssub.s32 1, %s8
  %s11 = scalar_select 0, %s10, %s8
  // Predicated region
  $region2: #{_forward.1} parent=0 // pred_check
    _
  $region3: #{_forward.1} parent=0 // pred_check_branch
    %13 = sbr.rel (0) target = $region5
  $region4: #{_forward.1} parent=0 // pred_region
    _
  $region5: #{_forward.1} parent=0 // pred_fallthru
    _
  // Predicated region
  $region6: #{_forward.1} parent=0 // pred_check
    _
  $region7: #{_forward.1} parent=0 // pred_check_branch
    %15 = sbr.rel (0) target = $region9
  $region8: #{_forward.1} parent=0 // pred_region
    _
  $region9: #{_forward.1} parent=0 // pred_fallthru
    _
  // Predicated region
  $region10: #{_forward.1} parent=0 // pred_check
    _
  $region11: #{_forward.1} parent=0 // pred_check_branch
    %17 = sbr.rel (0) target = $region13
  $region12: #{_forward.1} parent=0 // pred_region
    _
  $region13: #{_forward.1} parent=0 // pred_fallthru
    _
  // Predicated region
  $region14: #{_forward.1} parent=0 // pred_check
    _
  $region15: #{_forward.1} parent=0 // pred_check_branch
    %19 = sbr.rel (0) target = $region17
  $region16: #{_forward.1} parent=0 // pred_region
    _
  $region17: #{_forward.1} parent=0 // pred_fallthru
    _
  // Predicated region
  $region18: #{_forward.1} parent=0 // pred_check
    _
  $region19: #{_forward.1} parent=0 // pred_check_branch
    %21 = sbr.rel (0) target = $region21
  $region20: #{_forward.1} parent=0 // pred_region
    _
  $region21: #{_forward.1} parent=0 // pred_fallthru
    _
  // Predicated region
  $region22: #{_forward.1} parent=0 // pred_check
    _
  $region23: #{_forward.1} parent=0 // pred_check_branch
    %23 = sbr.rel (0) target = $region25
  $region24: #{_forward.1} parent=0 // pred_region
    _
  $region25: #{_forward.1} parent=0 // pred_fallthru
    _
  // Predicated region
  $region26: #{_forward.1} parent=0 // pred_check
    _
  $region27: #{_forward.1} parent=0 // pred_check_branch
    %25 = sbr.rel (0) target = $region29
  $region28: #{_forward.1} parent=0 // pred_region
    _
  $region29: #{_forward.1} parent=0 // pred_fallthru
    _
  %v26 = vld [vmem:[%s1] sm:$0xff]
  %v27 = vld [vmem:[%s1 + $0x8] sm:$0xff]
  %v28 = vld [vmem:[%s2] sm:$0xff]
  %v29 = vld [vmem:[%s2 + $0x8] sm:$0xff]
  %v30 = vld [vmem:[%s3] sm:$0xff]
  %v31 = vld [vmem:[%s3 + $0x8] sm:$0xff]
  %v32 = vld [vmem:[%s3 + $0x10] sm:$0xff]
  %v33 = vld [vmem:[%s3 + $0x18] sm:$0xff]
  %v34 = vld [vmem:[%s4] sm:$0xff]
  %v35 = vld [vmem:[%s4 + $0x8] sm:$0xff]
  %v36 = vld [vmem:[%s4 + $0x10] sm:$0xff]
  %v37 = vld [vmem:[%s4 + $0x18] sm:$0xff]
  %v38 = vld [vmem:[%s5] sm:$0xff]
  %v39 = vld [vmem:[%s5 + $0x8] sm:$0xff]
  %v40 = vld [vmem:[%s5 + $0x10] sm:$0xff]
  %v41 = vld [vmem:[%s5 + $0x18] sm:$0xff]
  %v42 = vld [vmem:[%s6] sm:$0x1]
  %v43 = vld [vmem:[%s6 + $0x1] sm:$0x1]
  %v44 = vld [vmem:[%s6 + $0x2] sm:$0x1]
  %v45 = vld [vmem:[%s6 + $0x3] sm:$0x1]
  %v46 = vld [vmem:[%s6 + $0x4] sm:$0x1]
  %v47 = vld [vmem:[%s6 + $0x5] sm:$0x1]
  %v48 = vld [vmem:[%s6 + $0x6] sm:$0x1]
  %v49 = vld [vmem:[%s6 + $0x7] sm:$0x1]
  %v50 = vld [vmem:[%s6 + $0x8] sm:$0x1]
  %v51 = vld [vmem:[%s6 + $0x9] sm:$0x1]
  %v52 = vld [vmem:[%s6 + $0xa] sm:$0x1]
  %v53 = vld [vmem:[%s6 + $0xb] sm:$0x1]
  %v54 = vld [vmem:[%s6 + $0xc] sm:$0x1]
  %v55 = vld [vmem:[%s6 + $0xd] sm:$0x1]
  %v56 = vld [vmem:[%s6 + $0xe] sm:$0x1]
  %v57 = vld [vmem:[%s6 + $0xf] sm:$0x1]
  %v58 = vld [vmem:[%s6 + $0x10] sm:$0x1]
  %v59 = vlaneseq
  %v60 = vand.u32 %v59, 127
  loop: start=0, step=1, limit=8
  $region30: #{_forward.1} parent=0 // loop_pre_header
    _
  $region31: #{_forward.1} parent=0 // loop_header
    %s62 = sphi 0, %s66
    %p63 = scmp.ge.s32.totalorder %s62, 8
  $region32: #{_forward.1} parent=0 // loop_header_branch
    %65 = sbr.rel (%p63) target = $region36
  $region33: #{_forward.1} parent=0 // loop_body
    %s67 = smul.u32 %s62, 64
    %s68 = scalar_lea.vmem %s0, %s67
    %v69 = vld [vmem:[%s68] sm:$0xff]
    %v70 = vld [vmem:[%s68 + $0x8] sm:$0xff]
    %v71 = vld [vmem:[%s68 + $0x10] sm:$0xff]
    %v72 = vld [vmem:[%s68 + $0x18] sm:$0xff]
    %v73 = vld [vmem:[%s68 + $0x20] sm:$0xff]
    %v74 = vld [vmem:[%s68 + $0x28] sm:$0xff]
    %v75 = vld [vmem:[%s68 + $0x30] sm:$0xff]
    %v76 = vld [vmem:[%s68 + $0x38] sm:$0xff]
    %vm77 = vcmask 130048
    %v78 = vsel %vm77, %v69, 0.0
    %79 = vadd.xlane.f32.xlu0 %v78
    %v80 = vpop.xlane.xlu0 %79
    %v81 = vsel %vm77, %v70, 0.0
    %82 = vadd.xlane.f32.xlu0 %v81
    %v83 = vpop.xlane.xlu0 %82
    %v84 = vsel %vm77, %v71, 0.0
    %85 = vadd.xlane.f32.xlu0 %v84
    %v86 = vpop.xlane.xlu0 %85
    %v87 = vsel %vm77, %v72, 0.0
    %88 = vadd.xlane.f32.xlu0 %v87
    %v89 = vpop.xlane.xlu0 %88
    %v90 = vsel %vm77, %v73, 0.0
    %91 = vadd.xlane.f32.xlu0 %v90
    %v92 = vpop.xlane.xlu0 %91
    %v93 = vsel %vm77, %v74, 0.0
    %94 = vadd.xlane.f32.xlu0 %v93
    %v95 = vpop.xlane.xlu0 %94
    %v96 = vsel %vm77, %v75, 0.0
    %97 = vadd.xlane.f32.xlu0 %v96
    %v98 = vpop.xlane.xlu0 %97
    %v99 = vsel %vm77, %v76, 0.0
    %100 = vadd.xlane.f32.xlu0 %v99
    %v101 = vpop.xlane.xlu0 %100
    %v102 = vrcp.pop 16.0
    %v103 = vmul.f32 %v80, %v102
    %v104 = vmul.f32 %v83, %v102
    %v105 = vmul.f32 %v86, %v102
    %v106 = vmul.f32 %v89, %v102
    %v107 = vmul.f32 %v92, %v102
    %v108 = vmul.f32 %v95, %v102
    %v109 = vmul.f32 %v98, %v102
    %v110 = vmul.f32 %v101, %v102
    %v111 = vsub.f32 %v69, %v103
    %v112 = vsub.f32 %v70, %v104
    %v113 = vsub.f32 %v71, %v105
    %v114 = vsub.f32 %v72, %v106
    %v115 = vsub.f32 %v73, %v107
    %v116 = vsub.f32 %v74, %v108
    %v117 = vsub.f32 %v75, %v109
    %v118 = vsub.f32 %v76, %v110
    %v119 = vmul.f32 %v111, %v111
    %v120 = vmul.f32 %v112, %v112
    %v121 = vmul.f32 %v113, %v113
    %v122 = vmul.f32 %v114, %v114
    %v123 = vmul.f32 %v115, %v115
    %v124 = vmul.f32 %v116, %v116
    %v125 = vmul.f32 %v117, %v117
    %v126 = vmul.f32 %v118, %v118
    %v127 = vsel %vm77, %v119, 0.0
    %128 = vadd.xlane.f32.xlu0 %v127
    %v129 = vpop.xlane.xlu0 %128
    %v130 = vsel %vm77, %v120, 0.0
    %131 = vadd.xlane.f32.xlu0 %v130
    %v132 = vpop.xlane.xlu0 %131
    %v133 = vsel %vm77, %v121, 0.0
    %134 = vadd.xlane.f32.xlu0 %v133
    %v135 = vpop.xlane.xlu0 %134
    %v136 = vsel %vm77, %v122, 0.0
    %137 = vadd.xlane.f32.xlu0 %v136
    %v138 = vpop.xlane.xlu0 %137
    %v139 = vsel %vm77, %v123, 0.0
    %140 = vadd.xlane.f32.xlu0 %v139
    %v141 = vpop.xlane.xlu0 %140
    %v142 = vsel %vm77, %v124, 0.0
    %143 = vadd.xlane.f32.xlu0 %v142
    %v144 = vpop.xlane.xlu0 %143
    %v145 = vsel %vm77, %v125, 0.0
    %146 = vadd.xlane.f32.xlu0 %v145
    %v147 = vpop.xlane.xlu0 %146
    %v148 = vsel %vm77, %v126, 0.0
    %149 = vadd.xlane.f32.xlu0 %v148
    %v150 = vpop.xlane.xlu0 %149
    %v151 = vmul.f32 %v129, %v102
    %v152 = vmul.f32 %v132, %v102
    %v153 = vmul.f32 %v135, %v102
    %v154 = vmul.f32 %v138, %v102
    %v155 = vmul.f32 %v141, %v102
    %v156 = vmul.f32 %v144, %v102
    %v157 = vmul.f32 %v147, %v102
    %v158 = vmul.f32 %v150, %v102
    %v159 = vadd.f32 %v151, 1e-05
    %v160 = vadd.f32 %v152, 1e-05
    %v161 = vadd.f32 %v153, 1e-05
    %v162 = vadd.f32 %v154, 1e-05
    %v163 = vadd.f32 %v155, 1e-05
    %v164 = vadd.f32 %v156, 1e-05
    %v165 = vadd.f32 %v157, 1e-05
    %v166 = vadd.f32 %v158, 1e-05
    %v167 = vrsqrt.pop %v159
    %v168 = vrsqrt.pop %v160
    %v169 = vrsqrt.pop %v161
    %v170 = vrsqrt.pop %v162
    %v171 = vrsqrt.pop %v163
    %v172 = vrsqrt.pop %v164
    %v173 = vrsqrt.pop %v165
    %v174 = vrsqrt.pop %v166
    %v175 = vmul.f32 %v111, %v167
    %v176 = vmul.f32 %v112, %v168
    %v177 = vmul.f32 %v113, %v169
    %v178 = vmul.f32 %v114, %v170
    %v179 = vmul.f32 %v115, %v171
    %v180 = vmul.f32 %v116, %v172
    %v181 = vmul.f32 %v117, %v173
    %v182 = vmul.f32 %v118, %v174
    %v183 = vlaneseq
    %v184 = vshrl.u32 %v183, 7
    %v185 = vsub.s32 0, %v184
    %v186 = vrot.slane %v42, %v185
    %v187 = vmul.f32 %v175, %v186
    %v188 = vmul.f32 %v176, %v186
    %v189 = vmul.f32 %v177, %v186
    %v190 = vmul.f32 %v178, %v186
    %v191 = vmul.f32 %v179, %v186
    %v192 = vmul.f32 %v180, %v186
    %v193 = vmul.f32 %v181, %v186
    %v194 = vmul.f32 %v182, %v186
    %v195 = vlaneseq
    %v196 = vshrl.u32 %v195, 7
    %v197 = vsub.s32 0, %v196
    %v198 = vrot.slane %v43, %v197
    %v199 = vadd.f32 %v187, %v198
    %v200 = vadd.f32 %v188, %v198
    %v201 = vadd.f32 %v189, %v198
    %v202 = vadd.f32 %v190, %v198
    %v203 = vadd.f32 %v191, %v198
    %v204 = vadd.f32 %v192, %v198
    %v205 = vadd.f32 %v193, %v198
    %v206 = vadd.f32 %v194, %v198
    %v207 = vlaneseq
    %v208 = vshrl.u32 %v207, 7
    %v209 = vsub.s32 0, %v208
    %v210 = vrot.slane %v44, %v209
    %v212 = vsel %vm77, %v199, 0
    %v215 = vsel %vm77, %v200, 0
    %v218 = vsel %vm77, %v201, 0
    %v221 = vsel %vm77, %v202, 0
    %v224 = vsel %vm77, %v203, 0
    %v227 = vsel %vm77, %v204, 0
    %v230 = vsel %vm77, %v205, 0
    %v233 = vsel %vm77, %v206, 0
    %235 = vmatprep.subr.mxu0 0.0
    %236 = vmatpush1.msra.mxu0 %v26
    %237 = vmatprep.subr.mxu0 0.0
    %238 = vmatpush1.msra.mxu0 %v27
    %239 = vmatprep.subr.mxu0 0.0
    %240 = vmatpush1.msra.mxu0 0.0
    %241 = vmatprep.subr.mxu0 0.0
    %242 = vmatpush1.msra.mxu0 0.0
    %243 = vmatprep.subr.mxu0 0.0
    %244 = vmatpush1.msra.mxu0 0.0
    %245 = vmatprep.subr.mxu0 0.0
    %246 = vmatpush1.msra.mxu0 0.0
    %247 = vmatprep.subr.mxu0 0.0
    %248 = vmatpush1.msra.mxu0 0.0
    %249 = vmatprep.subr.mxu0 0.0
    %250 = vmatpush1.msra.mxu0 0.0
    %251 = vmatprep.subr.mxu0 0.0
    %252 = vmatpush1.msra.mxu0 0.0
    %253 = vmatprep.subr.mxu0 0.0
    %254 = vmatpush1.msra.mxu0 0.0
    %255 = vmatprep.subr.mxu0 0.0
    %256 = vmatpush1.msra.mxu0 0.0
    %257 = vmatprep.subr.mxu0 0.0
    %258 = vmatpush1.msra.mxu0 0.0
    %259 = vmatprep.subr.mxu0 0.0
    %260 = vmatpush1.msra.mxu0 0.0
    %261 = vmatprep.subr.mxu0 0.0
    %262 = vmatpush1.msra.mxu0 0.0
    %263 = vmatprep.subr.mxu0 0.0
    %264 = vmatpush1.msra.mxu0 0.0
    %265 = vmatprep.subr.mxu0 0.0
    %266 = vmatpush1.msra.mxu0 0.0
    %267 = vmatprep.subr.mxu0 0.0
    %268 = vmatpush1.msra.mxu0 0.0
    %269 = vmatprep.subr.mxu0 0.0
    %270 = vmatpush1.msra.mxu0 0.0
    %271 = vmatprep.subr.mxu0 0.0
    %272 = vmatpush1.msra.mxu0 0.0
    %273 = vmatprep.subr.mxu0 0.0
    %274 = vmatpush1.msra.mxu0 0.0
    %275 = vmatprep.subr.mxu0 0.0
    %276 = vmatpush1.msra.mxu0 0.0
    %277 = vmatprep.subr.mxu0 0.0
    %278 = vmatpush1.msra.mxu0 0.0
    %279 = vmatprep.subr.mxu0 0.0
    %280 = vmatpush1.msra.mxu0 0.0
    %281 = vmatprep.subr.mxu0 0.0
    %282 = vmatpush1.msra.mxu0 0.0
    %283 = vmatprep.subr.mxu0 0.0
    %284 = vmatpush1.msra.mxu0 0.0
    %285 = vmatprep.subr.mxu0 0.0
    %286 = vmatpush1.msra.mxu0 0.0
    %287 = vmatprep.subr.mxu0 0.0
    %288 = vmatpush1.msra.mxu0 0.0
    %289 = vmatprep.subr.mxu0 0.0
    %290 = vmatpush1.msra.mxu0 0.0
    %291 = vmatprep.subr.mxu0 0.0
    %292 = vmatpush1.msra.mxu0 0.0
    %293 = vmatprep.subr.mxu0 0.0
    %294 = vmatpush1.msra.mxu0 0.0
    %295 = vmatprep.subr.mxu0 0.0
    %296 = vmatpush1.msra.mxu0 0.0
    %297 = vmatprep.subr.mxu0 0.0
    %298 = vmatpush1.msra.mxu0 0.0
    %299 = vmatprep.mubr.f32.mxu0 0.0
    %300 = vmatmul.mubr.f32.gmra.mrb[0].mxu0 %v212
    %v301 = vpop.f32.mrb[0].mxu0
    %v302 = vadd.f32 %v210, %v301
    %v303 = vpop.f32.mrb[0].mxu0
    %304 = vmatprep.mubr.f32.mxu0 0.0
    %305 = vmatmul.mubr.f32.gmra.mrb[0].mxu0 %v215
    %v306 = vpop.f32.mrb[0].mxu0
    %v307 = vadd.f32 %v210, %v306
    %v308 = vpop.f32.mrb[0].mxu0
    %309 = vmatprep.mubr.f32.mxu0 0.0
    %310 = vmatmul.mubr.f32.gmra.mrb[0].mxu0 %v218
    %v311 = vpop.f32.mrb[0].mxu0
    %v312 = vadd.f32 %v210, %v311
    %v313 = vpop.f32.mrb[0].mxu0
    %314 = vmatprep.mubr.f32.mxu0 0.0
    %315 = vmatmul.mubr.f32.gmra.mrb[0].mxu0 %v221
    %v316 = vpop.f32.mrb[0].mxu0
    %v317 = vadd.f32 %v210, %v316
    %v318 = vpop.f32.mrb[0].mxu0
    %319 = vmatprep.mubr.f32.mxu0 0.0
    %320 = vmatmul.mubr.f32.gmra.mrb[0].mxu0 %v224
    %v321 = vpop.f32.mrb[0].mxu0
    %v322 = vadd.f32 %v210, %v321
    %v323 = vpop.f32.mrb[0].mxu0
    %324 = vmatprep.mubr.f32.mxu0 0.0
    %325 = vmatmul.mubr.f32.gmra.mrb[0].mxu0 %v227
    %v326 = vpop.f32.mrb[0].mxu0
    %v327 = vadd.f32 %v210, %v326
    %v328 = vpop.f32.mrb[0].mxu0
    %329 = vmatprep.mubr.f32.mxu0 0.0
    %330 = vmatmul.mubr.f32.gmra.mrb[0].mxu0 %v230
    %v331 = vpop.f32.mrb[0].mxu0
    %v332 = vadd.f32 %v210, %v331
    %v333 = vpop.f32.mrb[0].mxu0
    %334 = vmatprep.mubr.f32.mxu0 0.0
    %335 = vmatmul.mubr.f32.gmra.mrb[0].mxu0 %v233
    %v336 = vpop.f32.mrb[0].mxu0
    %v337 = vadd.f32 %v210, %v336
    %v338 = vpop.f32.mrb[0].mxu0
    %339 = vdwg.mxu0
    %v340 = vtanh.pop %v302
    %v341 = vtanh.pop %v307
    %v342 = vtanh.pop %v312
    %v343 = vtanh.pop %v317
    %v344 = vtanh.pop %v322
    %v345 = vtanh.pop %v327
    %v346 = vtanh.pop %v332
    %v347 = vtanh.pop %v337
    %v348 = vlaneseq
    %v349 = vshrl.u32 %v348, 7
    %v350 = vsub.s32 0, %v349
    %v351 = vrot.slane %v45, %v350
    %v352 = vmul.f32 %v340, %v351
    %v353 = vmul.f32 %v341, %v351
    %v354 = vmul.f32 %v342, %v351
    %v355 = vmul.f32 %v343, %v351
    %v356 = vmul.f32 %v344, %v351
    %v357 = vmul.f32 %v345, %v351
    %v358 = vmul.f32 %v346, %v351
    %v359 = vmul.f32 %v347, %v351
    %v360 = vsel %vm77, %v352, 0.0
    %361 = vadd.xlane.f32.xlu0 %v360
    %v362 = vpop.xlane.xlu0 %361
    %v363 = vsel %vm77, %v353, 0.0
    %364 = vadd.xlane.f32.xlu0 %v363
    %v365 = vpop.xlane.xlu0 %364
    %v366 = vsel %vm77, %v354, 0.0
    %367 = vadd.xlane.f32.xlu0 %v366
    %v368 = vpop.xlane.xlu0 %367
    %v369 = vsel %vm77, %v355, 0.0
    %370 = vadd.xlane.f32.xlu0 %v369
    %v371 = vpop.xlane.xlu0 %370
    %v372 = vsel %vm77, %v356, 0.0
    %373 = vadd.xlane.f32.xlu0 %v372
    %v374 = vpop.xlane.xlu0 %373
    %v375 = vsel %vm77, %v357, 0.0
    %376 = vadd.xlane.f32.xlu0 %v375
    %v377 = vpop.xlane.xlu0 %376
    %v378 = vsel %vm77, %v358, 0.0
    %379 = vadd.xlane.f32.xlu0 %v378
    %v380 = vpop.xlane.xlu0 %379
    %v381 = vsel %vm77, %v359, 0.0
    %382 = vadd.xlane.f32.xlu0 %v381
    %v383 = vpop.xlane.xlu0 %382
    %v384 = vlaneseq
    %v385 = vshrl.u32 %v384, 7
    %v386 = vsub.s32 0, %v385
    %v387 = vrot.slane %v46, %v386
    %v388 = vadd.f32 %v362, %v387
    %v389 = vadd.f32 %v365, %v387
    %v390 = vadd.f32 %v368, %v387
    %v391 = vadd.f32 %v371, %v387
    %v392 = vadd.f32 %v374, %v387
    %v393 = vadd.f32 %v377, %v387
    %v394 = vadd.f32 %v380, %v387
    %v395 = vadd.f32 %v383, %v387
    %v396 = vxor.u32 %v388, 2147483648
    %v397 = vxor.u32 %v389, 2147483648
    %v398 = vxor.u32 %v390, 2147483648
    %v399 = vxor.u32 %v391, 2147483648
    %v400 = vxor.u32 %v392, 2147483648
    %v401 = vxor.u32 %v393, 2147483648
    %v402 = vxor.u32 %v394, 2147483648
    %v403 = vxor.u32 %v395, 2147483648
    %v404 = vmul.f32 %v396, 1.442695
    %v405 = vpow.pop %v404
    %v406 = vmul.f32 %v397, 1.442695
    %v407 = vpow.pop %v406
    %v408 = vmul.f32 %v398, 1.442695
    %v409 = vpow.pop %v408
    %v410 = vmul.f32 %v399, 1.442695
    %v411 = vpow.pop %v410
    %v412 = vmul.f32 %v400, 1.442695
    %v413 = vpow.pop %v412
    %v414 = vmul.f32 %v401, 1.442695
    %v415 = vpow.pop %v414
    %v416 = vmul.f32 %v402, 1.442695
    %v417 = vpow.pop %v416
    %v418 = vmul.f32 %v403, 1.442695
    %v419 = vpow.pop %v418
    %v420 = vadd.f32 %v405, 1.0
    %v421 = vadd.f32 %v407, 1.0
    %v422 = vadd.f32 %v409, 1.0
    %v423 = vadd.f32 %v411, 1.0
    %v424 = vadd.f32 %v413, 1.0
    %v425 = vadd.f32 %v415, 1.0
    %v426 = vadd.f32 %v417, 1.0
    %v427 = vadd.f32 %v419, 1.0
    %v428 = vrcp.pop %v420
    %v429 = vmul.f32 1.0, %v428
    %v430 = vrcp.pop %v421
    %v431 = vmul.f32 1.0, %v430
    %v432 = vrcp.pop %v422
    %v433 = vmul.f32 1.0, %v432
    %v434 = vrcp.pop %v423
    %v435 = vmul.f32 1.0, %v434
    %v436 = vrcp.pop %v424
    %v437 = vmul.f32 1.0, %v436
    %v438 = vrcp.pop %v425
    %v439 = vmul.f32 1.0, %v438
    %v440 = vrcp.pop %v426
    %v441 = vmul.f32 1.0, %v440
    %v442 = vrcp.pop %v427
    %v443 = vmul.f32 1.0, %v442
    %445 = vset.pattern.permute.xlu0 0
    %446 = vperm.xlu0 %445, %v429
    %v447 = vpop.permute.xlu0 %446
    %450 = vset.pattern.permute.xlu0 0
    %451 = vperm.xlu0 %450, %v431
    %v452 = vpop.permute.xlu0 %451
    %455 = vset.pattern.permute.xlu0 0
    %456 = vperm.xlu0 %455, %v433
    %v457 = vpop.permute.xlu0 %456
    %460 = vset.pattern.permute.xlu0 0
    %461 = vperm.xlu0 %460, %v435
    %v462 = vpop.permute.xlu0 %461
    %465 = vset.pattern.permute.xlu0 0
    %466 = vperm.xlu0 %465, %v437
    %v467 = vpop.permute.xlu0 %466
    %470 = vset.pattern.permute.xlu0 0
    %471 = vperm.xlu0 %470, %v439
    %v472 = vpop.permute.xlu0 %471
    %475 = vset.pattern.permute.xlu0 0
    %476 = vperm.xlu0 %475, %v441
    %v477 = vpop.permute.xlu0 %476
    %480 = vset.pattern.permute.xlu0 0
    %481 = vperm.xlu0 %480, %v443
    %v482 = vpop.permute.xlu0 %481
    %v484 = vmul.f32 %v69, %v447
    %v485 = vmul.f32 %v70, %v452
    %v486 = vmul.f32 %v71, %v457
    %v487 = vmul.f32 %v72, %v462
    %v488 = vmul.f32 %v73, %v467
    %v489 = vmul.f32 %v74, %v472
    %v490 = vmul.f32 %v75, %v477
    %v491 = vmul.f32 %v76, %v482
    %v492 = vadd.f32 %v69, %v484
    %v493 = vadd.f32 %v70, %v485
    %v494 = vadd.f32 %v71, %v486
    %v495 = vadd.f32 %v72, %v487
    %v496 = vadd.f32 %v73, %v488
    %v497 = vadd.f32 %v74, %v489
    %v498 = vadd.f32 %v75, %v490
    %v499 = vadd.f32 %v76, %v491
    %v500 = vlaneseq
    %v501 = vshrl.u32 %v500, 7
    %v502 = vsub.s32 0, %v501
    %v503 = vrot.slane %v47, %v502
    %v505 = vsel %vm77, %v492, 0
    %v508 = vsel %vm77, %v493, 0
    %v511 = vsel %vm77, %v494, 0
    %v514 = vsel %vm77, %v495, 0
    %v517 = vsel %vm77, %v496, 0
    %v520 = vsel %vm77, %v497, 0
    %v523 = vsel %vm77, %v498, 0
    %v526 = vsel %vm77, %v499, 0
    %528 = vmatprep.subr.mxu0 0.0
    %529 = vmatpush1.msra.mxu0 %v28
    %530 = vmatprep.subr.mxu0 0.0
    %531 = vmatpush1.msra.mxu0 %v29
    %532 = vmatprep.subr.mxu0 0.0
    %533 = vmatpush1.msra.mxu0 0.0
    %534 = vmatprep.subr.mxu0 0.0
    %535 = vmatpush1.msra.mxu0 0.0
    %536 = vmatprep.subr.mxu0 0.0
    %537 = vmatpush1.msra.mxu0 0.0
    %538 = vmatprep.subr.mxu0 0.0
    %539 = vmatpush1.msra.mxu0 0.0
    %540 = vmatprep.subr.mxu0 0.0
    %541 = vmatpush1.msra.mxu0 0.0
    %542 = vmatprep.subr.mxu0 0.0
    %543 = vmatpush1.msra.mxu0 0.0
    %544 = vmatprep.subr.mxu0 0.0
    %545 = vmatpush1.msra.mxu0 0.0
    %546 = vmatprep.subr.mxu0 0.0
    %547 = vmatpush1.msra.mxu0 0.0
    %548 = vmatprep.subr.mxu0 0.0
    %549 = vmatpush1.msra.mxu0 0.0
    %550 = vmatprep.subr.mxu0 0.0
    %551 = vmatpush1.msra.mxu0 0.0
    %552 = vmatprep.subr.mxu0 0.0
    %553 = vmatpush1.msra.mxu0 0.0
    %554 = vmatprep.subr.mxu0 0.0
    %555 = vmatpush1.msra.mxu0 0.0
    %556 = vmatprep.subr.mxu0 0.0
    %557 = vmatpush1.msra.mxu0 0.0
    %558 = vmatprep.subr.mxu0 0.0
    %559 = vmatpush1.msra.mxu0 0.0
    %560 = vmatprep.subr.mxu0 0.0
    %561 = vmatpush1.msra.mxu0 0.0
    %562 = vmatprep.subr.mxu0 0.0
    %563 = vmatpush1.msra.mxu0 0.0
    %564 = vmatprep.subr.mxu0 0.0
    %565 = vmatpush1.msra.mxu0 0.0
    %566 = vmatprep.subr.mxu0 0.0
    %567 = vmatpush1.msra.mxu0 0.0
    %568 = vmatprep.subr.mxu0 0.0
    %569 = vmatpush1.msra.mxu0 0.0
    %570 = vmatprep.subr.mxu0 0.0
    %571 = vmatpush1.msra.mxu0 0.0
    %572 = vmatprep.subr.mxu0 0.0
    %573 = vmatpush1.msra.mxu0 0.0
    %574 = vmatprep.subr.mxu0 0.0
    %575 = vmatpush1.msra.mxu0 0.0
    %576 = vmatprep.subr.mxu0 0.0
    %577 = vmatpush1.msra.mxu0 0.0
    %578 = vmatprep.subr.mxu0 0.0
    %579 = vmatpush1.msra.mxu0 0.0
    %580 = vmatprep.subr.mxu0 0.0
    %581 = vmatpush1.msra.mxu0 0.0
    %582 = vmatprep.subr.mxu0 0.0
    %583 = vmatpush1.msra.mxu0 0.0
    %584 = vmatprep.subr.mxu0 0.0
    %585 = vmatpush1.msra.mxu0 0.0
    %586 = vmatprep.subr.mxu0 0.0
    %587 = vmatpush1.msra.mxu0 0.0
    %588 = vmatprep.subr.mxu0 0.0
    %589 = vmatpush1.msra.mxu0 0.0
    %590 = vmatprep.subr.mxu0 0.0
    %591 = vmatpush1.msra.mxu0 0.0
    %592 = vmatprep.mubr.f32.mxu0 0.0
    %593 = vmatmul.mubr.f32.gmra.mrb[0].mxu0 %v505
    %v594 = vpop.f32.mrb[0].mxu0
    %v595 = vadd.f32 %v503, %v594
    %v596 = vpop.f32.mrb[0].mxu0
    %597 = vmatprep.mubr.f32.mxu0 0.0
    %598 = vmatmul.mubr.f32.gmra.mrb[0].mxu0 %v508
    %v599 = vpop.f32.mrb[0].mxu0
    %v600 = vadd.f32 %v503, %v599
    %v601 = vpop.f32.mrb[0].mxu0
    %602 = vmatprep.mubr.f32.mxu0 0.0
    %603 = vmatmul.mubr.f32.gmra.mrb[0].mxu0 %v511
    %v604 = vpop.f32.mrb[0].mxu0
    %v605 = vadd.f32 %v503, %v604
    %v606 = vpop.f32.mrb[0].mxu0
    %607 = vmatprep.mubr.f32.mxu0 0.0
    %608 = vmatmul.mubr.f32.gmra.mrb[0].mxu0 %v514
    %v609 = vpop.f32.mrb[0].mxu0
    %v610 = vadd.f32 %v503, %v609
    %v611 = vpop.f32.mrb[0].mxu0
    %612 = vmatprep.mubr.f32.mxu0 0.0
    %613 = vmatmul.mubr.f32.gmra.mrb[0].mxu0 %v517
    %v614 = vpop.f32.mrb[0].mxu0
    %v615 = vadd.f32 %v503, %v614
    %v616 = vpop.f32.mrb[0].mxu0
    %617 = vmatprep.mubr.f32.mxu0 0.0
    %618 = vmatmul.mubr.f32.gmra.mrb[0].mxu0 %v520
    %v619 = vpop.f32.mrb[0].mxu0
    %v620 = vadd.f32 %v503, %v619
    %v621 = vpop.f32.mrb[0].mxu0
    %622 = vmatprep.mubr.f32.mxu0 0.0
    %623 = vmatmul.mubr.f32.gmra.mrb[0].mxu0 %v523
    %v624 = vpop.f32.mrb[0].mxu0
    %v625 = vadd.f32 %v503, %v624
    %v626 = vpop.f32.mrb[0].mxu0
    %627 = vmatprep.mubr.f32.mxu0 0.0
    %628 = vmatmul.mubr.f32.gmra.mrb[0].mxu0 %v526
    %v629 = vpop.f32.mrb[0].mxu0
    %v630 = vadd.f32 %v503, %v629
    %v631 = vpop.f32.mrb[0].mxu0
    %632 = vdwg.mxu0
    %vm633 = vcmask 261120
    %v634 = vsel %vm633, %v595, 0.0
    %635 = vadd.xlane.f32.xlu0 %v634
    %v636 = vpop.xlane.xlu0 %635
    %v637 = vsel %vm633, %v600, 0.0
    %638 = vadd.xlane.f32.xlu0 %v637
    %v639 = vpop.xlane.xlu0 %638
    %v640 = vsel %vm633, %v605, 0.0
    %641 = vadd.xlane.f32.xlu0 %v640
    %v642 = vpop.xlane.xlu0 %641
    %v643 = vsel %vm633, %v610, 0.0
    %644 = vadd.xlane.f32.xlu0 %v643
    %v645 = vpop.xlane.xlu0 %644
    %v646 = vsel %vm633, %v615, 0.0
    %647 = vadd.xlane.f32.xlu0 %v646
    %v648 = vpop.xlane.xlu0 %647
    %v649 = vsel %vm633, %v620, 0.0
    %650 = vadd.xlane.f32.xlu0 %v649
    %v651 = vpop.xlane.xlu0 %650
    %v652 = vsel %vm633, %v625, 0.0
    %653 = vadd.xlane.f32.xlu0 %v652
    %v654 = vpop.xlane.xlu0 %653
    %v655 = vsel %vm633, %v630, 0.0
    %656 = vadd.xlane.f32.xlu0 %v655
    %v657 = vpop.xlane.xlu0 %656
    %v658 = vrcp.pop 32.0
    %v659 = vmul.f32 %v636, %v658
    %v660 = vmul.f32 %v639, %v658
    %v661 = vmul.f32 %v642, %v658
    %v662 = vmul.f32 %v645, %v658
    %v663 = vmul.f32 %v648, %v658
    %v664 = vmul.f32 %v651, %v658
    %v665 = vmul.f32 %v654, %v658
    %v666 = vmul.f32 %v657, %v658
    %v667 = vsub.f32 %v595, %v659
    %v668 = vsub.f32 %v600, %v660
    %v669 = vsub.f32 %v605, %v661
    %v670 = vsub.f32 %v610, %v662
    %v671 = vsub.f32 %v615, %v663
    %v672 = vsub.f32 %v620, %v664
    %v673 = vsub.f32 %v625, %v665
    %v674 = vsub.f32 %v630, %v666
    %v675 = vmul.f32 %v667, %v667
    %v676 = vmul.f32 %v668, %v668
    %v677 = vmul.f32 %v669, %v669
    %v678 = vmul.f32 %v670, %v670
    %v679 = vmul.f32 %v671, %v671
    %v680 = vmul.f32 %v672, %v672
    %v681 = vmul.f32 %v673, %v673
    %v682 = vmul.f32 %v674, %v674
    %v683 = vsel %vm633, %v675, 0.0
    %684 = vadd.xlane.f32.xlu0 %v683
    %v685 = vpop.xlane.xlu0 %684
    %v686 = vsel %vm633, %v676, 0.0
    %687 = vadd.xlane.f32.xlu0 %v686
    %v688 = vpop.xlane.xlu0 %687
    %v689 = vsel %vm633, %v677, 0.0
    %690 = vadd.xlane.f32.xlu0 %v689
    %v691 = vpop.xlane.xlu0 %690
    %v692 = vsel %vm633, %v678, 0.0
    %693 = vadd.xlane.f32.xlu0 %v692
    %v694 = vpop.xlane.xlu0 %693
    %v695 = vsel %vm633, %v679, 0.0
    %696 = vadd.xlane.f32.xlu0 %v695
    %v697 = vpop.xlane.xlu0 %696
    %v698 = vsel %vm633, %v680, 0.0
    %699 = vadd.xlane.f32.xlu0 %v698
    %v700 = vpop.xlane.xlu0 %699
    %v701 = vsel %vm633, %v681, 0.0
    %702 = vadd.xlane.f32.xlu0 %v701
    %v703 = vpop.xlane.xlu0 %702
    %v704 = vsel %vm633, %v682, 0.0
    %705 = vadd.xlane.f32.xlu0 %v704
    %v706 = vpop.xlane.xlu0 %705
    %v707 = vmul.f32 %v685, %v658
    %v708 = vmul.f32 %v688, %v658
    %v709 = vmul.f32 %v691, %v658
    %v710 = vmul.f32 %v694, %v658
    %v711 = vmul.f32 %v697, %v658
    %v712 = vmul.f32 %v700, %v658
    %v713 = vmul.f32 %v703, %v658
    %v714 = vmul.f32 %v706, %v658
    %v715 = vadd.f32 %v707, 1e-05
    %v716 = vadd.f32 %v708, 1e-05
    %v717 = vadd.f32 %v709, 1e-05
    %v718 = vadd.f32 %v710, 1e-05
    %v719 = vadd.f32 %v711, 1e-05
    %v720 = vadd.f32 %v712, 1e-05
    %v721 = vadd.f32 %v713, 1e-05
    %v722 = vadd.f32 %v714, 1e-05
    %v723 = vrsqrt.pop %v715
    %v724 = vrsqrt.pop %v716
    %v725 = vrsqrt.pop %v717
    %v726 = vrsqrt.pop %v718
    %v727 = vrsqrt.pop %v719
    %v728 = vrsqrt.pop %v720
    %v729 = vrsqrt.pop %v721
    %v730 = vrsqrt.pop %v722
    %v731 = vmul.f32 %v667, %v723
    %v732 = vmul.f32 %v668, %v724
    %v733 = vmul.f32 %v669, %v725
    %v734 = vmul.f32 %v670, %v726
    %v735 = vmul.f32 %v671, %v727
    %v736 = vmul.f32 %v672, %v728
    %v737 = vmul.f32 %v673, %v729
    %v738 = vmul.f32 %v674, %v730
    %v739 = vlaneseq
    %v740 = vshrl.u32 %v739, 7
    %v741 = vsub.s32 0, %v740
    %v742 = vrot.slane %v48, %v741
    %v743 = vmul.f32 %v731, %v742
    %v744 = vmul.f32 %v732, %v742
    %v745 = vmul.f32 %v733, %v742
    %v746 = vmul.f32 %v734, %v742
    %v747 = vmul.f32 %v735, %v742
    %v748 = vmul.f32 %v736, %v742
    %v749 = vmul.f32 %v737, %v742
    %v750 = vmul.f32 %v738, %v742
    %v751 = vlaneseq
    %v752 = vshrl.u32 %v751, 7
    %v753 = vsub.s32 0, %v752
    %v754 = vrot.slane %v49, %v753
    %v755 = vadd.f32 %v743, %v754
    %v756 = vadd.f32 %v744, %v754
    %v757 = vadd.f32 %v745, %v754
    %v758 = vadd.f32 %v746, %v754
    %v759 = vadd.f32 %v747, %v754
    %v760 = vadd.f32 %v748, %v754
    %v761 = vadd.f32 %v749, %v754
    %v762 = vadd.f32 %v750, %v754
    %v763 = vmax.f32 %v755, 0.0
    %v764 = vmax.f32 %v756, 0.0
    %v765 = vmax.f32 %v757, 0.0
    %v766 = vmax.f32 %v758, 0.0
    %v767 = vmax.f32 %v759, 0.0
    %v768 = vmax.f32 %v760, 0.0
    %v769 = vmax.f32 %v761, 0.0
    %v770 = vmax.f32 %v762, 0.0
    %v771 = vlaneseq
    %v772 = vshrl.u32 %v771, 7
    %v773 = vsub.s32 0, %v772
    %v774 = vrot.slane %v50, %v773
    %v776 = vsel %vm633, %v763, 0
    %v779 = vsel %vm633, %v764, 0
    %v782 = vsel %vm633, %v765, 0
    %v785 = vsel %vm633, %v766, 0
    %v788 = vsel %vm633, %v767, 0
    %v791 = vsel %vm633, %v768, 0
    %v794 = vsel %vm633, %v769, 0
    %v797 = vsel %vm633, %v770, 0
    %799 = vmatprep.subr.mxu0 0.0
    %800 = vmatpush1.msra.mxu0 %v30
    %801 = vmatprep.subr.mxu0 0.0
    %802 = vmatpush1.msra.mxu0 %v31
    %803 = vmatprep.subr.mxu0 0.0
    %804 = vmatpush1.msra.mxu0 %v32
    %805 = vmatprep.subr.mxu0 0.0
    %806 = vmatpush1.msra.mxu0 %v33
    %807 = vmatprep.subr.mxu0 0.0
    %808 = vmatpush1.msra.mxu0 0.0
    %809 = vmatprep.subr.mxu0 0.0
    %810 = vmatpush1.msra.mxu0 0.0
    %811 = vmatprep.subr.mxu0 0.0
    %812 = vmatpush1.msra.mxu0 0.0
    %813 = vmatprep.subr.mxu0 0.0
    %814 = vmatpush1.msra.mxu0 0.0
    %815 = vmatprep.subr.mxu0 0.0
    %816 = vmatpush1.msra.mxu0 0.0
    %817 = vmatprep.subr.mxu0 0.0
    %818 = vmatpush1.msra.mxu0 0.0
    %819 = vmatprep.subr.mxu0 0.0
    %820 = vmatpush1.msra.mxu0 0.0
    %821 = vmatprep.subr.mxu0 0.0
    %822 = vmatpush1.msra.mxu0 0.0
    %823 = vmatprep.subr.mxu0 0.0
    %824 = vmatpush1.msra.mxu0 0.0
    %825 = vmatprep.subr.mxu0 0.0
    %826 = vmatpush1.msra.mxu0 0.0
    %827 = vmatprep.subr.mxu0 0.0
    %828 = vmatpush1.msra.mxu0 0.0
    %829 = vmatprep.subr.mxu0 0.0
    %830 = vmatpush1.msra.mxu0 0.0
    %831 = vmatprep.subr.mxu0 0.0
    %832 = vmatpush1.msra.mxu0 0.0
    %833 = vmatprep.subr.mxu0 0.0
    %834 = vmatpush1.msra.mxu0 0.0
    %835 = vmatprep.subr.mxu0 0.0
    %836 = vmatpush1.msra.mxu0 0.0
    %837 = vmatprep.subr.mxu0 0.0
    %838 = vmatpush1.msra.mxu0 0.0
    %839 = vmatprep.subr.mxu0 0.0
    %840 = vmatpush1.msra.mxu0 0.0
    %841 = vmatprep.subr.mxu0 0.0
    %842 = vmatpush1.msra.mxu0 0.0
    %843 = vmatprep.subr.mxu0 0.0
    %844 = vmatpush1.msra.mxu0 0.0
    %845 = vmatprep.subr.mxu0 0.0
    %846 = vmatpush1.msra.mxu0 0.0
    %847 = vmatprep.subr.mxu0 0.0
    %848 = vmatpush1.msra.mxu0 0.0
    %849 = vmatprep.subr.mxu0 0.0
    %850 = vmatpush1.msra.mxu0 0.0
    %851 = vmatprep.subr.mxu0 0.0
    %852 = vmatpush1.msra.mxu0 0.0
    %853 = vmatprep.subr.mxu0 0.0
    %854 = vmatpush1.msra.mxu0 0.0
    %855 = vmatprep.subr.mxu0 0.0
    %856 = vmatpush1.msra.mxu0 0.0
    %857 = vmatprep.subr.mxu0 0.0
    %858 = vmatpush1.msra.mxu0 0.0
    %859 = vmatprep.subr.mxu0 0.0
    %860 = vmatpush1.msra.mxu0 0.0
    %861 = vmatprep.subr.mxu0 0.0
    %862 = vmatpush1.msra.mxu0 0.0
    %863 = vmatprep.mubr.f32.mxu0 0.0
    %864 = vmatmul.mubr.f32.gmra.mrb[0].mxu0 %v776
    %v865 = vpop.f32.mrb[0].mxu0
    %v866 = vadd.f32 %v774, %v865
    %v867 = vpop.f32.mrb[0].mxu0
    %868 = vmatprep.mubr.f32.mxu0 0.0
    %869 = vmatmul.mubr.f32.gmra.mrb[0].mxu0 %v779
    %v870 = vpop.f32.mrb[0].mxu0
    %v871 = vadd.f32 %v774, %v870
    %v872 = vpop.f32.mrb[0].mxu0
    %873 = vmatprep.mubr.f32.mxu0 0.0
    %874 = vmatmul.mubr.f32.gmra.mrb[0].mxu0 %v782
    %v875 = vpop.f32.mrb[0].mxu0
    %v876 = vadd.f32 %v774, %v875
    %v877 = vpop.f32.mrb[0].mxu0
    %878 = vmatprep.mubr.f32.mxu0 0.0
    %879 = vmatmul.mubr.f32.gmra.mrb[0].mxu0 %v785
    %v880 = vpop.f32.mrb[0].mxu0
    %v881 = vadd.f32 %v774, %v880
    %v882 = vpop.f32.mrb[0].mxu0
    %883 = vmatprep.mubr.f32.mxu0 0.0
    %884 = vmatmul.mubr.f32.gmra.mrb[0].mxu0 %v788
    %v885 = vpop.f32.mrb[0].mxu0
    %v886 = vadd.f32 %v774, %v885
    %v887 = vpop.f32.mrb[0].mxu0
    %888 = vmatprep.mubr.f32.mxu0 0.0
    %889 = vmatmul.mubr.f32.gmra.mrb[0].mxu0 %v791
    %v890 = vpop.f32.mrb[0].mxu0
    %v891 = vadd.f32 %v774, %v890
    %v892 = vpop.f32.mrb[0].mxu0
    %893 = vmatprep.mubr.f32.mxu0 0.0
    %894 = vmatmul.mubr.f32.gmra.mrb[0].mxu0 %v794
    %v895 = vpop.f32.mrb[0].mxu0
    %v896 = vadd.f32 %v774, %v895
    %v897 = vpop.f32.mrb[0].mxu0
    %898 = vmatprep.mubr.f32.mxu0 0.0
    %899 = vmatmul.mubr.f32.gmra.mrb[0].mxu0 %v797
    %v900 = vpop.f32.mrb[0].mxu0
    %v901 = vadd.f32 %v774, %v900
    %v902 = vpop.f32.mrb[0].mxu0
    %903 = vdwg.mxu0
    %v904 = vsel %vm633, %v866, 0.0
    %905 = vadd.xlane.f32.xlu0 %v904
    %v906 = vpop.xlane.xlu0 %905
    %v907 = vsel %vm633, %v871, 0.0
    %908 = vadd.xlane.f32.xlu0 %v907
    %v909 = vpop.xlane.xlu0 %908
    %v910 = vsel %vm633, %v876, 0.0
    %911 = vadd.xlane.f32.xlu0 %v910
    %v912 = vpop.xlane.xlu0 %911
    %v913 = vsel %vm633, %v881, 0.0
    %914 = vadd.xlane.f32.xlu0 %v913
    %v915 = vpop.xlane.xlu0 %914
    %v916 = vsel %vm633, %v886, 0.0
    %917 = vadd.xlane.f32.xlu0 %v916
    %v918 = vpop.xlane.xlu0 %917
    %v919 = vsel %vm633, %v891, 0.0
    %920 = vadd.xlane.f32.xlu0 %v919
    %v921 = vpop.xlane.xlu0 %920
    %v922 = vsel %vm633, %v896, 0.0
    %923 = vadd.xlane.f32.xlu0 %v922
    %v924 = vpop.xlane.xlu0 %923
    %v925 = vsel %vm633, %v901, 0.0
    %926 = vadd.xlane.f32.xlu0 %v925
    %v927 = vpop.xlane.xlu0 %926
    %v928 = vmul.f32 %v906, %v658
    %v929 = vmul.f32 %v909, %v658
    %v930 = vmul.f32 %v912, %v658
    %v931 = vmul.f32 %v915, %v658
    %v932 = vmul.f32 %v918, %v658
    %v933 = vmul.f32 %v921, %v658
    %v934 = vmul.f32 %v924, %v658
    %v935 = vmul.f32 %v927, %v658
    %v936 = vsub.f32 %v866, %v928
    %v937 = vsub.f32 %v871, %v929
    %v938 = vsub.f32 %v876, %v930
    %v939 = vsub.f32 %v881, %v931
    %v940 = vsub.f32 %v886, %v932
    %v941 = vsub.f32 %v891, %v933
    %v942 = vsub.f32 %v896, %v934
    %v943 = vsub.f32 %v901, %v935
    %v944 = vmul.f32 %v936, %v936
    %v945 = vmul.f32 %v937, %v937
    %v946 = vmul.f32 %v938, %v938
    %v947 = vmul.f32 %v939, %v939
    %v948 = vmul.f32 %v940, %v940
    %v949 = vmul.f32 %v941, %v941
    %v950 = vmul.f32 %v942, %v942
    %v951 = vmul.f32 %v943, %v943
    %v952 = vsel %vm633, %v944, 0.0
    %953 = vadd.xlane.f32.xlu0 %v952
    %v954 = vpop.xlane.xlu0 %953
    %v955 = vsel %vm633, %v945, 0.0
    %956 = vadd.xlane.f32.xlu0 %v955
    %v957 = vpop.xlane.xlu0 %956
    %v958 = vsel %vm633, %v946, 0.0
    %959 = vadd.xlane.f32.xlu0 %v958
    %v960 = vpop.xlane.xlu0 %959
    %v961 = vsel %vm633, %v947, 0.0
    %962 = vadd.xlane.f32.xlu0 %v961
    %v963 = vpop.xlane.xlu0 %962
    %v964 = vsel %vm633, %v948, 0.0
    %965 = vadd.xlane.f32.xlu0 %v964
    %v966 = vpop.xlane.xlu0 %965
    %v967 = vsel %vm633, %v949, 0.0
    %968 = vadd.xlane.f32.xlu0 %v967
    %v969 = vpop.xlane.xlu0 %968
    %v970 = vsel %vm633, %v950, 0.0
    %971 = vadd.xlane.f32.xlu0 %v970
    %v972 = vpop.xlane.xlu0 %971
    %v973 = vsel %vm633, %v951, 0.0
    %974 = vadd.xlane.f32.xlu0 %v973
    %v975 = vpop.xlane.xlu0 %974
    %v976 = vmul.f32 %v954, %v658
    %v977 = vmul.f32 %v957, %v658
    %v978 = vmul.f32 %v960, %v658
    %v979 = vmul.f32 %v963, %v658
    %v980 = vmul.f32 %v966, %v658
    %v981 = vmul.f32 %v969, %v658
    %v982 = vmul.f32 %v972, %v658
    %v983 = vmul.f32 %v975, %v658
    %v984 = vadd.f32 %v976, 1e-05
    %v985 = vadd.f32 %v977, 1e-05
    %v986 = vadd.f32 %v978, 1e-05
    %v987 = vadd.f32 %v979, 1e-05
    %v988 = vadd.f32 %v980, 1e-05
    %v989 = vadd.f32 %v981, 1e-05
    %v990 = vadd.f32 %v982, 1e-05
    %v991 = vadd.f32 %v983, 1e-05
    %v992 = vrsqrt.pop %v984
    %v993 = vrsqrt.pop %v985
    %v994 = vrsqrt.pop %v986
    %v995 = vrsqrt.pop %v987
    %v996 = vrsqrt.pop %v988
    %v997 = vrsqrt.pop %v989
    %v998 = vrsqrt.pop %v990
    %v999 = vrsqrt.pop %v991
    %v1000 = vmul.f32 %v936, %v992
    %v1001 = vmul.f32 %v937, %v993
    %v1002 = vmul.f32 %v938, %v994
    %v1003 = vmul.f32 %v939, %v995
    %v1004 = vmul.f32 %v940, %v996
    %v1005 = vmul.f32 %v941, %v997
    %v1006 = vmul.f32 %v942, %v998
    %v1007 = vmul.f32 %v943, %v999
    %v1008 = vlaneseq
    %v1009 = vshrl.u32 %v1008, 7
    %v1010 = vsub.s32 0, %v1009
    %v1011 = vrot.slane %v51, %v1010
    %v1012 = vmul.f32 %v1000, %v1011
    %v1013 = vmul.f32 %v1001, %v1011
    %v1014 = vmul.f32 %v1002, %v1011
    %v1015 = vmul.f32 %v1003, %v1011
    %v1016 = vmul.f32 %v1004, %v1011
    %v1017 = vmul.f32 %v1005, %v1011
    %v1018 = vmul.f32 %v1006, %v1011
    %v1019 = vmul.f32 %v1007, %v1011
    %v1020 = vlaneseq
    %v1021 = vshrl.u32 %v1020, 7
    %v1022 = vsub.s32 0, %v1021
    %v1023 = vrot.slane %v52, %v1022
    %v1024 = vadd.f32 %v1012, %v1023
    %v1025 = vadd.f32 %v1013, %v1023
    %v1026 = vadd.f32 %v1014, %v1023
    %v1027 = vadd.f32 %v1015, %v1023
    %v1028 = vadd.f32 %v1016, %v1023
    %v1029 = vadd.f32 %v1017, %v1023
    %v1030 = vadd.f32 %v1018, %v1023
    %v1031 = vadd.f32 %v1019, %v1023
    %v1032 = vmax.f32 %v1024, 0.0
    %v1033 = vmax.f32 %v1025, 0.0
    %v1034 = vmax.f32 %v1026, 0.0
    %v1035 = vmax.f32 %v1027, 0.0
    %v1036 = vmax.f32 %v1028, 0.0
    %v1037 = vmax.f32 %v1029, 0.0
    %v1038 = vmax.f32 %v1030, 0.0
    %v1039 = vmax.f32 %v1031, 0.0
    %v1040 = vlaneseq
    %v1041 = vshrl.u32 %v1040, 7
    %v1042 = vsub.s32 0, %v1041
    %v1043 = vrot.slane %v53, %v1042
    %v1045 = vsel %vm633, %v1032, 0
    %v1048 = vsel %vm633, %v1033, 0
    %v1051 = vsel %vm633, %v1034, 0
    %v1054 = vsel %vm633, %v1035, 0
    %v1057 = vsel %vm633, %v1036, 0
    %v1060 = vsel %vm633, %v1037, 0
    %v1063 = vsel %vm633, %v1038, 0
    %v1066 = vsel %vm633, %v1039, 0
    %1068 = vmatprep.subr.mxu0 0.0
    %1069 = vmatpush1.msra.mxu0 %v34
    %1070 = vmatprep.subr.mxu0 0.0
    %1071 = vmatpush1.msra.mxu0 %v35
    %1072 = vmatprep.subr.mxu0 0.0
    %1073 = vmatpush1.msra.mxu0 %v36
    %1074 = vmatprep.subr.mxu0 0.0
    %1075 = vmatpush1.msra.mxu0 %v37
    %1076 = vmatprep.subr.mxu0 0.0
    %1077 = vmatpush1.msra.mxu0 0.0
    %1078 = vmatprep.subr.mxu0 0.0
    %1079 = vmatpush1.msra.mxu0 0.0
    %1080 = vmatprep.subr.mxu0 0.0
    %1081 = vmatpush1.msra.mxu0 0.0
    %1082 = vmatprep.subr.mxu0 0.0
    %1083 = vmatpush1.msra.mxu0 0.0
    %1084 = vmatprep.subr.mxu0 0.0
    %1085 = vmatpush1.msra.mxu0 0.0
    %1086 = vmatprep.subr.mxu0 0.0
    %1087 = vmatpush1.msra.mxu0 0.0
    %1088 = vmatprep.subr.mxu0 0.0
    %1089 = vmatpush1.msra.mxu0 0.0
    %1090 = vmatprep.subr.mxu0 0.0
    %1091 = vmatpush1.msra.mxu0 0.0
    %1092 = vmatprep.subr.mxu0 0.0
    %1093 = vmatpush1.msra.mxu0 0.0
    %1094 = vmatprep.subr.mxu0 0.0
    %1095 = vmatpush1.msra.mxu0 0.0
    %1096 = vmatprep.subr.mxu0 0.0
    %1097 = vmatpush1.msra.mxu0 0.0
    %1098 = vmatprep.subr.mxu0 0.0
    %1099 = vmatpush1.msra.mxu0 0.0
    %1100 = vmatprep.subr.mxu0 0.0
    %1101 = vmatpush1.msra.mxu0 0.0
    %1102 = vmatprep.subr.mxu0 0.0
    %1103 = vmatpush1.msra.mxu0 0.0
    %1104 = vmatprep.subr.mxu0 0.0
    %1105 = vmatpush1.msra.mxu0 0.0
    %1106 = vmatprep.subr.mxu0 0.0
    %1107 = vmatpush1.msra.mxu0 0.0
    %1108 = vmatprep.subr.mxu0 0.0
    %1109 = vmatpush1.msra.mxu0 0.0
    %1110 = vmatprep.subr.mxu0 0.0
    %1111 = vmatpush1.msra.mxu0 0.0
    %1112 = vmatprep.subr.mxu0 0.0
    %1113 = vmatpush1.msra.mxu0 0.0
    %1114 = vmatprep.subr.mxu0 0.0
    %1115 = vmatpush1.msra.mxu0 0.0
    %1116 = vmatprep.subr.mxu0 0.0
    %1117 = vmatpush1.msra.mxu0 0.0
    %1118 = vmatprep.subr.mxu0 0.0
    %1119 = vmatpush1.msra.mxu0 0.0
    %1120 = vmatprep.subr.mxu0 0.0
    %1121 = vmatpush1.msra.mxu0 0.0
    %1122 = vmatprep.subr.mxu0 0.0
    %1123 = vmatpush1.msra.mxu0 0.0
    %1124 = vmatprep.subr.mxu0 0.0
    %1125 = vmatpush1.msra.mxu0 0.0
    %1126 = vmatprep.subr.mxu0 0.0
    %1127 = vmatpush1.msra.mxu0 0.0
    %1128 = vmatprep.subr.mxu0 0.0
    %1129 = vmatpush1.msra.mxu0 0.0
    %1130 = vmatprep.subr.mxu0 0.0
    %1131 = vmatpush1.msra.mxu0 0.0
    %1132 = vmatprep.mubr.f32.mxu0 0.0
    %1133 = vmatmul.mubr.f32.gmra.mrb[0].mxu0 %v1045
    %v1134 = vpop.f32.mrb[0].mxu0
    %v1135 = vadd.f32 %v1043, %v1134
    %v1136 = vpop.f32.mrb[0].mxu0
    %1137 = vmatprep.mubr.f32.mxu0 0.0
    %1138 = vmatmul.mubr.f32.gmra.mrb[0].mxu0 %v1048
    %v1139 = vpop.f32.mrb[0].mxu0
    %v1140 = vadd.f32 %v1043, %v1139
    %v1141 = vpop.f32.mrb[0].mxu0
    %1142 = vmatprep.mubr.f32.mxu0 0.0
    %1143 = vmatmul.mubr.f32.gmra.mrb[0].mxu0 %v1051
    %v1144 = vpop.f32.mrb[0].mxu0
    %v1145 = vadd.f32 %v1043, %v1144
    %v1146 = vpop.f32.mrb[0].mxu0
    %1147 = vmatprep.mubr.f32.mxu0 0.0
    %1148 = vmatmul.mubr.f32.gmra.mrb[0].mxu0 %v1054
    %v1149 = vpop.f32.mrb[0].mxu0
    %v1150 = vadd.f32 %v1043, %v1149
    %v1151 = vpop.f32.mrb[0].mxu0
    %1152 = vmatprep.mubr.f32.mxu0 0.0
    %1153 = vmatmul.mubr.f32.gmra.mrb[0].mxu0 %v1057
    %v1154 = vpop.f32.mrb[0].mxu0
    %v1155 = vadd.f32 %v1043, %v1154
    %v1156 = vpop.f32.mrb[0].mxu0
    %1157 = vmatprep.mubr.f32.mxu0 0.0
    %1158 = vmatmul.mubr.f32.gmra.mrb[0].mxu0 %v1060
    %v1159 = vpop.f32.mrb[0].mxu0
    %v1160 = vadd.f32 %v1043, %v1159
    %v1161 = vpop.f32.mrb[0].mxu0
    %1162 = vmatprep.mubr.f32.mxu0 0.0
    %1163 = vmatmul.mubr.f32.gmra.mrb[0].mxu0 %v1063
    %v1164 = vpop.f32.mrb[0].mxu0
    %v1165 = vadd.f32 %v1043, %v1164
    %v1166 = vpop.f32.mrb[0].mxu0
    %1167 = vmatprep.mubr.f32.mxu0 0.0
    %1168 = vmatmul.mubr.f32.gmra.mrb[0].mxu0 %v1066
    %v1169 = vpop.f32.mrb[0].mxu0
    %v1170 = vadd.f32 %v1043, %v1169
    %v1171 = vpop.f32.mrb[0].mxu0
    %1172 = vdwg.mxu0
    %v1173 = vadd.f32 %v1135, %v763
    %v1174 = vadd.f32 %v1140, %v764
    %v1175 = vadd.f32 %v1145, %v765
    %v1176 = vadd.f32 %v1150, %v766
    %v1177 = vadd.f32 %v1155, %v767
    %v1178 = vadd.f32 %v1160, %v768
    %v1179 = vadd.f32 %v1165, %v769
    %v1180 = vadd.f32 %v1170, %v770
    %v1181 = vsel %vm633, %v1173, 0.0
    %1182 = vadd.xlane.f32.xlu0 %v1181
    %v1183 = vpop.xlane.xlu0 %1182
    %v1184 = vsel %vm633, %v1174, 0.0
    %1185 = vadd.xlane.f32.xlu0 %v1184
    %v1186 = vpop.xlane.xlu0 %1185
    %v1187 = vsel %vm633, %v1175, 0.0
    %1188 = vadd.xlane.f32.xlu0 %v1187
    %v1189 = vpop.xlane.xlu0 %1188
    %v1190 = vsel %vm633, %v1176, 0.0
    %1191 = vadd.xlane.f32.xlu0 %v1190
    %v1192 = vpop.xlane.xlu0 %1191
    %v1193 = vsel %vm633, %v1177, 0.0
    %1194 = vadd.xlane.f32.xlu0 %v1193
    %v1195 = vpop.xlane.xlu0 %1194
    %v1196 = vsel %vm633, %v1178, 0.0
    %1197 = vadd.xlane.f32.xlu0 %v1196
    %v1198 = vpop.xlane.xlu0 %1197
    %v1199 = vsel %vm633, %v1179, 0.0
    %1200 = vadd.xlane.f32.xlu0 %v1199
    %v1201 = vpop.xlane.xlu0 %1200
    %v1202 = vsel %vm633, %v1180, 0.0
    %1203 = vadd.xlane.f32.xlu0 %v1202
    %v1204 = vpop.xlane.xlu0 %1203
    %v1205 = vmul.f32 %v1183, %v658
    %v1206 = vmul.f32 %v1186, %v658
    %v1207 = vmul.f32 %v1189, %v658
    %v1208 = vmul.f32 %v1192, %v658
    %v1209 = vmul.f32 %v1195, %v658
    %v1210 = vmul.f32 %v1198, %v658
    %v1211 = vmul.f32 %v1201, %v658
    %v1212 = vmul.f32 %v1204, %v658
    %v1213 = vsub.f32 %v1173, %v1205
    %v1214 = vsub.f32 %v1174, %v1206
    %v1215 = vsub.f32 %v1175, %v1207
    %v1216 = vsub.f32 %v1176, %v1208
    %v1217 = vsub.f32 %v1177, %v1209
    %v1218 = vsub.f32 %v1178, %v1210
    %v1219 = vsub.f32 %v1179, %v1211
    %v1220 = vsub.f32 %v1180, %v1212
    %v1221 = vmul.f32 %v1213, %v1213
    %v1222 = vmul.f32 %v1214, %v1214
    %v1223 = vmul.f32 %v1215, %v1215
    %v1224 = vmul.f32 %v1216, %v1216
    %v1225 = vmul.f32 %v1217, %v1217
    %v1226 = vmul.f32 %v1218, %v1218
    %v1227 = vmul.f32 %v1219, %v1219
    %v1228 = vmul.f32 %v1220, %v1220
    %v1229 = vsel %vm633, %v1221, 0.0
    %1230 = vadd.xlane.f32.xlu0 %v1229
    %v1231 = vpop.xlane.xlu0 %1230
    %v1232 = vsel %vm633, %v1222, 0.0
    %1233 = vadd.xlane.f32.xlu0 %v1232
    %v1234 = vpop.xlane.xlu0 %1233
    %v1235 = vsel %vm633, %v1223, 0.0
    %1236 = vadd.xlane.f32.xlu0 %v1235
    %v1237 = vpop.xlane.xlu0 %1236
    %v1238 = vsel %vm633, %v1224, 0.0
    %1239 = vadd.xlane.f32.xlu0 %v1238
    %v1240 = vpop.xlane.xlu0 %1239
    %v1241 = vsel %vm633, %v1225, 0.0
    %1242 = vadd.xlane.f32.xlu0 %v1241
    %v1243 = vpop.xlane.xlu0 %1242
    %v1244 = vsel %vm633, %v1226, 0.0
    %1245 = vadd.xlane.f32.xlu0 %v1244
    %v1246 = vpop.xlane.xlu0 %1245
    %v1247 = vsel %vm633, %v1227, 0.0
    %1248 = vadd.xlane.f32.xlu0 %v1247
    %v1249 = vpop.xlane.xlu0 %1248
    %v1250 = vsel %vm633, %v1228, 0.0
    %1251 = vadd.xlane.f32.xlu0 %v1250
    %v1252 = vpop.xlane.xlu0 %1251
    %v1253 = vmul.f32 %v1231, %v658
    %v1254 = vmul.f32 %v1234, %v658
    %v1255 = vmul.f32 %v1237, %v658
    %v1256 = vmul.f32 %v1240, %v658
    %v1257 = vmul.f32 %v1243, %v658
    %v1258 = vmul.f32 %v1246, %v658
    %v1259 = vmul.f32 %v1249, %v658
    %v1260 = vmul.f32 %v1252, %v658
    %v1261 = vadd.f32 %v1253, 1e-05
    %v1262 = vadd.f32 %v1254, 1e-05
    %v1263 = vadd.f32 %v1255, 1e-05
    %v1264 = vadd.f32 %v1256, 1e-05
    %v1265 = vadd.f32 %v1257, 1e-05
    %v1266 = vadd.f32 %v1258, 1e-05
    %v1267 = vadd.f32 %v1259, 1e-05
    %v1268 = vadd.f32 %v1260, 1e-05
    %v1269 = vrsqrt.pop %v1261
    %v1270 = vrsqrt.pop %v1262
    %v1271 = vrsqrt.pop %v1263
    %v1272 = vrsqrt.pop %v1264
    %v1273 = vrsqrt.pop %v1265
    %v1274 = vrsqrt.pop %v1266
    %v1275 = vrsqrt.pop %v1267
    %v1276 = vrsqrt.pop %v1268
    %v1277 = vmul.f32 %v1213, %v1269
    %v1278 = vmul.f32 %v1214, %v1270
    %v1279 = vmul.f32 %v1215, %v1271
    %v1280 = vmul.f32 %v1216, %v1272
    %v1281 = vmul.f32 %v1217, %v1273
    %v1282 = vmul.f32 %v1218, %v1274
    %v1283 = vmul.f32 %v1219, %v1275
    %v1284 = vmul.f32 %v1220, %v1276
    %v1285 = vlaneseq
    %v1286 = vshrl.u32 %v1285, 7
    %v1287 = vsub.s32 0, %v1286
    %v1288 = vrot.slane %v54, %v1287
    %v1289 = vmul.f32 %v1277, %v1288
    %v1290 = vmul.f32 %v1278, %v1288
    %v1291 = vmul.f32 %v1279, %v1288
    %v1292 = vmul.f32 %v1280, %v1288
    %v1293 = vmul.f32 %v1281, %v1288
    %v1294 = vmul.f32 %v1282, %v1288
    %v1295 = vmul.f32 %v1283, %v1288
    %v1296 = vmul.f32 %v1284, %v1288
    %v1297 = vlaneseq
    %v1298 = vshrl.u32 %v1297, 7
    %v1299 = vsub.s32 0, %v1298
    %v1300 = vrot.slane %v55, %v1299
    %v1301 = vadd.f32 %v1289, %v1300
    %v1302 = vadd.f32 %v1290, %v1300
    %v1303 = vadd.f32 %v1291, %v1300
    %v1304 = vadd.f32 %v1292, %v1300
    %v1305 = vadd.f32 %v1293, %v1300
    %v1306 = vadd.f32 %v1294, %v1300
    %v1307 = vadd.f32 %v1295, %v1300
    %v1308 = vadd.f32 %v1296, %v1300
    %v1309 = vmax.f32 %v1301, 0.0
    %v1310 = vmax.f32 %v1302, 0.0
    %v1311 = vmax.f32 %v1303, 0.0
    %v1312 = vmax.f32 %v1304, 0.0
    %v1313 = vmax.f32 %v1305, 0.0
    %v1314 = vmax.f32 %v1306, 0.0
    %v1315 = vmax.f32 %v1307, 0.0
    %v1316 = vmax.f32 %v1308, 0.0
    %v1317 = vlaneseq
    %v1318 = vshrl.u32 %v1317, 7
    %v1319 = vsub.s32 0, %v1318
    %v1320 = vrot.slane %v56, %v1319
    %v1322 = vsel %vm633, %v1309, 0
    %v1325 = vsel %vm633, %v1310, 0
    %v1328 = vsel %vm633, %v1311, 0
    %v1331 = vsel %vm633, %v1312, 0
    %v1334 = vsel %vm633, %v1313, 0
    %v1337 = vsel %vm633, %v1314, 0
    %v1340 = vsel %vm633, %v1315, 0
    %v1343 = vsel %vm633, %v1316, 0
    %1345 = vmatprep.subr.mxu0 0.0
    %1346 = vmatpush1.msra.mxu0 %v38
    %1347 = vmatprep.subr.mxu0 0.0
    %1348 = vmatpush1.msra.mxu0 %v39
    %1349 = vmatprep.subr.mxu0 0.0
    %1350 = vmatpush1.msra.mxu0 %v40
    %1351 = vmatprep.subr.mxu0 0.0
    %1352 = vmatpush1.msra.mxu0 %v41
    %1353 = vmatprep.subr.mxu0 0.0
    %1354 = vmatpush1.msra.mxu0 0.0
    %1355 = vmatprep.subr.mxu0 0.0
    %1356 = vmatpush1.msra.mxu0 0.0
    %1357 = vmatprep.subr.mxu0 0.0
    %1358 = vmatpush1.msra.mxu0 0.0
    %1359 = vmatprep.subr.mxu0 0.0
    %1360 = vmatpush1.msra.mxu0 0.0
    %1361 = vmatprep.subr.mxu0 0.0
    %1362 = vmatpush1.msra.mxu0 0.0
    %1363 = vmatprep.subr.mxu0 0.0
    %1364 = vmatpush1.msra.mxu0 0.0
    %1365 = vmatprep.subr.mxu0 0.0
    %1366 = vmatpush1.msra.mxu0 0.0
    %1367 = vmatprep.subr.mxu0 0.0
    %1368 = vmatpush1.msra.mxu0 0.0
    %1369 = vmatprep.subr.mxu0 0.0
    %1370 = vmatpush1.msra.mxu0 0.0
    %1371 = vmatprep.subr.mxu0 0.0
    %1372 = vmatpush1.msra.mxu0 0.0
    %1373 = vmatprep.subr.mxu0 0.0
    %1374 = vmatpush1.msra.mxu0 0.0
    %1375 = vmatprep.subr.mxu0 0.0
    %1376 = vmatpush1.msra.mxu0 0.0
    %1377 = vmatprep.subr.mxu0 0.0
    %1378 = vmatpush1.msra.mxu0 0.0
    %1379 = vmatprep.subr.mxu0 0.0
    %1380 = vmatpush1.msra.mxu0 0.0
    %1381 = vmatprep.subr.mxu0 0.0
    %1382 = vmatpush1.msra.mxu0 0.0
    %1383 = vmatprep.subr.mxu0 0.0
    %1384 = vmatpush1.msra.mxu0 0.0
    %1385 = vmatprep.subr.mxu0 0.0
    %1386 = vmatpush1.msra.mxu0 0.0
    %1387 = vmatprep.subr.mxu0 0.0
    %1388 = vmatpush1.msra.mxu0 0.0
    %1389 = vmatprep.subr.mxu0 0.0
    %1390 = vmatpush1.msra.mxu0 0.0
    %1391 = vmatprep.subr.mxu0 0.0
    %1392 = vmatpush1.msra.mxu0 0.0
    %1393 = vmatprep.subr.mxu0 0.0
    %1394 = vmatpush1.msra.mxu0 0.0
    %1395 = vmatprep.subr.mxu0 0.0
    %1396 = vmatpush1.msra.mxu0 0.0
    %1397 = vmatprep.subr.mxu0 0.0
    %1398 = vmatpush1.msra.mxu0 0.0
    %1399 = vmatprep.subr.mxu0 0.0
    %1400 = vmatpush1.msra.mxu0 0.0
    %1401 = vmatprep.subr.mxu0 0.0
    %1402 = vmatpush1.msra.mxu0 0.0
    %1403 = vmatprep.subr.mxu0 0.0
    %1404 = vmatpush1.msra.mxu0 0.0
    %1405 = vmatprep.subr.mxu0 0.0
    %1406 = vmatpush1.msra.mxu0 0.0
    %1407 = vmatprep.subr.mxu0 0.0
    %1408 = vmatpush1.msra.mxu0 0.0
    %1409 = vmatprep.mubr.f32.mxu0 0.0
    %1410 = vmatmul.mubr.f32.gmra.mrb[0].mxu0 %v1322
    %v1411 = vpop.f32.mrb[0].mxu0
    %v1412 = vadd.f32 %v1320, %v1411
    %v1413 = vpop.f32.mrb[0].mxu0
    %1414 = vmatprep.mubr.f32.mxu0 0.0
    %1415 = vmatmul.mubr.f32.gmra.mrb[0].mxu0 %v1325
    %v1416 = vpop.f32.mrb[0].mxu0
    %v1417 = vadd.f32 %v1320, %v1416
    %v1418 = vpop.f32.mrb[0].mxu0
    %1419 = vmatprep.mubr.f32.mxu0 0.0
    %1420 = vmatmul.mubr.f32.gmra.mrb[0].mxu0 %v1328
    %v1421 = vpop.f32.mrb[0].mxu0
    %v1422 = vadd.f32 %v1320, %v1421
    %v1423 = vpop.f32.mrb[0].mxu0
    %1424 = vmatprep.mubr.f32.mxu0 0.0
    %1425 = vmatmul.mubr.f32.gmra.mrb[0].mxu0 %v1331
    %v1426 = vpop.f32.mrb[0].mxu0
    %v1427 = vadd.f32 %v1320, %v1426
    %v1428 = vpop.f32.mrb[0].mxu0
    %1429 = vmatprep.mubr.f32.mxu0 0.0
    %1430 = vmatmul.mubr.f32.gmra.mrb[0].mxu0 %v1334
    %v1431 = vpop.f32.mrb[0].mxu0
    %v1432 = vadd.f32 %v1320, %v1431
    %v1433 = vpop.f32.mrb[0].mxu0
    %1434 = vmatprep.mubr.f32.mxu0 0.0
    %1435 = vmatmul.mubr.f32.gmra.mrb[0].mxu0 %v1337
    %v1436 = vpop.f32.mrb[0].mxu0
    %v1437 = vadd.f32 %v1320, %v1436
    %v1438 = vpop.f32.mrb[0].mxu0
    %1439 = vmatprep.mubr.f32.mxu0 0.0
    %1440 = vmatmul.mubr.f32.gmra.mrb[0].mxu0 %v1340
    %v1441 = vpop.f32.mrb[0].mxu0
    %v1442 = vadd.f32 %v1320, %v1441
    %v1443 = vpop.f32.mrb[0].mxu0
    %1444 = vmatprep.mubr.f32.mxu0 0.0
    %1445 = vmatmul.mubr.f32.gmra.mrb[0].mxu0 %v1343
    %v1446 = vpop.f32.mrb[0].mxu0
    %v1447 = vadd.f32 %v1320, %v1446
    %v1448 = vpop.f32.mrb[0].mxu0
    %1449 = vdwg.mxu0
    %vm1450 = vcmask 31744
    %v1451 = vsel %vm1450, %v1412, -inf
    %1452 = vmax.xlane.f32.xlu0 %v1451
    %v1453 = vpop.xlane.xlu0 %1452
    %v1454 = vsel %vm1450, %v1417, -inf
    %1455 = vmax.xlane.f32.xlu0 %v1454
    %v1456 = vpop.xlane.xlu0 %1455
    %v1457 = vsel %vm1450, %v1422, -inf
    %1458 = vmax.xlane.f32.xlu0 %v1457
    %v1459 = vpop.xlane.xlu0 %1458
    %v1460 = vsel %vm1450, %v1427, -inf
    %1461 = vmax.xlane.f32.xlu0 %v1460
    %v1462 = vpop.xlane.xlu0 %1461
    %v1463 = vsel %vm1450, %v1432, -inf
    %1464 = vmax.xlane.f32.xlu0 %v1463
    %v1465 = vpop.xlane.xlu0 %1464
    %v1466 = vsel %vm1450, %v1437, -inf
    %1467 = vmax.xlane.f32.xlu0 %v1466
    %v1468 = vpop.xlane.xlu0 %1467
    %v1469 = vsel %vm1450, %v1442, -inf
    %1470 = vmax.xlane.f32.xlu0 %v1469
    %v1471 = vpop.xlane.xlu0 %1470
    %v1472 = vsel %vm1450, %v1447, -inf
    %1473 = vmax.xlane.f32.xlu0 %v1472
    %v1474 = vpop.xlane.xlu0 %1473
    %v1475 = vsub.f32 %v1412, %v1453
    %v1476 = vsub.f32 %v1417, %v1456
    %v1477 = vsub.f32 %v1422, %v1459
    %v1478 = vsub.f32 %v1427, %v1462
    %v1479 = vsub.f32 %v1432, %v1465
    %v1480 = vsub.f32 %v1437, %v1468
    %v1481 = vsub.f32 %v1442, %v1471
    %v1482 = vsub.f32 %v1447, %v1474
    %v1483 = vmul.f32 %v1475, 1.442695
    %v1484 = vpow.pop %v1483
    %v1485 = vmul.f32 %v1476, 1.442695
    %v1486 = vpow.pop %v1485
    %v1487 = vmul.f32 %v1477, 1.442695
    %v1488 = vpow.pop %v1487
    %v1489 = vmul.f32 %v1478, 1.442695
    %v1490 = vpow.pop %v1489
    %v1491 = vmul.f32 %v1479, 1.442695
    %v1492 = vpow.pop %v1491
    %v1493 = vmul.f32 %v1480, 1.442695
    %v1494 = vpow.pop %v1493
    %v1495 = vmul.f32 %v1481, 1.442695
    %v1496 = vpow.pop %v1495
    %v1497 = vmul.f32 %v1482, 1.442695
    %v1498 = vpow.pop %v1497
    %v1499 = vsel %vm1450, %v1484, 0.0
    %1500 = vadd.xlane.f32.xlu0 %v1499
    %v1501 = vpop.xlane.xlu0 %1500
    %v1502 = vsel %vm1450, %v1486, 0.0
    %1503 = vadd.xlane.f32.xlu0 %v1502
    %v1504 = vpop.xlane.xlu0 %1503
    %v1505 = vsel %vm1450, %v1488, 0.0
    %1506 = vadd.xlane.f32.xlu0 %v1505
    %v1507 = vpop.xlane.xlu0 %1506
    %v1508 = vsel %vm1450, %v1490, 0.0
    %1509 = vadd.xlane.f32.xlu0 %v1508
    %v1510 = vpop.xlane.xlu0 %1509
    %v1511 = vsel %vm1450, %v1492, 0.0
    %1512 = vadd.xlane.f32.xlu0 %v1511
    %v1513 = vpop.xlane.xlu0 %1512
    %v1514 = vsel %vm1450, %v1494, 0.0
    %1515 = vadd.xlane.f32.xlu0 %v1514
    %v1516 = vpop.xlane.xlu0 %1515
    %v1517 = vsel %vm1450, %v1496, 0.0
    %1518 = vadd.xlane.f32.xlu0 %v1517
    %v1519 = vpop.xlane.xlu0 %1518
    %v1520 = vsel %vm1450, %v1498, 0.0
    %1521 = vadd.xlane.f32.xlu0 %v1520
    %v1522 = vpop.xlane.xlu0 %1521
    %v1523 = vrcp.pop %v1501
    %v1524 = vrcp.pop %v1504
    %v1525 = vrcp.pop %v1507
    %v1526 = vrcp.pop %v1510
    %v1527 = vrcp.pop %v1513
    %v1528 = vrcp.pop %v1516
    %v1529 = vrcp.pop %v1519
    %v1530 = vrcp.pop %v1522
    %v1531 = vmul.f32 %v1484, %v1523
    %v1532 = vmul.f32 %v1486, %v1524
    %v1533 = vmul.f32 %v1488, %v1525
    %v1534 = vmul.f32 %v1490, %v1526
    %v1535 = vmul.f32 %v1492, %v1527
    %v1536 = vmul.f32 %v1494, %v1528
    %v1537 = vmul.f32 %v1496, %v1529
    %v1538 = vmul.f32 %v1498, %v1530
    %v1539 = vlaneseq
    %v1540 = vshrl.u32 %v1539, 7
    %v1541 = vsub.s32 0, %v1540
    %v1542 = vrot.slane %v57, %v1541
    %v1543 = vmul.f32 %v1531, %v1542
    %v1544 = vmul.f32 %v1532, %v1542
    %v1545 = vmul.f32 %v1533, %v1542
    %v1546 = vmul.f32 %v1534, %v1542
    %v1547 = vmul.f32 %v1535, %v1542
    %v1548 = vmul.f32 %v1536, %v1542
    %v1549 = vmul.f32 %v1537, %v1542
    %v1550 = vmul.f32 %v1538, %v1542
    %v1551 = vsel %vm1450, %v1543, 0.0
    %1552 = vadd.xlane.f32.xlu0 %v1551
    %v1553 = vpop.xlane.xlu0 %1552
    %v1554 = vsel %vm1450, %v1544, 0.0
    %1555 = vadd.xlane.f32.xlu0 %v1554
    %v1556 = vpop.xlane.xlu0 %1555
    %v1557 = vsel %vm1450, %v1545, 0.0
    %1558 = vadd.xlane.f32.xlu0 %v1557
    %v1559 = vpop.xlane.xlu0 %1558
    %v1560 = vsel %vm1450, %v1546, 0.0
    %1561 = vadd.xlane.f32.xlu0 %v1560
    %v1562 = vpop.xlane.xlu0 %1561
    %v1563 = vsel %vm1450, %v1547, 0.0
    %1564 = vadd.xlane.f32.xlu0 %v1563
    %v1565 = vpop.xlane.xlu0 %1564
    %v1566 = vsel %vm1450, %v1548, 0.0
    %1567 = vadd.xlane.f32.xlu0 %v1566
    %v1568 = vpop.xlane.xlu0 %1567
    %v1569 = vsel %vm1450, %v1549, 0.0
    %1570 = vadd.xlane.f32.xlu0 %v1569
    %v1571 = vpop.xlane.xlu0 %1570
    %v1572 = vsel %vm1450, %v1550, 0.0
    %1573 = vadd.xlane.f32.xlu0 %v1572
    %v1574 = vpop.xlane.xlu0 %1573
    %v1575 = vadd.f32 %v1412, %v1553
    %v1576 = vadd.f32 %v1417, %v1556
    %v1577 = vadd.f32 %v1422, %v1559
    %v1578 = vadd.f32 %v1427, %v1562
    %v1579 = vadd.f32 %v1432, %v1565
    %v1580 = vadd.f32 %v1437, %v1568
    %v1581 = vadd.f32 %v1442, %v1571
    %v1582 = vadd.f32 %v1447, %v1574
    %v1583 = vlaneseq
    %v1584 = vshrl.u32 %v1583, 7
    %v1585 = vsub.s32 0, %v1584
    %v1586 = vrot.slane %v58, %v1585
    %v1587 = vmul.f32 %v1531, %v1586
    %v1588 = vmul.f32 %v1532, %v1586
    %v1589 = vmul.f32 %v1533, %v1586
    %v1590 = vmul.f32 %v1534, %v1586
    %v1591 = vmul.f32 %v1535, %v1586
    %v1592 = vmul.f32 %v1536, %v1586
    %v1593 = vmul.f32 %v1537, %v1586
    %v1594 = vmul.f32 %v1538, %v1586
    %v1595 = vsel %vm1450, %v1587, 0.0
    %1596 = vadd.xlane.f32.xlu0 %v1595
    %v1597 = vpop.xlane.xlu0 %1596
    %v1598 = vsel %vm1450, %v1588, 0.0
    %1599 = vadd.xlane.f32.xlu0 %v1598
    %v1600 = vpop.xlane.xlu0 %1599
    %v1601 = vsel %vm1450, %v1589, 0.0
    %1602 = vadd.xlane.f32.xlu0 %v1601
    %v1603 = vpop.xlane.xlu0 %1602
    %v1604 = vsel %vm1450, %v1590, 0.0
    %1605 = vadd.xlane.f32.xlu0 %v1604
    %v1606 = vpop.xlane.xlu0 %1605
    %v1607 = vsel %vm1450, %v1591, 0.0
    %1608 = vadd.xlane.f32.xlu0 %v1607
    %v1609 = vpop.xlane.xlu0 %1608
    %v1610 = vsel %vm1450, %v1592, 0.0
    %1611 = vadd.xlane.f32.xlu0 %v1610
    %v1612 = vpop.xlane.xlu0 %1611
    %v1613 = vsel %vm1450, %v1593, 0.0
    %1614 = vadd.xlane.f32.xlu0 %v1613
    %v1615 = vpop.xlane.xlu0 %1614
    %v1616 = vsel %vm1450, %v1594, 0.0
    %1617 = vadd.xlane.f32.xlu0 %v1616
    %v1618 = vpop.xlane.xlu0 %1617
    %v1619 = vadd.f32 %v1412, %v1597
    %v1620 = vadd.f32 %v1417, %v1600
    %v1621 = vadd.f32 %v1422, %v1603
    %v1622 = vadd.f32 %v1427, %v1606
    %v1623 = vadd.f32 %v1432, %v1609
    %v1624 = vadd.f32 %v1437, %v1612
    %v1625 = vadd.f32 %v1442, %v1615
    %v1626 = vadd.f32 %v1447, %v1618
    %v1627 = vmul.f32 %v1619, 0.5
    %v1628 = vmul.f32 %v1620, 0.5
    %v1629 = vmul.f32 %v1621, 0.5
    %v1630 = vmul.f32 %v1622, 0.5
    %v1631 = vmul.f32 %v1623, 0.5
    %v1632 = vmul.f32 %v1624, 0.5
    %v1633 = vmul.f32 %v1625, 0.5
    %v1634 = vmul.f32 %v1626, 0.5
    %v1635 = vmul.f32 %v1627, 1.442695
    %v1636 = vpow.pop %v1635
    %v1637 = vmul.f32 %v1628, 1.442695
    %v1638 = vpow.pop %v1637
    %v1639 = vmul.f32 %v1629, 1.442695
    %v1640 = vpow.pop %v1639
    %v1641 = vmul.f32 %v1630, 1.442695
    %v1642 = vpow.pop %v1641
    %v1643 = vmul.f32 %v1631, 1.442695
    %v1644 = vpow.pop %v1643
    %v1645 = vmul.f32 %v1632, 1.442695
    %v1646 = vpow.pop %v1645
    %v1647 = vmul.f32 %v1633, 1.442695
    %v1648 = vpow.pop %v1647
    %v1649 = vmul.f32 %v1634, 1.442695
    %v1650 = vpow.pop %v1649
    %vm1651 = vcmp.lt.s32.totalorder %v60, 4
    %v1652 = vsel %vm1651, %v1412, 0.0
    %v1653 = vsel %vm1651, %v1417, 0.0
    %v1654 = vsel %vm1651, %v1422, 0.0
    %v1655 = vsel %vm1651, %v1427, 0.0
    %v1656 = vsel %vm1651, %v1432, 0.0
    %v1657 = vsel %vm1651, %v1437, 0.0
    %v1658 = vsel %vm1651, %v1442, 0.0
    %v1659 = vsel %vm1651, %v1447, 0.0
    %vm1660 = vcmp.eq.s32.totalorder %v60, 4
    %1662 = vset.pattern.permute.xlu0 4
    %1663 = vperm.xlu0 %1662, %v1575
    %v1664 = vpop.permute.xlu0 %1663
    %1667 = vset.pattern.permute.xlu0 4
    %1668 = vperm.xlu0 %1667, %v1576
    %v1669 = vpop.permute.xlu0 %1668
    %1672 = vset.pattern.permute.xlu0 4
    %1673 = vperm.xlu0 %1672, %v1577
    %v1674 = vpop.permute.xlu0 %1673
    %1677 = vset.pattern.permute.xlu0 4
    %1678 = vperm.xlu0 %1677, %v1578
    %v1679 = vpop.permute.xlu0 %1678
    %1682 = vset.pattern.permute.xlu0 4
    %1683 = vperm.xlu0 %1682, %v1579
    %v1684 = vpop.permute.xlu0 %1683
    %1687 = vset.pattern.permute.xlu0 4
    %1688 = vperm.xlu0 %1687, %v1580
    %v1689 = vpop.permute.xlu0 %1688
    %1692 = vset.pattern.permute.xlu0 4
    %1693 = vperm.xlu0 %1692, %v1581
    %v1694 = vpop.permute.xlu0 %1693
    %1697 = vset.pattern.permute.xlu0 4
    %1698 = vperm.xlu0 %1697, %v1582
    %v1699 = vpop.permute.xlu0 %1698
    %v1701 = vsel %vm1660, %v1664, 0.0
    %v1702 = vsel %vm1660, %v1669, 0.0
    %v1703 = vsel %vm1660, %v1674, 0.0
    %v1704 = vsel %vm1660, %v1679, 0.0
    %v1705 = vsel %vm1660, %v1684, 0.0
    %v1706 = vsel %vm1660, %v1689, 0.0
    %v1707 = vsel %vm1660, %v1694, 0.0
    %v1708 = vsel %vm1660, %v1699, 0.0
    %v1709 = vadd.f32 %v1652, %v1701
    %v1710 = vadd.f32 %v1653, %v1702
    %v1711 = vadd.f32 %v1654, %v1703
    %v1712 = vadd.f32 %v1655, %v1704
    %v1713 = vadd.f32 %v1656, %v1705
    %v1714 = vadd.f32 %v1657, %v1706
    %v1715 = vadd.f32 %v1658, %v1707
    %v1716 = vadd.f32 %v1659, %v1708
    %vm1717 = vcmp.eq.s32.totalorder %v60, 5
    %1719 = vset.pattern.permute.xlu0 5
    %1720 = vperm.xlu0 %1719, %v1619
    %v1721 = vpop.permute.xlu0 %1720
    %1724 = vset.pattern.permute.xlu0 5
    %1725 = vperm.xlu0 %1724, %v1620
    %v1726 = vpop.permute.xlu0 %1725
    %1729 = vset.pattern.permute.xlu0 5
    %1730 = vperm.xlu0 %1729, %v1621
    %v1731 = vpop.permute.xlu0 %1730
    %1734 = vset.pattern.permute.xlu0 5
    %1735 = vperm.xlu0 %1734, %v1622
    %v1736 = vpop.permute.xlu0 %1735
    %1739 = vset.pattern.permute.xlu0 5
    %1740 = vperm.xlu0 %1739, %v1623
    %v1741 = vpop.permute.xlu0 %1740
    %1744 = vset.pattern.permute.xlu0 5
    %1745 = vperm.xlu0 %1744, %v1624
    %v1746 = vpop.permute.xlu0 %1745
    %1749 = vset.pattern.permute.xlu0 5
    %1750 = vperm.xlu0 %1749, %v1625
    %v1751 = vpop.permute.xlu0 %1750
    %1754 = vset.pattern.permute.xlu0 5
    %1755 = vperm.xlu0 %1754, %v1626
    %v1756 = vpop.permute.xlu0 %1755
    %v1758 = vsel %vm1717, %v1721, 0.0
    %v1759 = vsel %vm1717, %v1726, 0.0
    %v1760 = vsel %vm1717, %v1731, 0.0
    %v1761 = vsel %vm1717, %v1736, 0.0
    %v1762 = vsel %vm1717, %v1741, 0.0
    %v1763 = vsel %vm1717, %v1746, 0.0
    %v1764 = vsel %vm1717, %v1751, 0.0
    %v1765 = vsel %vm1717, %v1756, 0.0
    %v1766 = vadd.f32 %v1709, %v1758
    %v1767 = vadd.f32 %v1710, %v1759
    %v1768 = vadd.f32 %v1711, %v1760
    %v1769 = vadd.f32 %v1712, %v1761
    %v1770 = vadd.f32 %v1713, %v1762
    %v1771 = vadd.f32 %v1714, %v1763
    %v1772 = vadd.f32 %v1715, %v1764
    %v1773 = vadd.f32 %v1716, %v1765
    %vm1774 = vcmp.eq.s32.totalorder %v60, 6
    %1776 = vset.pattern.permute.xlu0 5
    %1777 = vperm.xlu0 %1776, %v1636
    %v1778 = vpop.permute.xlu0 %1777
    %1781 = vset.pattern.permute.xlu0 5
    %1782 = vperm.xlu0 %1781, %v1638
    %v1783 = vpop.permute.xlu0 %1782
    %1786 = vset.pattern.permute.xlu0 5
    %1787 = vperm.xlu0 %1786, %v1640
    %v1788 = vpop.permute.xlu0 %1787
    %1791 = vset.pattern.permute.xlu0 5
    %1792 = vperm.xlu0 %1791, %v1642
    %v1793 = vpop.permute.xlu0 %1792
    %1796 = vset.pattern.permute.xlu0 5
    %1797 = vperm.xlu0 %1796, %v1644
    %v1798 = vpop.permute.xlu0 %1797
    %1801 = vset.pattern.permute.xlu0 5
    %1802 = vperm.xlu0 %1801, %v1646
    %v1803 = vpop.permute.xlu0 %1802
    %1806 = vset.pattern.permute.xlu0 5
    %1807 = vperm.xlu0 %1806, %v1648
    %v1808 = vpop.permute.xlu0 %1807
    %1811 = vset.pattern.permute.xlu0 5
    %1812 = vperm.xlu0 %1811, %v1650
    %v1813 = vpop.permute.xlu0 %1812
    %v1815 = vsel %vm1774, %v1778, 0.0
    %v1816 = vsel %vm1774, %v1783, 0.0
    %v1817 = vsel %vm1774, %v1788, 0.0
    %v1818 = vsel %vm1774, %v1793, 0.0
    %v1819 = vsel %vm1774, %v1798, 0.0
    %v1820 = vsel %vm1774, %v1803, 0.0
    %v1821 = vsel %vm1774, %v1808, 0.0
    %v1822 = vsel %vm1774, %v1813, 0.0
    %v1823 = vadd.f32 %v1766, %v1815
    %v1824 = vadd.f32 %v1767, %v1816
    %v1825 = vadd.f32 %v1768, %v1817
    %v1826 = vadd.f32 %v1769, %v1818
    %v1827 = vadd.f32 %v1770, %v1819
    %v1828 = vadd.f32 %v1771, %v1820
    %v1829 = vadd.f32 %v1772, %v1821
    %v1830 = vadd.f32 %v1773, %v1822
    %s1831 = scalar_lea.vmem %s7, %s67
    %1832 = vst [vmem:[%s1831] sm:$0xff] %v1823
    %1833 = vst [vmem:[%s1831 + $0x8] sm:$0xff] %v1824
    %1834 = vst [vmem:[%s1831 + $0x10] sm:$0xff] %v1825
    %1835 = vst [vmem:[%s1831 + $0x18] sm:$0xff] %v1826
    %1836 = vst [vmem:[%s1831 + $0x20] sm:$0xff] %v1827
    %1837 = vst [vmem:[%s1831 + $0x28] sm:$0xff] %v1828
    %1838 = vst [vmem:[%s1831 + $0x30] sm:$0xff] %v1829
    %1839 = vst [vmem:[%s1831 + $0x38] sm:$0xff] %v1830
  $region34: #{_forward.1} parent=0 // loop_footer
    %s66 = sadd.s32 1, %s62
  $region35: #{_forward.1} parent=0 // loop_footer_branch
    %61 = sbr.rel target = $region31
  $region36: #{_forward.1} parent=0 // loop_exit
    _
  // Predicated region
  $region37: #{_forward.1} parent=0 // pred_check
    _
  $region38: #{_forward.1} parent=0 // pred_check_branch
    %1841 = sbr.rel (0) target = $region40
  $region39: #{_forward.1} parent=0 // pred_region
    _
  $region40: #{_forward.1} parent=0 // pred_fallthru
    _
  // Predicated region
  $region41: #{_forward.1} parent=0 // pred_check
    _
  $region42: #{_forward.1} parent=0 // pred_check_branch
    %1843 = sbr.rel (0) target = $region44
  $region43: #{_forward.1} parent=0 // pred_region
    _
  $region44: #{_forward.1} parent=0 // pred_fallthru
    _

</llo_original>
